<compile_context>
chip_gen: v7x
topology: tpu7x:2x2x1
jax: 0.10.0
libtpu: 0.0.40
codegen_flags: <defaults>
</compile_context>

<pallas_src>
import functools

import jax
import jax.numpy as jnp
import numpy as np
from jax.experimental import pallas as pl
from jax.experimental.pallas import tpu as pltpu

K = 4        # ConvTranspose2d kernel size
STRIDE = 2
PAD = 1
EPS = 1e-5   # BatchNorm2d default eps

VMEM_LIMIT = 32 * 1024 * 1024   # explicit budget; fits v5e/v6e/v7x scoped VMEM


def _conv_stats_kernel(xp_ref, w_ref, y_ref, stats_ref, *, H, W, C_in, C_out):
    """One batch image: sub-pixel ConvTranspose GEMMs + BN partial sums.

    xp_ref:    (1, H+2, W+2, C_in)   zero-padded NHWC image
    w_ref:     (16, C_in, C_out)     weight taps, index = ((p*2+q)*2+tr)*2+tc
    y_ref:     (1, 4, H*W, C_out)    pre-BN activations, parity-planar
    stats_ref: (1, 2, C_out)         row 0 = sum, row 1 = sum of squares
    """
    # The 9 distinct shifted views of the padded image (built in VMEM, not HBM).
    taps = {}
    for dr in range(3):
        for dc in range(3):
            taps[(dr, dc)] = xp_ref[0, dr:dr + H, dc:dc + W, :].reshape(H * W, C_in)

    s = jnp.zeros((1, C_out), jnp.float32)
    sq = jnp.zeros((1, C_out), jnp.float32)
    for p in range(2):
        for q in range(2):
            acc = jnp.zeros((H * W, C_out), jnp.float32)
            for tr in range(2):
                for tc in range(2):
                    w_idx = ((p * 2 + q) * 2 + tr) * 2 + tc
                    acc = acc + jnp.dot(taps[(p + tr, q + tc)], w_ref[w_idx],
                                        preferred_element_type=jnp.float32)
            y_ref[0, p * 2 + q] = acc
            s = s + jnp.sum(acc, axis=0, keepdims=True)
            sq = sq + jnp.sum(acc * acc, axis=0, keepdims=True)

    stats_ref[0, 0:1, :] = s
    stats_ref[0, 1:2, :] = sq


def _bn_relu_kernel(y_ref, scale_ref, shift_ref, out_ref):
    """Streamed BatchNorm affine + ReLU on one lane-dense row tile."""
    out_ref[...] = jnp.maximum(y_ref[...] * scale_ref[...] + shift_ref[...], 0.0)


def _pick_row_tile(total):
    for cand in (4096, 2048, 1024, 512, 256, 128, 64, 32, 16, 8):
        if total % cand == 0:
            return cand
    return total


def decoder_block(x, w_t, gamma, beta):
    """x: (N, C_in, H, W) f32; w_t: ConvTranspose2d weight (C_in, C_out, 4, 4)."""
    N, C_in, H, W = x.shape
    C_out = w_t.shape[1]
    H_out, W_out = H * STRIDE, W * STRIDE

    # ---- glue: NHWC + 1px zero pad (handles all boundary taps of the ConvT) ----
    xp = jnp.pad(jnp.transpose(x, (0, 2, 3, 1)),
                 ((0, 0), (1, 1), (1, 1), (0, 0)))            # (N, H+2, W+2, C_in)

    # Sub-pixel weights: w_k[p, q, tr, tc, ci, co] = w_t[ci, co, 3-p-2*tr, 3-q-2*tc]
    w_perm = jnp.transpose(w_t, (2, 3, 0, 1))                 # (kh, kw, C_in, C_out)
    sub = np.array([[3, 1], [2, 0]])                          # [parity, tap] -> kernel index
    w_k = w_perm[sub[:, None, :, None], sub[None, :, None, :]]   # (2,2,2,2,C_in,C_out)
    w_flat = w_k.reshape(16, C_in, C_out)

    # ---- phase 0: transposed conv (exact sub-pixel GEMMs) + per-image BN sums ----
    kern0 = functools.partial(_conv_stats_kernel, H=H, W=W, C_in=C_in, C_out=C_out)
    y, stats = pl.pallas_call(
        kern0,
        out_shape=[jax.ShapeDtypeStruct((N, 4, H * W, C_out), jnp.float32),
                   jax.ShapeDtypeStruct((N, 2, C_out), jnp.float32)],
        grid_spec=pltpu.PrefetchScalarGridSpec(
            num_scalar_prefetch=0,
            grid=(N,),
            in_specs=[
                pl.BlockSpec((1, H + 2, W + 2, C_in), lambda n: (n, 0, 0, 0)),
                pl.BlockSpec((16, C_in, C_out), lambda n: (0, 0, 0)),
            ],
            out_specs=[
                pl.BlockSpec((1, 4, H * W, C_out), lambda n: (n, 0, 0, 0)),
                pl.BlockSpec((1, 2, C_out), lambda n: (n, 0, 0)),
            ],
        ),
        compiler_params=pltpu.CompilerParams(
            dimension_semantics=("parallel",),
            vmem_limit_bytes=VMEM_LIMIT),
    )(xp, w_flat)

    # ---- tiny cross-image reduction + BN scale/shift (few KB of XLA work) ----
    cnt = jnp.float32(N * H_out * W_out)
    tot = jnp.sum(stats, axis=0)                              # (2, C_out)
    mean = tot[0] / cnt
    var = tot[1] / cnt - mean * mean                          # biased var (BN training norm)
    # TODO(synk): BatchNorm2d's running_mean / running_var buffers are not updated here.
    inv = jax.lax.rsqrt(var + EPS)
    scale = gamma * inv
    shift = beta - mean * scale

    # ---- phase 1: streamed normalize + ReLU, lane-dense output tiles ----
    R = N * 4 * H * W                                         # = N * H_out * W_out rows
    k = 1
    if C_out < 128 and 128 % C_out == 0 and R % (128 // C_out) == 0:
        k = 128 // C_out                                      # pack channels up to 128 lanes
    LW = k * C_out
    R2 = R // k
    row_tile = _pick_row_tile(R2)

    y2 = y.reshape(R2, LW)                                    # free row-major collapse
    scale2 = jnp.tile(scale.reshape(1, C_out), (1, k))
    shift2 = jnp.tile(shift.reshape(1, C_out), (1, k))

    out2 = pl.pallas_call(
        _bn_relu_kernel,
        out_shape=jax.ShapeDtypeStruct((R2, LW), jnp.float32),
        grid_spec=pltpu.PrefetchScalarGridSpec(
            num_scalar_prefetch=0,
            grid=(R2 // row_tile,),
            in_specs=[
                pl.BlockSpec((row_tile, LW), lambda i: (i, 0)),
                pl.BlockSpec((1, LW), lambda i: (0, 0)),
                pl.BlockSpec((1, LW), lambda i: (0, 0)),
            ],
            out_specs=pl.BlockSpec((row_tile, LW), lambda i: (i, 0)),
        ),
        compiler_params=pltpu.CompilerParams(
            dimension_semantics=("parallel",),
            vmem_limit_bytes=VMEM_LIMIT),
    )(y2, scale2, shift2)

    # ---- back to PyTorch NCHW (pixel-shuffle of the parity planes) ----
    # TODO(synk): if the consumer accepts NHWC / parity-planar layout, return
    # out2 reshaped directly and skip this extra transpose pass.
    out6 = out2.reshape(N, 2, 2, H, W, C_out)                 # (n, p, q, h, w, c)
    return out6.transpose(0, 5, 3, 1, 4, 2).reshape(N, C_out, H_out, W_out)


def decoder_block_ref(x, w_t, gamma, beta):
    """Pure-JAX reference (ConvTranspose2d + BatchNorm2d(train) + ReLU)."""
    w_conv = jnp.transpose(w_t[:, :, ::-1, ::-1], (1, 0, 2, 3))   # (C_out, C_in, 4, 4)
    y = jax.lax.conv_general_dilated(
        x, w_conv, window_strides=(1, 1), padding=[(2, 2), (2, 2)],
        lhs_dilation=(2, 2), dimension_numbers=("NCHW", "OIHW", "NCHW"))
    mean = y.mean(axis=(0, 2, 3), keepdims=True)
    var = y.var(axis=(0, 2, 3), keepdims=True)
    yn = (y - mean) * jax.lax.rsqrt(var + EPS)
    yn = yn * gamma.reshape(1, -1, 1, 1) + beta.reshape(1, -1, 1, 1)
    return jnp.maximum(yn, 0.0)


if __name__ == "__main__":
    N, C_in, C_out, H, W = 2, 4, 8, 16, 16

    key = jax.random.PRNGKey(0)
    kx, kw, kg, kb = jax.random.split(key, 4)
    x = jax.random.normal(kx, (N, C_in, H, W), dtype=jnp.float32)
    # ConvTranspose2d weight shape: (in_channels, out_channels, kH, kW)
    w_t = jax.random.normal(kw, (C_in, C_out, K, K), dtype=jnp.float32) * 0.1
    gamma = 1.0 + 0.1 * jax.random.normal(kg, (C_out,), dtype=jnp.float32)
    beta = 0.1 * jax.random.normal(kb, (C_out,), dtype=jnp.float32)

    out = jax.block_until_ready(decoder_block(x, w_t, gamma, beta))
    ref = jax.block_until_ready(decoder_block_ref(x, w_t, gamma, beta))

    assert out.shape == (N, C_out, 2 * H, 2 * W), out.shape
    np.testing.assert_allclose(np.asarray(out), np.asarray(ref), rtol=1e-3, atol=1e-3)
    print("KERNEL_OK")
</pallas_src>

<mosaic_0001>
module attributes {stable_mosaic.version = 11 : i64} {
  func.func @_conv_stats_kernel(%arg0: i32, %arg1: memref<1x18x18x4xf32, #tpu.memory_space<vmem>>, %arg2: memref<16x4x8xf32, #tpu.memory_space<vmem>>, %arg3: memref<1x4x256x8xf32, #tpu.memory_space<vmem>>, %arg4: memref<1x2x8xf32, #tpu.memory_space<vmem>>) attributes {dimension_semantics = [#tpu.dimension_semantics<parallel>], iteration_bounds = array<i64: 2>, scalar_prefetch = 0 : i64, scratch_operands = 0 : i64, tpu.core_type = #tpu.core_type<tc>, window_params = [{transform_indices = @transform_0, window_bounds = array<i64: 1, 18, 18, 4>}, {pipeline_mode = #tpu.pipeline_mode<synchronous>, transform_indices = @transform_1, window_bounds = array<i64: 16, 4, 8>}, {transform_indices = @transform_2, window_bounds = array<i64: 1, 4, 256, 8>}, {transform_indices = @transform_3, window_bounds = array<i64: 1, 2, 8>}]} {
    %c0 = arith.constant 0 : index
    %c0_0 = arith.constant 0 : index
    %c0_1 = arith.constant 0 : index
    %c0_2 = arith.constant 0 : index
    %0 = vector.load %arg1[%c0, %c0_0, %c0_1, %c0_2] : memref<1x18x18x4xf32, #tpu.memory_space<vmem>>, vector<1x16x16x4xf32>
    %1 = vector.shape_cast %0 : vector<1x16x16x4xf32> to vector<16x16x4xf32>
    %2 = vector.shape_cast %1 : vector<16x16x4xf32> to vector<256x4xf32>
    %c0_3 = arith.constant 0 : index
    %c0_4 = arith.constant 0 : index
    %c1 = arith.constant 1 : index
    %c0_5 = arith.constant 0 : index
    %3 = vector.load %arg1[%c0_3, %c0_4, %c1, %c0_5] : memref<1x18x18x4xf32, #tpu.memory_space<vmem>>, vector<1x16x16x4xf32>
    %4 = vector.shape_cast %3 : vector<1x16x16x4xf32> to vector<16x16x4xf32>
    %5 = vector.shape_cast %4 : vector<16x16x4xf32> to vector<256x4xf32>
    %c0_6 = arith.constant 0 : index
    %c0_7 = arith.constant 0 : index
    %c2 = arith.constant 2 : index
    %c0_8 = arith.constant 0 : index
    %6 = vector.load %arg1[%c0_6, %c0_7, %c2, %c0_8] : memref<1x18x18x4xf32, #tpu.memory_space<vmem>>, vector<1x16x16x4xf32>
    %7 = vector.shape_cast %6 : vector<1x16x16x4xf32> to vector<16x16x4xf32>
    %8 = vector.shape_cast %7 : vector<16x16x4xf32> to vector<256x4xf32>
    %c0_9 = arith.constant 0 : index
    %c1_10 = arith.constant 1 : index
    %c0_11 = arith.constant 0 : index
    %c0_12 = arith.constant 0 : index
    %9 = vector.load %arg1[%c0_9, %c1_10, %c0_11, %c0_12] : memref<1x18x18x4xf32, #tpu.memory_space<vmem>>, vector<1x16x16x4xf32>
    %10 = vector.shape_cast %9 : vector<1x16x16x4xf32> to vector<16x16x4xf32>
    %11 = vector.shape_cast %10 : vector<16x16x4xf32> to vector<256x4xf32>
    %c0_13 = arith.constant 0 : index
    %c1_14 = arith.constant 1 : index
    %c1_15 = arith.constant 1 : index
    %c0_16 = arith.constant 0 : index
    %12 = vector.load %arg1[%c0_13, %c1_14, %c1_15, %c0_16] : memref<1x18x18x4xf32, #tpu.memory_space<vmem>>, vector<1x16x16x4xf32>
    %13 = vector.shape_cast %12 : vector<1x16x16x4xf32> to vector<16x16x4xf32>
    %14 = vector.shape_cast %13 : vector<16x16x4xf32> to vector<256x4xf32>
    %c0_17 = arith.constant 0 : index
    %c1_18 = arith.constant 1 : index
    %c2_19 = arith.constant 2 : index
    %c0_20 = arith.constant 0 : index
    %15 = vector.load %arg1[%c0_17, %c1_18, %c2_19, %c0_20] : memref<1x18x18x4xf32, #tpu.memory_space<vmem>>, vector<1x16x16x4xf32>
    %16 = vector.shape_cast %15 : vector<1x16x16x4xf32> to vector<16x16x4xf32>
    %17 = vector.shape_cast %16 : vector<16x16x4xf32> to vector<256x4xf32>
    %c0_21 = arith.constant 0 : index
    %c2_22 = arith.constant 2 : index
    %c0_23 = arith.constant 0 : index
    %c0_24 = arith.constant 0 : index
    %18 = vector.load %arg1[%c0_21, %c2_22, %c0_23, %c0_24] : memref<1x18x18x4xf32, #tpu.memory_space<vmem>>, vector<1x16x16x4xf32>
    %19 = vector.shape_cast %18 : vector<1x16x16x4xf32> to vector<16x16x4xf32>
    %20 = vector.shape_cast %19 : vector<16x16x4xf32> to vector<256x4xf32>
    %c0_25 = arith.constant 0 : index
    %c2_26 = arith.constant 2 : index
    %c1_27 = arith.constant 1 : index
    %c0_28 = arith.constant 0 : index
    %21 = vector.load %arg1[%c0_25, %c2_26, %c1_27, %c0_28] : memref<1x18x18x4xf32, #tpu.memory_space<vmem>>, vector<1x16x16x4xf32>
    %22 = vector.shape_cast %21 : vector<1x16x16x4xf32> to vector<16x16x4xf32>
    %23 = vector.shape_cast %22 : vector<16x16x4xf32> to vector<256x4xf32>
    %c0_29 = arith.constant 0 : index
    %c2_30 = arith.constant 2 : index
    %c2_31 = arith.constant 2 : index
    %c0_32 = arith.constant 0 : index
    %24 = vector.load %arg1[%c0_29, %c2_30, %c2_31, %c0_32] : memref<1x18x18x4xf32, #tpu.memory_space<vmem>>, vector<1x16x16x4xf32>
    %25 = vector.shape_cast %24 : vector<1x16x16x4xf32> to vector<16x16x4xf32>
    %26 = vector.shape_cast %25 : vector<16x16x4xf32> to vector<256x4xf32>
    %cst = arith.constant 0.000000e+00 : f32
    %27 = vector.broadcast %cst : f32 to vector<1x8xf32>
    %cst_33 = arith.constant 0.000000e+00 : f32
    %28 = vector.broadcast %cst_33 : f32 to vector<1x8xf32>
    %cst_34 = arith.constant 0.000000e+00 : f32
    %29 = vector.broadcast %cst_34 : f32 to vector<256x8xf32>
    %c0_35 = arith.constant 0 : index
    %c0_36 = arith.constant 0 : index
    %c0_37 = arith.constant 0 : index
    %30 = vector.load %arg2[%c0_35, %c0_36, %c0_37] : memref<16x4x8xf32, #tpu.memory_space<vmem>>, vector<1x4x8xf32>
    %31 = vector.shape_cast %30 : vector<1x4x8xf32> to vector<4x8xf32>
    %cst_38 = arith.constant dense<0.000000e+00> : vector<256x8xf32>
    %32 = tpu.matmul %2, %31, %cst_38 {dimension_numbers = #tpu.dot_dimension_numbers<[1], [0], [0], [1], [0, 0, 1, 1], [], []>} : vector<256x4xf32>, vector<4x8xf32>, vector<256x8xf32> -> vector<256x8xf32>
    %33 = arith.addf %29, %32 : vector<256x8xf32>
    %c1_39 = arith.constant 1 : index
    %c0_40 = arith.constant 0 : index
    %c0_41 = arith.constant 0 : index
    %34 = vector.load %arg2[%c1_39, %c0_40, %c0_41] : memref<16x4x8xf32, #tpu.memory_space<vmem>>, vector<1x4x8xf32>
    %35 = vector.shape_cast %34 : vector<1x4x8xf32> to vector<4x8xf32>
    %cst_42 = arith.constant dense<0.000000e+00> : vector<256x8xf32>
    %36 = tpu.matmul %5, %35, %cst_42 {dimension_numbers = #tpu.dot_dimension_numbers<[1], [0], [0], [1], [0, 0, 1, 1], [], []>} : vector<256x4xf32>, vector<4x8xf32>, vector<256x8xf32> -> vector<256x8xf32>
    %37 = arith.addf %33, %36 : vector<256x8xf32>
    %c2_43 = arith.constant 2 : index
    %c0_44 = arith.constant 0 : index
    %c0_45 = arith.constant 0 : index
    %38 = vector.load %arg2[%c2_43, %c0_44, %c0_45] : memref<16x4x8xf32, #tpu.memory_space<vmem>>, vector<1x4x8xf32>
    %39 = vector.shape_cast %38 : vector<1x4x8xf32> to vector<4x8xf32>
    %cst_46 = arith.constant dense<0.000000e+00> : vector<256x8xf32>
    %40 = tpu.matmul %11, %39, %cst_46 {dimension_numbers = #tpu.dot_dimension_numbers<[1], [0], [0], [1], [0, 0, 1, 1], [], []>} : vector<256x4xf32>, vector<4x8xf32>, vector<256x8xf32> -> vector<256x8xf32>
    %41 = arith.addf %37, %40 : vector<256x8xf32>
    %c3 = arith.constant 3 : index
    %c0_47 = arith.constant 0 : index
    %c0_48 = arith.constant 0 : index
    %42 = vector.load %arg2[%c3, %c0_47, %c0_48] : memref<16x4x8xf32, #tpu.memory_space<vmem>>, vector<1x4x8xf32>
    %43 = vector.shape_cast %42 : vector<1x4x8xf32> to vector<4x8xf32>
    %cst_49 = arith.constant dense<0.000000e+00> : vector<256x8xf32>
    %44 = tpu.matmul %14, %43, %cst_49 {dimension_numbers = #tpu.dot_dimension_numbers<[1], [0], [0], [1], [0, 0, 1, 1], [], []>} : vector<256x4xf32>, vector<4x8xf32>, vector<256x8xf32> -> vector<256x8xf32>
    %45 = arith.addf %41, %44 : vector<256x8xf32>
    %c0_50 = arith.constant 0 : index
    %c0_51 = arith.constant 0 : index
    %c0_52 = arith.constant 0 : index
    %c0_53 = arith.constant 0 : index
    %46 = vector.load %arg3[%c0_50, %c0_51, %c0_52, %c0_53] : memref<1x4x256x8xf32, #tpu.memory_space<vmem>>, vector<1x1x256x8xf32>
    %47 = vector.shape_cast %46 : vector<1x1x256x8xf32> to vector<256x8xf32>
    %48 = vector.shape_cast %45 : vector<256x8xf32> to vector<1x1x256x8xf32>
    tpu.vector_store %arg3[%c0_50, %c0_51, %c0_52, %c0_53], %48 {strides = array<i32>} : memref<1x4x256x8xf32, #tpu.memory_space<vmem>>, vector<1x1x256x8xf32>,
    %cst_54 = arith.constant dense<0.000000e+00> : vector<8xf32>
    %49 = vector.multi_reduction <add>, %45, %cst_54 [0] : vector<256x8xf32> to vector<8xf32>
    %50 = vector.shape_cast %49 : vector<8xf32> to vector<1x8xf32>
    %51 = arith.addf %27, %50 : vector<1x8xf32>
    %52 = arith.mulf %45, %45 : vector<256x8xf32>
    %cst_55 = arith.constant dense<0.000000e+00> : vector<8xf32>
    %53 = vector.multi_reduction <add>, %52, %cst_55 [0] : vector<256x8xf32> to vector<8xf32>
    %54 = vector.shape_cast %53 : vector<8xf32> to vector<1x8xf32>
    %55 = arith.addf %28, %54 : vector<1x8xf32>
    %cst_56 = arith.constant 0.000000e+00 : f32
    %56 = vector.broadcast %cst_56 : f32 to vector<256x8xf32>
    %c4 = arith.constant 4 : index
    %c0_57 = arith.constant 0 : index
    %c0_58 = arith.constant 0 : index
    %57 = vector.load %arg2[%c4, %c0_57, %c0_58] : memref<16x4x8xf32, #tpu.memory_space<vmem>>, vector<1x4x8xf32>
    %58 = vector.shape_cast %57 : vector<1x4x8xf32> to vector<4x8xf32>
    %cst_59 = arith.constant dense<0.000000e+00> : vector<256x8xf32>
    %59 = tpu.matmul %5, %58, %cst_59 {dimension_numbers = #tpu.dot_dimension_numbers<[1], [0], [0], [1], [0, 0, 1, 1], [], []>} : vector<256x4xf32>, vector<4x8xf32>, vector<256x8xf32> -> vector<256x8xf32>
    %60 = arith.addf %56, %59 : vector<256x8xf32>
    %c5 = arith.constant 5 : index
    %c0_60 = arith.constant 0 : index
    %c0_61 = arith.constant 0 : index
    %61 = vector.load %arg2[%c5, %c0_60, %c0_61] : memref<16x4x8xf32, #tpu.memory_space<vmem>>, vector<1x4x8xf32>
    %62 = vector.shape_cast %61 : vector<1x4x8xf32> to vector<4x8xf32>
    %cst_62 = arith.constant dense<0.000000e+00> : vector<256x8xf32>
    %63 = tpu.matmul %8, %62, %cst_62 {dimension_numbers = #tpu.dot_dimension_numbers<[1], [0], [0], [1], [0, 0, 1, 1], [], []>} : vector<256x4xf32>, vector<4x8xf32>, vector<256x8xf32> -> vector<256x8xf32>
    %64 = arith.addf %60, %63 : vector<256x8xf32>
    %c6 = arith.constant 6 : index
    %c0_63 = arith.constant 0 : index
    %c0_64 = arith.constant 0 : index
    %65 = vector.load %arg2[%c6, %c0_63, %c0_64] : memref<16x4x8xf32, #tpu.memory_space<vmem>>, vector<1x4x8xf32>
    %66 = vector.shape_cast %65 : vector<1x4x8xf32> to vector<4x8xf32>
    %cst_65 = arith.constant dense<0.000000e+00> : vector<256x8xf32>
    %67 = tpu.matmul %14, %66, %cst_65 {dimension_numbers = #tpu.dot_dimension_numbers<[1], [0], [0], [1], [0, 0, 1, 1], [], []>} : vector<256x4xf32>, vector<4x8xf32>, vector<256x8xf32> -> vector<256x8xf32>
    %68 = arith.addf %64, %67 : vector<256x8xf32>
    %c7 = arith.constant 7 : index
    %c0_66 = arith.constant 0 : index
    %c0_67 = arith.constant 0 : index
    %69 = vector.load %arg2[%c7, %c0_66, %c0_67] : memref<16x4x8xf32, #tpu.memory_space<vmem>>, vector<1x4x8xf32>
    %70 = vector.shape_cast %69 : vector<1x4x8xf32> to vector<4x8xf32>
    %cst_68 = arith.constant dense<0.000000e+00> : vector<256x8xf32>
    %71 = tpu.matmul %17, %70, %cst_68 {dimension_numbers = #tpu.dot_dimension_numbers<[1], [0], [0], [1], [0, 0, 1, 1], [], []>} : vector<256x4xf32>, vector<4x8xf32>, vector<256x8xf32> -> vector<256x8xf32>
    %72 = arith.addf %68, %71 : vector<256x8xf32>
    %c0_69 = arith.constant 0 : index
    %c1_70 = arith.constant 1 : index
    %c0_71 = arith.constant 0 : index
    %c0_72 = arith.constant 0 : index
    %73 = vector.load %arg3[%c0_69, %c1_70, %c0_71, %c0_72] : memref<1x4x256x8xf32, #tpu.memory_space<vmem>>, vector<1x1x256x8xf32>
    %74 = vector.shape_cast %73 : vector<1x1x256x8xf32> to vector<256x8xf32>
    %75 = vector.shape_cast %72 : vector<256x8xf32> to vector<1x1x256x8xf32>
    tpu.vector_store %arg3[%c0_69, %c1_70, %c0_71, %c0_72], %75 {strides = array<i32>} : memref<1x4x256x8xf32, #tpu.memory_space<vmem>>, vector<1x1x256x8xf32>,
    %cst_73 = arith.constant dense<0.000000e+00> : vector<8xf32>
    %76 = vector.multi_reduction <add>, %72, %cst_73 [0] : vector<256x8xf32> to vector<8xf32>
    %77 = vector.shape_cast %76 : vector<8xf32> to vector<1x8xf32>
    %78 = arith.addf %51, %77 : vector<1x8xf32>
    %79 = arith.mulf %72, %72 : vector<256x8xf32>
    %cst_74 = arith.constant dense<0.000000e+00> : vector<8xf32>
    %80 = vector.multi_reduction <add>, %79, %cst_74 [0] : vector<256x8xf32> to vector<8xf32>
    %81 = vector.shape_cast %80 : vector<8xf32> to vector<1x8xf32>
    %82 = arith.addf %55, %81 : vector<1x8xf32>
    %cst_75 = arith.constant 0.000000e+00 : f32
    %83 = vector.broadcast %cst_75 : f32 to vector<256x8xf32>
    %c8 = arith.constant 8 : index
    %c0_76 = arith.constant 0 : index
    %c0_77 = arith.constant 0 : index
    %84 = vector.load %arg2[%c8, %c0_76, %c0_77] : memref<16x4x8xf32, #tpu.memory_space<vmem>>, vector<1x4x8xf32>
    %85 = vector.shape_cast %84 : vector<1x4x8xf32> to vector<4x8xf32>
    %cst_78 = arith.constant dense<0.000000e+00> : vector<256x8xf32>
    %86 = tpu.matmul %11, %85, %cst_78 {dimension_numbers = #tpu.dot_dimension_numbers<[1], [0], [0], [1], [0, 0, 1, 1], [], []>} : vector<256x4xf32>, vector<4x8xf32>, vector<256x8xf32> -> vector<256x8xf32>
    %87 = arith.addf %83, %86 : vector<256x8xf32>
    %c9 = arith.constant 9 : index
    %c0_79 = arith.constant 0 : index
    %c0_80 = arith.constant 0 : index
    %88 = vector.load %arg2[%c9, %c0_79, %c0_80] : memref<16x4x8xf32, #tpu.memory_space<vmem>>, vector<1x4x8xf32>
    %89 = vector.shape_cast %88 : vector<1x4x8xf32> to vector<4x8xf32>
    %cst_81 = arith.constant dense<0.000000e+00> : vector<256x8xf32>
    %90 = tpu.matmul %14, %89, %cst_81 {dimension_numbers = #tpu.dot_dimension_numbers<[1], [0], [0], [1], [0, 0, 1, 1], [], []>} : vector<256x4xf32>, vector<4x8xf32>, vector<256x8xf32> -> vector<256x8xf32>
    %91 = arith.addf %87, %90 : vector<256x8xf32>
    %c10 = arith.constant 10 : index
    %c0_82 = arith.constant 0 : index
    %c0_83 = arith.constant 0 : index
    %92 = vector.load %arg2[%c10, %c0_82, %c0_83] : memref<16x4x8xf32, #tpu.memory_space<vmem>>, vector<1x4x8xf32>
    %93 = vector.shape_cast %92 : vector<1x4x8xf32> to vector<4x8xf32>
    %cst_84 = arith.constant dense<0.000000e+00> : vector<256x8xf32>
    %94 = tpu.matmul %20, %93, %cst_84 {dimension_numbers = #tpu.dot_dimension_numbers<[1], [0], [0], [1], [0, 0, 1, 1], [], []>} : vector<256x4xf32>, vector<4x8xf32>, vector<256x8xf32> -> vector<256x8xf32>
    %95 = arith.addf %91, %94 : vector<256x8xf32>
    %c11 = arith.constant 11 : index
    %c0_85 = arith.constant 0 : index
    %c0_86 = arith.constant 0 : index
    %96 = vector.load %arg2[%c11, %c0_85, %c0_86] : memref<16x4x8xf32, #tpu.memory_space<vmem>>, vector<1x4x8xf32>
    %97 = vector.shape_cast %96 : vector<1x4x8xf32> to vector<4x8xf32>
    %cst_87 = arith.constant dense<0.000000e+00> : vector<256x8xf32>
    %98 = tpu.matmul %23, %97, %cst_87 {dimension_numbers = #tpu.dot_dimension_numbers<[1], [0], [0], [1], [0, 0, 1, 1], [], []>} : vector<256x4xf32>, vector<4x8xf32>, vector<256x8xf32> -> vector<256x8xf32>
    %99 = arith.addf %95, %98 : vector<256x8xf32>
    %c0_88 = arith.constant 0 : index
    %c2_89 = arith.constant 2 : index
    %c0_90 = arith.constant 0 : index
    %c0_91 = arith.constant 0 : index
    %100 = vector.load %arg3[%c0_88, %c2_89, %c0_90, %c0_91] : memref<1x4x256x8xf32, #tpu.memory_space<vmem>>, vector<1x1x256x8xf32>
    %101 = vector.shape_cast %100 : vector<1x1x256x8xf32> to vector<256x8xf32>
    %102 = vector.shape_cast %99 : vector<256x8xf32> to vector<1x1x256x8xf32>
    tpu.vector_store %arg3[%c0_88, %c2_89, %c0_90, %c0_91], %102 {strides = array<i32>} : memref<1x4x256x8xf32, #tpu.memory_space<vmem>>, vector<1x1x256x8xf32>,
    %cst_92 = arith.constant dense<0.000000e+00> : vector<8xf32>
    %103 = vector.multi_reduction <add>, %99, %cst_92 [0] : vector<256x8xf32> to vector<8xf32>
    %104 = vector.shape_cast %103 : vector<8xf32> to vector<1x8xf32>
    %105 = arith.addf %78, %104 : vector<1x8xf32>
    %106 = arith.mulf %99, %99 : vector<256x8xf32>
    %cst_93 = arith.constant dense<0.000000e+00> : vector<8xf32>
    %107 = vector.multi_reduction <add>, %106, %cst_93 [0] : vector<256x8xf32> to vector<8xf32>
    %108 = vector.shape_cast %107 : vector<8xf32> to vector<1x8xf32>
    %109 = arith.addf %82, %108 : vector<1x8xf32>
    %cst_94 = arith.constant 0.000000e+00 : f32
    %110 = vector.broadcast %cst_94 : f32 to vector<256x8xf32>
    %c12 = arith.constant 12 : index
    %c0_95 = arith.constant 0 : index
    %c0_96 = arith.constant 0 : index
    %111 = vector.load %arg2[%c12, %c0_95, %c0_96] : memref<16x4x8xf32, #tpu.memory_space<vmem>>, vector<1x4x8xf32>
    %112 = vector.shape_cast %111 : vector<1x4x8xf32> to vector<4x8xf32>
    %cst_97 = arith.constant dense<0.000000e+00> : vector<256x8xf32>
    %113 = tpu.matmul %14, %112, %cst_97 {dimension_numbers = #tpu.dot_dimension_numbers<[1], [0], [0], [1], [0, 0, 1, 1], [], []>} : vector<256x4xf32>, vector<4x8xf32>, vector<256x8xf32> -> vector<256x8xf32>
    %114 = arith.addf %110, %113 : vector<256x8xf32>
    %c13 = arith.constant 13 : index
    %c0_98 = arith.constant 0 : index
    %c0_99 = arith.constant 0 : index
    %115 = vector.load %arg2[%c13, %c0_98, %c0_99] : memref<16x4x8xf32, #tpu.memory_space<vmem>>, vector<1x4x8xf32>
    %116 = vector.shape_cast %115 : vector<1x4x8xf32> to vector<4x8xf32>
    %cst_100 = arith.constant dense<0.000000e+00> : vector<256x8xf32>
    %117 = tpu.matmul %17, %116, %cst_100 {dimension_numbers = #tpu.dot_dimension_numbers<[1], [0], [0], [1], [0, 0, 1, 1], [], []>} : vector<256x4xf32>, vector<4x8xf32>, vector<256x8xf32> -> vector<256x8xf32>
    %118 = arith.addf %114, %117 : vector<256x8xf32>
    %c14 = arith.constant 14 : index
    %c0_101 = arith.constant 0 : index
    %c0_102 = arith.constant 0 : index
    %119 = vector.load %arg2[%c14, %c0_101, %c0_102] : memref<16x4x8xf32, #tpu.memory_space<vmem>>, vector<1x4x8xf32>
    %120 = vector.shape_cast %119 : vector<1x4x8xf32> to vector<4x8xf32>
    %cst_103 = arith.constant dense<0.000000e+00> : vector<256x8xf32>
    %121 = tpu.matmul %23, %120, %cst_103 {dimension_numbers = #tpu.dot_dimension_numbers<[1], [0], [0], [1], [0, 0, 1, 1], [], []>} : vector<256x4xf32>, vector<4x8xf32>, vector<256x8xf32> -> vector<256x8xf32>
    %122 = arith.addf %118, %121 : vector<256x8xf32>
    %c15 = arith.constant 15 : index
    %c0_104 = arith.constant 0 : index
    %c0_105 = arith.constant 0 : index
    %123 = vector.load %arg2[%c15, %c0_104, %c0_105] : memref<16x4x8xf32, #tpu.memory_space<vmem>>, vector<1x4x8xf32>
    %124 = vector.shape_cast %123 : vector<1x4x8xf32> to vector<4x8xf32>
    %cst_106 = arith.constant dense<0.000000e+00> : vector<256x8xf32>
    %125 = tpu.matmul %26, %124, %cst_106 {dimension_numbers = #tpu.dot_dimension_numbers<[1], [0], [0], [1], [0, 0, 1, 1], [], []>} : vector<256x4xf32>, vector<4x8xf32>, vector<256x8xf32> -> vector<256x8xf32>
    %126 = arith.addf %122, %125 : vector<256x8xf32>
    %c0_107 = arith.constant 0 : index
    %c3_108 = arith.constant 3 : index
    %c0_109 = arith.constant 0 : index
    %c0_110 = arith.constant 0 : index
    %127 = vector.load %arg3[%c0_107, %c3_108, %c0_109, %c0_110] : memref<1x4x256x8xf32, #tpu.memory_space<vmem>>, vector<1x1x256x8xf32>
    %128 = vector.shape_cast %127 : vector<1x1x256x8xf32> to vector<256x8xf32>
    %129 = vector.shape_cast %126 : vector<256x8xf32> to vector<1x1x256x8xf32>
    tpu.vector_store %arg3[%c0_107, %c3_108, %c0_109, %c0_110], %129 {strides = array<i32>} : memref<1x4x256x8xf32, #tpu.memory_space<vmem>>, vector<1x1x256x8xf32>,
    %cst_111 = arith.constant dense<0.000000e+00> : vector<8xf32>
    %130 = vector.multi_reduction <add>, %126, %cst_111 [0] : vector<256x8xf32> to vector<8xf32>
    %131 = vector.shape_cast %130 : vector<8xf32> to vector<1x8xf32>
    %132 = arith.addf %105, %131 : vector<1x8xf32>
    %133 = arith.mulf %126, %126 : vector<256x8xf32>
    %cst_112 = arith.constant dense<0.000000e+00> : vector<8xf32>
    %134 = vector.multi_reduction <add>, %133, %cst_112 [0] : vector<256x8xf32> to vector<8xf32>
    %135 = vector.shape_cast %134 : vector<8xf32> to vector<1x8xf32>
    %136 = arith.addf %109, %135 : vector<1x8xf32>
    %c0_113 = arith.constant 0 : index
    %c0_114 = arith.constant 0 : index
    %c0_115 = arith.constant 0 : index
    %137 = vector.load %arg4[%c0_113, %c0_114, %c0_115] : memref<1x2x8xf32, #tpu.memory_space<vmem>>, vector<1x1x8xf32>
    %138 = vector.shape_cast %137 : vector<1x1x8xf32> to vector<1x8xf32>
    %139 = vector.shape_cast %132 : vector<1x8xf32> to vector<1x1x8xf32>
    tpu.vector_store %arg4[%c0_113, %c0_114, %c0_115], %139 {strides = array<i32>} : memref<1x2x8xf32, #tpu.memory_space<vmem>>, vector<1x1x8xf32>,
    %c0_116 = arith.constant 0 : index
    %c1_117 = arith.constant 1 : index
    %c0_118 = arith.constant 0 : index
    %140 = vector.load %arg4[%c0_116, %c1_117, %c0_118] : memref<1x2x8xf32, #tpu.memory_space<vmem>>, vector<1x1x8xf32>
    %141 = vector.shape_cast %140 : vector<1x1x8xf32> to vector<1x8xf32>
    %142 = vector.shape_cast %136 : vector<1x8xf32> to vector<1x1x8xf32>
    tpu.vector_store %arg4[%c0_116, %c1_117, %c0_118], %142 {strides = array<i32>} : memref<1x2x8xf32, #tpu.memory_space<vmem>>, vector<1x1x8xf32>,
    return
  }
  func.func @transform_0(%arg0: i32) -> (i32, i32, i32, i32) {
    %c0_i32 = arith.constant 0 : i32
    %c0_i32_0 = arith.constant 0 : i32
    %c0_i32_1 = arith.constant 0 : i32
    %c0_i32_2 = arith.constant 0 : i32
    return %arg0, %c0_i32, %c0_i32_0, %c0_i32_1 : i32, i32, i32, i32
  }
  func.func @transform_1(%arg0: i32) -> (i32, i32, i32) {
    %c0_i32 = arith.constant 0 : i32
    %c0_i32_0 = arith.constant 0 : i32
    %c0_i32_1 = arith.constant 0 : i32
    %c0_i32_2 = arith.constant 0 : i32
    return %c0_i32, %c0_i32_0, %c0_i32_1 : i32, i32, i32
  }
  func.func @transform_2(%arg0: i32) -> (i32, i32, i32, i32) {
    %c0_i32 = arith.constant 0 : i32
    %c0_i32_0 = arith.constant 0 : i32
    %c0_i32_1 = arith.constant 0 : i32
    %c0_i32_2 = arith.constant 0 : i32
    return %arg0, %c0_i32, %c0_i32_0, %c0_i32_1 : i32, i32, i32, i32
  }
  func.func @transform_3(%arg0: i32) -> (i32, i32, i32) {
    %c0_i32 = arith.constant 0 : i32
    %c0_i32_0 = arith.constant 0 : i32
    %c0_i32_1 = arith.constant 0 : i32
    return %arg0, %c0_i32, %c0_i32_0 : i32, i32, i32
  }
}

</mosaic_0001>

<llo_original>
// kernel: tpu_custom_call.1
$region0: #{tpu_custom_call.1}
  #allocation0 [shape = 'u32[]', space=smem, size = 0x4, offset = 0x4, fixed_abs, tag = 'smem constant byte address 0x4 - core index']
  #allocation1 [shape = 'u32[144,128]{1,0:T(1,128)}', space=vmem, size = 0x12000, scoped, tag = 'internal scratch']
  %s0 = inlined_call_operand.vmem [shape: f32[2,18,18,4], index: 0, kind: input, shape index: {}]
  %s1 = inlined_call_operand.vmem [shape: f32[16,4,8], index: 1, kind: input, shape index: {}]
  %s2 = inlined_call_operand.vmem [shape: f32[2,4,256,8], index: 2, kind: output, shape index: {0}]
  %s3 = inlined_call_operand.hbm [shape: f32[2,2,8], index: 3, kind: output, shape index: {1}]
  %4 = xla_tuple %s2, %s3
  %s5 = sld [smem:[#allocation0]]
  $region49: #{tpu_custom_call.1} parent=0
    _
  %s7 = ssub.s32 1, %s5
  %s8 = scalar_select 0, %s7, %s5
  $region1: #{tpu_custom_call.1} parent=0
    #allocation2 [shape = 'u8[2048]{0}', space=vmem, size = 0x800, scoped, tag = 'output window, operand 1']
    #allocation3 [shape = 's32[2]{0}', space=sflag, size = 0x8, scoped, tag = 'scoped memory for tpu_custom_call.1']
    %9 = vsyncpa [#allocation3], 0
    %s10 = scalar_lea.sflag [#allocation3], 1
    %11 = vsyncpa %s10, 0
    loop: start=0, step=1, limit=4
    $region2: #{tpu_custom_call.1} parent=1 // loop_pre_header
      _
    $region3: #{tpu_custom_call.1} parent=1 // loop_header
      %s13 = sphi 0, %s17
      %p14 = scmp.ge.s32.totalorder %s13, 4
      %s23 = sphi 0, %s25
      %s26 = sphi 0, %s23
      %s27 = sphi 0, %s26
      %s43 = sphi 0, %s27
      %s47 = sphi 0, %s47
      %s49 = sphi 0, %s47
      %s50 = sphi 0, %s49
      %s64 = sphi 0, %s50
      %s70 = sphi 0, %s72
      %s73 = sphi 0, %s70
      %s74 = sphi 0, %s73
      %s90 = sphi 0, %s74
      %s96 = sphi 0, %s98
      %s99 = sphi 0, %s96
      %s100 = sphi 0, %s99
      %s116 = sphi 0, %s100
    $region4: #{tpu_custom_call.1} parent=1 // loop_header_branch
      %16 = sbr.rel (%p14) target = $region8
    $region5: #{tpu_custom_call.1} parent=1 // loop_body
      %s18 = ssub.s32 %s13, 1
      %s19 = ssub.s32 %s13, 2
      %s20 = sadd.s32 %s13, 1
      %s21 = ssub.s32 %s13, %s20
      %p22 = scmp.eq.s32.totalorder %s21, 0
      %s24 = sadd.s32 %s23, 1
      %s25 = scalar_select %p22, %s23, %s24
      %p28 = pneg %p22
      %p29 = scmp.eq.s32.totalorder %s13, 1
      %p30 = por %p28, %p29
      %p31 = scmp.ne.s32.totalorder %s23, %s26
      %p32 = scmp.eq.s32.totalorder %s13, 0
      %p33 = por %p31, %p32
      %p34 = scmp.ne.s32.totalorder %s23, %s26
      %p35 = scmp.eq.s32.totalorder %s18, 1
      %p36 = por %p34, %p35
      %p37 = scmp.ne.s32.totalorder %s26, %s27
      %p38 = scmp.eq.s32.totalorder %s18, 0
      %p39 = por %p37, %p38
      %p40 = scmp.ne.s32.totalorder %s26, %s27
      %p41 = scmp.eq.s32.totalorder %s19, 1
      %p42 = por %p40, %p41
      %p44 = scmp.ne.s32.totalorder %s27, %s43
      %p45 = scmp.eq.s32.totalorder %s19, 0
      %p46 = por %p44, %p45
      %s48 = sadd.s32 %s47, 1
      %p51 = scmp.eq.s32.totalorder %s13, 1
      %p52 = scmp.ne.s32.totalorder %s47, %s49
      %p53 = scmp.eq.s32.totalorder %s13, 0
      %p54 = por %p52, %p53
      %p55 = scmp.ne.s32.totalorder %s47, %s49
      %p56 = scmp.eq.s32.totalorder %s18, 1
      %p57 = por %p55, %p56
      %p58 = scmp.ne.s32.totalorder %s49, %s50
      %p59 = scmp.eq.s32.totalorder %s18, 0
      %p60 = por %p58, %p59
      %p61 = scmp.ne.s32.totalorder %s49, %s50
      %p62 = scmp.eq.s32.totalorder %s19, 1
      %p63 = por %p61, %p62
      %p65 = scmp.ne.s32.totalorder %s50, %s64
      %p66 = scmp.eq.s32.totalorder %s19, 0
      %p67 = por %p65, %p66
      %s68 = ssub.s32 %s13, %s20
      %p69 = scmp.eq.s32.totalorder %s68, 0
      %s71 = sadd.s32 %s70, 1
      %s72 = scalar_select %p69, %s70, %s71
      %p75 = pneg %p69
      %p76 = scmp.eq.s32.totalorder %s13, 1
      %p77 = por %p75, %p76
      %p78 = scmp.ne.s32.totalorder %s70, %s73
      %p79 = scmp.eq.s32.totalorder %s13, 0
      %p80 = por %p78, %p79
      %p81 = scmp.ne.s32.totalorder %s70, %s73
      %p82 = scmp.eq.s32.totalorder %s18, 1
      %p83 = por %p81, %p82
      %p84 = scmp.ne.s32.totalorder %s73, %s74
      %p85 = scmp.eq.s32.totalorder %s18, 0
      %p86 = por %p84, %p85
      %p87 = scmp.ne.s32.totalorder %s73, %s74
      %p88 = scmp.eq.s32.totalorder %s19, 1
      %p89 = por %p87, %p88
      %p91 = scmp.ne.s32.totalorder %s74, %s90
      %p92 = scmp.eq.s32.totalorder %s19, 0
      %p93 = por %p91, %p92
      %s94 = ssub.s32 %s13, %s20
      %p95 = scmp.eq.s32.totalorder %s94, 0
      %s97 = sadd.s32 %s96, 1
      %s98 = scalar_select %p95, %s96, %s97
      %p101 = pneg %p95
      %p102 = scmp.eq.s32.totalorder %s13, 1
      %p103 = por %p101, %p102
      %p104 = scmp.ne.s32.totalorder %s96, %s99
      %p105 = scmp.eq.s32.totalorder %s13, 0
      %p106 = por %p104, %p105
      %p107 = scmp.ne.s32.totalorder %s96, %s99
      %p108 = scmp.eq.s32.totalorder %s18, 1
      %p109 = por %p107, %p108
      %p110 = scmp.ne.s32.totalorder %s99, %s100
      %p111 = scmp.eq.s32.totalorder %s18, 0
      %p112 = por %p110, %p111
      %p113 = scmp.ne.s32.totalorder %s99, %s100
      %p114 = scmp.eq.s32.totalorder %s19, 1
      %p115 = por %p113, %p114
      %p117 = scmp.ne.s32.totalorder %s100, %s116
      %p118 = scmp.eq.s32.totalorder %s19, 0
      %p119 = por %p117, %p118
      %p120 = scmp.le.s32.totalorder 1, %s13
      %p121 = scmp.lt.s32.totalorder %s13, 3
      %p122 = pnand %p120, %p121
      %p123 = pneg %p122
      // Predicated region
      $region9: #{tpu_custom_call.1} parent=5 // pred_check
        _
      $region10: #{tpu_custom_call.1} parent=5 // pred_check_branch
        %125 = sbr.rel (%p122) target = $region12
      $region11: #{tpu_custom_call.1} parent=5 // pred_region
        %s126 = ssub.s32 %s13, 1
        // Predicated region
        $region13: #{tpu_custom_call.1} parent=11 // pred_check
          %p127 = pneg %p60
        $region14: #{tpu_custom_call.1} parent=11 // pred_check_branch
          %129 = sbr.rel (%p127) target = $region16
        $region15: #{tpu_custom_call.1} parent=11 // pred_region
          _
        $region16: #{tpu_custom_call.1} parent=11 // pred_fallthru
          _
      $region12: #{tpu_custom_call.1} parent=5 // pred_fallthru
        _
      %p130 = scmp.lt.s32.totalorder %s13, 2
      // Predicated region
      $region17: #{tpu_custom_call.1} parent=5 // pred_check
        %p131 = pneg %p130
      $region18: #{tpu_custom_call.1} parent=5 // pred_check_branch
        %133 = sbr.rel (%p131) target = $region20
      $region19: #{tpu_custom_call.1} parent=5 // pred_region
        // Predicated region
        $region21: #{tpu_custom_call.1} parent=19 // pred_check
          %p134 = pneg %p33
        $region22: #{tpu_custom_call.1} parent=19 // pred_check_branch
          %136 = sbr.rel (%p134) target = $region24
        $region23: #{tpu_custom_call.1} parent=19 // pred_region
          %p137 = scmp.lt.s32.totalorder %s13, 1
          %s138 = scalar_select %p137, %s13, 1
          %s139 = smul.addr %s138, 54
          %s140 = smul.addr %s139, 8
          %s141 = scalar_lea.vmem %s0, %s140
        $region24: #{tpu_custom_call.1} parent=19 // pred_fallthru
          _
      $region20: #{tpu_custom_call.1} parent=5 // pred_fallthru
        _
      %p142 = scmp.le.s32.totalorder 1, %s13
      %p143 = scmp.lt.s32.totalorder %s13, 3
      %p144 = pnand %p142, %p143
      %p145 = pneg %p144
      // Predicated region
      $region25: #{tpu_custom_call.1} parent=5 // pred_check
        _
      $region26: #{tpu_custom_call.1} parent=5 // pred_check_branch
        %147 = sbr.rel (%p144) target = $region28
      $region27: #{tpu_custom_call.1} parent=5 // pred_region
        %s148 = ssub.s32 %s13, 1
        %p149 = scmp.lt.s32.totalorder %s18, 1
        %s150 = scalar_select %p149, %s18, 1
        %s151 = smul.addr %s150, 54
        %s152 = smul.addr %s151, 8
        %s153 = scalar_lea.vmem %s0, %s152
        %p154 = pneg %p39
        %p155 = pneg %p36
        %p156 = pneg %p60
        %p157 = pneg %p57
        %p158 = pneg %p86
        %p159 = pneg %p83
        %p160 = scmp.lt.s32.totalorder %s18, 1
        %s161 = scalar_select %p160, %s18, 1
        %s162 = smul.addr %s161, 128
        %s163 = smul.addr %s162, 8
        %s164 = scalar_lea.vmem %s2, %s163
        %p165 = pneg %p112
        %p166 = pneg %p109
        %s167 = sand.u32 %s99, 1
        %s168 = scalar_lea.sflag [#allocation3], %s167
        %s169 = sand.u32 %s99, 1
        %s170 = smul.addr %s169, 2
        %s171 = scalar_lea.vmem [#allocation2], %s170
        %p172 = scmp.lt.s32.totalorder %s18, 1
        %s173 = scalar_select %p172, %s18, 1
        %s174 = smul.addr %s173, 54
        %s175 = smul.addr %s174, 8
        %s176 = scalar_lea.vmem %s0, %s175
        %p177 = scmp.lt.s32.totalorder %s18, 1
        %s178 = scalar_select %p177, %s18, 1
        %s179 = smul.addr %s178, 128
        %s180 = smul.addr %s179, 8
        %s181 = scalar_lea.vmem %s2, %s180
        %v182 = vld [vmem:[%s176] sm:$0xff]
        %v183 = vld [vmem:[%s176 + $0x8] sm:$0xff]
        %v184 = vld [vmem:[%s176 + $0x18] sm:$0xff]
        %v185 = vld [vmem:[%s176 + $0x20] sm:$0xff]
        %v186 = vld [vmem:[%s176 + $0x30] sm:$0xff]
        %v187 = vld [vmem:[%s176 + $0x38] sm:$0xff]
        %v188 = vld [vmem:[%s176 + $0x48] sm:$0xff]
        %v189 = vld [vmem:[%s176 + $0x50] sm:$0xff]
        %v190 = vld [vmem:[%s176 + $0x60] sm:$0xff]
        %v191 = vld [vmem:[%s176 + $0x68] sm:$0xff]
        %v192 = vld [vmem:[%s176 + $0x78] sm:$0xff]
        %v193 = vld [vmem:[%s176 + $0x80] sm:$0xff]
        %v194 = vld [vmem:[%s176 + $0x90] sm:$0xff]
        %v195 = vld [vmem:[%s176 + $0x98] sm:$0xff]
        %v196 = vld [vmem:[%s176 + $0xa8] sm:$0xff]
        %v197 = vld [vmem:[%s176 + $0xb0] sm:$0xff]
        %v198 = vld [vmem:[%s176 + $0xc0] sm:$0xff]
        %v199 = vld [vmem:[%s176 + $0xc8] sm:$0xff]
        %v200 = vld [vmem:[%s176 + $0xd8] sm:$0xff]
        %v201 = vld [vmem:[%s176 + $0xe0] sm:$0xff]
        %v202 = vld [vmem:[%s176 + $0xf0] sm:$0xff]
        %v203 = vld [vmem:[%s176 + $0xf8] sm:$0xff]
        %v204 = vld [vmem:[%s176 + $0x108] sm:$0xff]
        %v205 = vld [vmem:[%s176 + $0x110] sm:$0xff]
        %v206 = vld [vmem:[%s176 + $0x120] sm:$0xff]
        %v207 = vld [vmem:[%s176 + $0x128] sm:$0xff]
        %v208 = vld [vmem:[%s176 + $0x138] sm:$0xff]
        %v209 = vld [vmem:[%s176 + $0x140] sm:$0xff]
        %v210 = vld [vmem:[%s176 + $0x150] sm:$0xff]
        %v211 = vld [vmem:[%s176 + $0x158] sm:$0xff]
        %v212 = vld [vmem:[%s176 + $0x168] sm:$0xff]
        %v213 = vld [vmem:[%s176 + $0x170] sm:$0xff]
        %v214 = vld [vmem:[%s176 + $0x1] sm:$0xff]
        %v215 = vld [vmem:[%s176 + $0x9] sm:$0xff]
        %v216 = vld [vmem:[%s176 + $0x19] sm:$0xff]
        %v217 = vld [vmem:[%s176 + $0x21] sm:$0xff]
        %v218 = vld [vmem:[%s176 + $0x31] sm:$0xff]
        %v219 = vld [vmem:[%s176 + $0x39] sm:$0xff]
        %v220 = vld [vmem:[%s176 + $0x49] sm:$0xff]
        %v221 = vld [vmem:[%s176 + $0x51] sm:$0xff]
        %v222 = vld [vmem:[%s176 + $0x61] sm:$0xff]
        %v223 = vld [vmem:[%s176 + $0x69] sm:$0xff]
        %v224 = vld [vmem:[%s176 + $0x79] sm:$0xff]
        %v225 = vld [vmem:[%s176 + $0x81] sm:$0xff]
        %v226 = vld [vmem:[%s176 + $0x91] sm:$0xff]
        %v227 = vld [vmem:[%s176 + $0x99] sm:$0xff]
        %v228 = vld [vmem:[%s176 + $0xa9] sm:$0xff]
        %v229 = vld [vmem:[%s176 + $0xb1] sm:$0xff]
        %v230 = vld [vmem:[%s176 + $0xc1] sm:$0xff]
        %v231 = vld [vmem:[%s176 + $0xc9] sm:$0xff]
        %v232 = vld [vmem:[%s176 + $0xd9] sm:$0xff]
        %v233 = vld [vmem:[%s176 + $0xe1] sm:$0xff]
        %v234 = vld [vmem:[%s176 + $0xf1] sm:$0xff]
        %v235 = vld [vmem:[%s176 + $0xf9] sm:$0xff]
        %v236 = vld [vmem:[%s176 + $0x109] sm:$0xff]
        %v237 = vld [vmem:[%s176 + $0x111] sm:$0xff]
        %v238 = vld [vmem:[%s176 + $0x121] sm:$0xff]
        %v239 = vld [vmem:[%s176 + $0x129] sm:$0xff]
        %v240 = vld [vmem:[%s176 + $0x139] sm:$0xff]
        %v241 = vld [vmem:[%s176 + $0x141] sm:$0xff]
        %v242 = vld [vmem:[%s176 + $0x151] sm:$0xff]
        %v243 = vld [vmem:[%s176 + $0x159] sm:$0xff]
        %v244 = vld [vmem:[%s176 + $0x169] sm:$0xff]
        %v245 = vld [vmem:[%s176 + $0x171] sm:$0xff]
        %v246 = vld [vmem:[%s176 + $0x2] sm:$0xff]
        %v247 = vld [vmem:[%s176 + $0xa] sm:$0xff]
        %v248 = vld [vmem:[%s176 + $0x1a] sm:$0xff]
        %v249 = vld [vmem:[%s176 + $0x22] sm:$0xff]
        %v250 = vld [vmem:[%s176 + $0x32] sm:$0xff]
        %v251 = vld [vmem:[%s176 + $0x3a] sm:$0xff]
        %v252 = vld [vmem:[%s176 + $0x4a] sm:$0xff]
        %v253 = vld [vmem:[%s176 + $0x52] sm:$0xff]
        %v254 = vld [vmem:[%s176 + $0x62] sm:$0xff]
        %v255 = vld [vmem:[%s176 + $0x6a] sm:$0xff]
        %v256 = vld [vmem:[%s176 + $0x7a] sm:$0xff]
        %v257 = vld [vmem:[%s176 + $0x82] sm:$0xff]
        %v258 = vld [vmem:[%s176 + $0x92] sm:$0xff]
        %v259 = vld [vmem:[%s176 + $0x9a] sm:$0xff]
        %v260 = vld [vmem:[%s176 + $0xaa] sm:$0xff]
        %v261 = vld [vmem:[%s176 + $0xb2] sm:$0xff]
        %v262 = vld [vmem:[%s176 + $0xc2] sm:$0xff]
        %v263 = vld [vmem:[%s176 + $0xca] sm:$0xff]
        %v264 = vld [vmem:[%s176 + $0xda] sm:$0xff]
        %v265 = vld [vmem:[%s176 + $0xe2] sm:$0xff]
        %v266 = vld [vmem:[%s176 + $0xf2] sm:$0xff]
        %v267 = vld [vmem:[%s176 + $0xfa] sm:$0xff]
        %v268 = vld [vmem:[%s176 + $0x10a] sm:$0xff]
        %v269 = vld [vmem:[%s176 + $0x112] sm:$0xff]
        %v270 = vld [vmem:[%s176 + $0x122] sm:$0xff]
        %v271 = vld [vmem:[%s176 + $0x12a] sm:$0xff]
        %v272 = vld [vmem:[%s176 + $0x13a] sm:$0xff]
        %v273 = vld [vmem:[%s176 + $0x142] sm:$0xff]
        %v274 = vld [vmem:[%s176 + $0x152] sm:$0xff]
        %v275 = vld [vmem:[%s176 + $0x15a] sm:$0xff]
        %v276 = vld [vmem:[%s176 + $0x16a] sm:$0xff]
        %v277 = vld [vmem:[%s176 + $0x172] sm:$0xff]
        %s278 = scalar_lea.vmem %s176, 24
        %v279 = vld [vmem:[%s278] sm:$0xff]
        %v280 = vld [vmem:[%s278 + $0x8] sm:$0xff]
        %v281 = vld [vmem:[%s278 + $0x18] sm:$0xff]
        %v282 = vld [vmem:[%s278 + $0x20] sm:$0xff]
        %v283 = vld [vmem:[%s278 + $0x30] sm:$0xff]
        %v284 = vld [vmem:[%s278 + $0x38] sm:$0xff]
        %v285 = vld [vmem:[%s278 + $0x48] sm:$0xff]
        %v286 = vld [vmem:[%s278 + $0x50] sm:$0xff]
        %v287 = vld [vmem:[%s278 + $0x60] sm:$0xff]
        %v288 = vld [vmem:[%s278 + $0x68] sm:$0xff]
        %v289 = vld [vmem:[%s278 + $0x78] sm:$0xff]
        %v290 = vld [vmem:[%s278 + $0x80] sm:$0xff]
        %v291 = vld [vmem:[%s278 + $0x90] sm:$0xff]
        %v292 = vld [vmem:[%s278 + $0x98] sm:$0xff]
        %v293 = vld [vmem:[%s278 + $0xa8] sm:$0xff]
        %v294 = vld [vmem:[%s278 + $0xb0] sm:$0xff]
        %v295 = vld [vmem:[%s278 + $0xc0] sm:$0xff]
        %v296 = vld [vmem:[%s278 + $0xc8] sm:$0xff]
        %v297 = vld [vmem:[%s278 + $0xd8] sm:$0xff]
        %v298 = vld [vmem:[%s278 + $0xe0] sm:$0xff]
        %v299 = vld [vmem:[%s278 + $0xf0] sm:$0xff]
        %v300 = vld [vmem:[%s278 + $0xf8] sm:$0xff]
        %v301 = vld [vmem:[%s278 + $0x108] sm:$0xff]
        %v302 = vld [vmem:[%s278 + $0x110] sm:$0xff]
        %v303 = vld [vmem:[%s278 + $0x120] sm:$0xff]
        %v304 = vld [vmem:[%s278 + $0x128] sm:$0xff]
        %v305 = vld [vmem:[%s278 + $0x138] sm:$0xff]
        %v306 = vld [vmem:[%s278 + $0x140] sm:$0xff]
        %v307 = vld [vmem:[%s278 + $0x150] sm:$0xff]
        %v308 = vld [vmem:[%s278 + $0x158] sm:$0xff]
        %v309 = vld [vmem:[%s278 + $0x168] sm:$0xff]
        %v310 = vld [vmem:[%s278 + $0x170] sm:$0xff]
        %v311 = vld [vmem:[%s278 + $0x1] sm:$0xff]
        %v312 = vld [vmem:[%s278 + $0x9] sm:$0xff]
        %v313 = vld [vmem:[%s278 + $0x19] sm:$0xff]
        %v314 = vld [vmem:[%s278 + $0x21] sm:$0xff]
        %v315 = vld [vmem:[%s278 + $0x31] sm:$0xff]
        %v316 = vld [vmem:[%s278 + $0x39] sm:$0xff]
        %v317 = vld [vmem:[%s278 + $0x49] sm:$0xff]
        %v318 = vld [vmem:[%s278 + $0x51] sm:$0xff]
        %v319 = vld [vmem:[%s278 + $0x61] sm:$0xff]
        %v320 = vld [vmem:[%s278 + $0x69] sm:$0xff]
        %v321 = vld [vmem:[%s278 + $0x79] sm:$0xff]
        %v322 = vld [vmem:[%s278 + $0x81] sm:$0xff]
        %v323 = vld [vmem:[%s278 + $0x91] sm:$0xff]
        %v324 = vld [vmem:[%s278 + $0x99] sm:$0xff]
        %v325 = vld [vmem:[%s278 + $0xa9] sm:$0xff]
        %v326 = vld [vmem:[%s278 + $0xb1] sm:$0xff]
        %v327 = vld [vmem:[%s278 + $0xc1] sm:$0xff]
        %v328 = vld [vmem:[%s278 + $0xc9] sm:$0xff]
        %v329 = vld [vmem:[%s278 + $0xd9] sm:$0xff]
        %v330 = vld [vmem:[%s278 + $0xe1] sm:$0xff]
        %v331 = vld [vmem:[%s278 + $0xf1] sm:$0xff]
        %v332 = vld [vmem:[%s278 + $0xf9] sm:$0xff]
        %v333 = vld [vmem:[%s278 + $0x109] sm:$0xff]
        %v334 = vld [vmem:[%s278 + $0x111] sm:$0xff]
        %v335 = vld [vmem:[%s278 + $0x121] sm:$0xff]
        %v336 = vld [vmem:[%s278 + $0x129] sm:$0xff]
        %v337 = vld [vmem:[%s278 + $0x139] sm:$0xff]
        %v338 = vld [vmem:[%s278 + $0x141] sm:$0xff]
        %v339 = vld [vmem:[%s278 + $0x151] sm:$0xff]
        %v340 = vld [vmem:[%s278 + $0x159] sm:$0xff]
        %v341 = vld [vmem:[%s278 + $0x169] sm:$0xff]
        %v342 = vld [vmem:[%s278 + $0x171] sm:$0xff]
        %v343 = vld [vmem:[%s278 + $0x2] sm:$0xff]
        %v344 = vld [vmem:[%s278 + $0xa] sm:$0xff]
        %v345 = vld [vmem:[%s278 + $0x1a] sm:$0xff]
        %v346 = vld [vmem:[%s278 + $0x22] sm:$0xff]
        %v347 = vld [vmem:[%s278 + $0x32] sm:$0xff]
        %v348 = vld [vmem:[%s278 + $0x3a] sm:$0xff]
        %v349 = vld [vmem:[%s278 + $0x4a] sm:$0xff]
        %v350 = vld [vmem:[%s278 + $0x52] sm:$0xff]
        %v351 = vld [vmem:[%s278 + $0x62] sm:$0xff]
        %v352 = vld [vmem:[%s278 + $0x6a] sm:$0xff]
        %v353 = vld [vmem:[%s278 + $0x7a] sm:$0xff]
        %v354 = vld [vmem:[%s278 + $0x82] sm:$0xff]
        %v355 = vld [vmem:[%s278 + $0x92] sm:$0xff]
        %v356 = vld [vmem:[%s278 + $0x9a] sm:$0xff]
        %v357 = vld [vmem:[%s278 + $0xaa] sm:$0xff]
        %v358 = vld [vmem:[%s278 + $0xb2] sm:$0xff]
        %v359 = vld [vmem:[%s278 + $0xc2] sm:$0xff]
        %v360 = vld [vmem:[%s278 + $0xca] sm:$0xff]
        %v361 = vld [vmem:[%s278 + $0xda] sm:$0xff]
        %v362 = vld [vmem:[%s278 + $0xe2] sm:$0xff]
        %v363 = vld [vmem:[%s278 + $0xf2] sm:$0xff]
        %v364 = vld [vmem:[%s278 + $0xfa] sm:$0xff]
        %v365 = vld [vmem:[%s278 + $0x10a] sm:$0xff]
        %v366 = vld [vmem:[%s278 + $0x112] sm:$0xff]
        %v367 = vld [vmem:[%s278 + $0x122] sm:$0xff]
        %v368 = vld [vmem:[%s278 + $0x12a] sm:$0xff]
        %v369 = vld [vmem:[%s278 + $0x13a] sm:$0xff]
        %v370 = vld [vmem:[%s278 + $0x142] sm:$0xff]
        %v371 = vld [vmem:[%s278 + $0x152] sm:$0xff]
        %v372 = vld [vmem:[%s278 + $0x15a] sm:$0xff]
        %v373 = vld [vmem:[%s278 + $0x16a] sm:$0xff]
        %v374 = vld [vmem:[%s278 + $0x172] sm:$0xff]
        %s375 = scalar_lea.vmem %s176, 48
        %v376 = vld [vmem:[%s375] sm:$0xff]
        %v377 = vld [vmem:[%s375 + $0x8] sm:$0xff]
        %v378 = vld [vmem:[%s375 + $0x18] sm:$0xff]
        %v379 = vld [vmem:[%s375 + $0x20] sm:$0xff]
        %v380 = vld [vmem:[%s375 + $0x30] sm:$0xff]
        %v381 = vld [vmem:[%s375 + $0x38] sm:$0xff]
        %v382 = vld [vmem:[%s375 + $0x48] sm:$0xff]
        %v383 = vld [vmem:[%s375 + $0x50] sm:$0xff]
        %v384 = vld [vmem:[%s375 + $0x60] sm:$0xff]
        %v385 = vld [vmem:[%s375 + $0x68] sm:$0xff]
        %v386 = vld [vmem:[%s375 + $0x78] sm:$0xff]
        %v387 = vld [vmem:[%s375 + $0x80] sm:$0xff]
        %v388 = vld [vmem:[%s375 + $0x90] sm:$0xff]
        %v389 = vld [vmem:[%s375 + $0x98] sm:$0xff]
        %v390 = vld [vmem:[%s375 + $0xa8] sm:$0xff]
        %v391 = vld [vmem:[%s375 + $0xb0] sm:$0xff]
        %v392 = vld [vmem:[%s375 + $0xc0] sm:$0xff]
        %v393 = vld [vmem:[%s375 + $0xc8] sm:$0xff]
        %v394 = vld [vmem:[%s375 + $0xd8] sm:$0xff]
        %v395 = vld [vmem:[%s375 + $0xe0] sm:$0xff]
        %v396 = vld [vmem:[%s375 + $0xf0] sm:$0xff]
        %v397 = vld [vmem:[%s375 + $0xf8] sm:$0xff]
        %v398 = vld [vmem:[%s375 + $0x108] sm:$0xff]
        %v399 = vld [vmem:[%s375 + $0x110] sm:$0xff]
        %v400 = vld [vmem:[%s375 + $0x120] sm:$0xff]
        %v401 = vld [vmem:[%s375 + $0x128] sm:$0xff]
        %v402 = vld [vmem:[%s375 + $0x138] sm:$0xff]
        %v403 = vld [vmem:[%s375 + $0x140] sm:$0xff]
        %v404 = vld [vmem:[%s375 + $0x150] sm:$0xff]
        %v405 = vld [vmem:[%s375 + $0x158] sm:$0xff]
        %v406 = vld [vmem:[%s375 + $0x168] sm:$0xff]
        %v407 = vld [vmem:[%s375 + $0x170] sm:$0xff]
        %v408 = vld [vmem:[%s375 + $0x1] sm:$0xff]
        %v409 = vld [vmem:[%s375 + $0x9] sm:$0xff]
        %v410 = vld [vmem:[%s375 + $0x19] sm:$0xff]
        %v411 = vld [vmem:[%s375 + $0x21] sm:$0xff]
        %v412 = vld [vmem:[%s375 + $0x31] sm:$0xff]
        %v413 = vld [vmem:[%s375 + $0x39] sm:$0xff]
        %v414 = vld [vmem:[%s375 + $0x49] sm:$0xff]
        %v415 = vld [vmem:[%s375 + $0x51] sm:$0xff]
        %v416 = vld [vmem:[%s375 + $0x61] sm:$0xff]
        %v417 = vld [vmem:[%s375 + $0x69] sm:$0xff]
        %v418 = vld [vmem:[%s375 + $0x79] sm:$0xff]
        %v419 = vld [vmem:[%s375 + $0x81] sm:$0xff]
        %v420 = vld [vmem:[%s375 + $0x91] sm:$0xff]
        %v421 = vld [vmem:[%s375 + $0x99] sm:$0xff]
        %v422 = vld [vmem:[%s375 + $0xa9] sm:$0xff]
        %v423 = vld [vmem:[%s375 + $0xb1] sm:$0xff]
        %v424 = vld [vmem:[%s375 + $0xc1] sm:$0xff]
        %v425 = vld [vmem:[%s375 + $0xc9] sm:$0xff]
        %v426 = vld [vmem:[%s375 + $0xd9] sm:$0xff]
        %v427 = vld [vmem:[%s375 + $0xe1] sm:$0xff]
        %v428 = vld [vmem:[%s375 + $0xf1] sm:$0xff]
        %v429 = vld [vmem:[%s375 + $0xf9] sm:$0xff]
        %v430 = vld [vmem:[%s375 + $0x109] sm:$0xff]
        %v431 = vld [vmem:[%s375 + $0x111] sm:$0xff]
        %v432 = vld [vmem:[%s375 + $0x121] sm:$0xff]
        %v433 = vld [vmem:[%s375 + $0x129] sm:$0xff]
        %v434 = vld [vmem:[%s375 + $0x139] sm:$0xff]
        %v435 = vld [vmem:[%s375 + $0x141] sm:$0xff]
        %v436 = vld [vmem:[%s375 + $0x151] sm:$0xff]
        %v437 = vld [vmem:[%s375 + $0x159] sm:$0xff]
        %v438 = vld [vmem:[%s375 + $0x169] sm:$0xff]
        %v439 = vld [vmem:[%s375 + $0x171] sm:$0xff]
        %v440 = vld [vmem:[%s375 + $0x2] sm:$0xff]
        %v441 = vld [vmem:[%s375 + $0xa] sm:$0xff]
        %v442 = vld [vmem:[%s375 + $0x1a] sm:$0xff]
        %v443 = vld [vmem:[%s375 + $0x22] sm:$0xff]
        %v444 = vld [vmem:[%s375 + $0x32] sm:$0xff]
        %v445 = vld [vmem:[%s375 + $0x3a] sm:$0xff]
        %v446 = vld [vmem:[%s375 + $0x4a] sm:$0xff]
        %v447 = vld [vmem:[%s375 + $0x52] sm:$0xff]
        %v448 = vld [vmem:[%s375 + $0x62] sm:$0xff]
        %v449 = vld [vmem:[%s375 + $0x6a] sm:$0xff]
        %v450 = vld [vmem:[%s375 + $0x7a] sm:$0xff]
        %v451 = vld [vmem:[%s375 + $0x82] sm:$0xff]
        %v452 = vld [vmem:[%s375 + $0x92] sm:$0xff]
        %v453 = vld [vmem:[%s375 + $0x9a] sm:$0xff]
        %v454 = vld [vmem:[%s375 + $0xaa] sm:$0xff]
        %v455 = vld [vmem:[%s375 + $0xb2] sm:$0xff]
        %v456 = vld [vmem:[%s375 + $0xc2] sm:$0xff]
        %v457 = vld [vmem:[%s375 + $0xca] sm:$0xff]
        %v458 = vld [vmem:[%s375 + $0xda] sm:$0xff]
        %v459 = vld [vmem:[%s375 + $0xe2] sm:$0xff]
        %v460 = vld [vmem:[%s375 + $0xf2] sm:$0xff]
        %v461 = vld [vmem:[%s375 + $0xfa] sm:$0xff]
        %v462 = vld [vmem:[%s375 + $0x10a] sm:$0xff]
        %v463 = vld [vmem:[%s375 + $0x112] sm:$0xff]
        %v464 = vld [vmem:[%s375 + $0x122] sm:$0xff]
        %v465 = vld [vmem:[%s375 + $0x12a] sm:$0xff]
        %v466 = vld [vmem:[%s375 + $0x13a] sm:$0xff]
        %v467 = vld [vmem:[%s375 + $0x142] sm:$0xff]
        %v468 = vld [vmem:[%s375 + $0x152] sm:$0xff]
        %v469 = vld [vmem:[%s375 + $0x15a] sm:$0xff]
        %v470 = vld [vmem:[%s375 + $0x16a] sm:$0xff]
        %v471 = vld [vmem:[%s375 + $0x172] sm:$0xff]
        %v472 = vld [vmem:[%s1] sm:$0xf]
        %s473 = scalar_lea.vmem %s1, 4
        %v474 = vld [vmem:[%s473] sm:$0xf]
        %vm475 = vcmask 31744
        %v477 = vsel %vm475, %v214, 0
        %v480 = vsel %vm475, %v215, 0
        %v483 = vsel %vm475, %v216, 0
        %v486 = vsel %vm475, %v217, 0
        %v489 = vsel %vm475, %v218, 0
        %v492 = vsel %vm475, %v219, 0
        %v495 = vsel %vm475, %v220, 0
        %v498 = vsel %vm475, %v221, 0
        %v501 = vsel %vm475, %v222, 0
        %v504 = vsel %vm475, %v223, 0
        %v507 = vsel %vm475, %v224, 0
        %v510 = vsel %vm475, %v225, 0
        %v513 = vsel %vm475, %v226, 0
        %v516 = vsel %vm475, %v227, 0
        %v519 = vsel %vm475, %v228, 0
        %v522 = vsel %vm475, %v229, 0
        %v525 = vsel %vm475, %v230, 0
        %v528 = vsel %vm475, %v231, 0
        %v531 = vsel %vm475, %v232, 0
        %v534 = vsel %vm475, %v233, 0
        %v537 = vsel %vm475, %v234, 0
        %v540 = vsel %vm475, %v235, 0
        %v543 = vsel %vm475, %v236, 0
        %v546 = vsel %vm475, %v237, 0
        %v549 = vsel %vm475, %v238, 0
        %v552 = vsel %vm475, %v239, 0
        %v555 = vsel %vm475, %v240, 0
        %v558 = vsel %vm475, %v241, 0
        %v561 = vsel %vm475, %v242, 0
        %v564 = vsel %vm475, %v243, 0
        %v567 = vsel %vm475, %v244, 0
        %v570 = vsel %vm475, %v245, 0
        %vm572 = vcmask 1043456
        %v574 = vsel %vm572, %v474, 0
        %576 = vmatprep.subr.mxu0 0.0
        %577 = vmatpush1.msra.mxu0 %v574
        %578 = vmatprep.subr.mxu0 0.0
        %579 = vmatpush1.msra.mxu0 0.0
        %580 = vmatprep.subr.mxu0 0.0
        %581 = vmatpush1.msra.mxu0 0.0
        %582 = vmatprep.subr.mxu0 0.0
        %583 = vmatpush1.msra.mxu0 0.0
        %584 = vmatprep.subr.mxu0 0.0
        %585 = vmatpush1.msra.mxu0 0.0
        %586 = vmatprep.subr.mxu0 0.0
        %587 = vmatpush1.msra.mxu0 0.0
        %588 = vmatprep.subr.mxu0 0.0
        %589 = vmatpush1.msra.mxu0 0.0
        %590 = vmatprep.subr.mxu0 0.0
        %591 = vmatpush1.msra.mxu0 0.0
        %592 = vmatprep.subr.mxu0 0.0
        %593 = vmatpush1.msra.mxu0 0.0
        %594 = vmatprep.subr.mxu0 0.0
        %595 = vmatpush1.msra.mxu0 0.0
        %596 = vmatprep.subr.mxu0 0.0
        %597 = vmatpush1.msra.mxu0 0.0
        %598 = vmatprep.subr.mxu0 0.0
        %599 = vmatpush1.msra.mxu0 0.0
        %600 = vmatprep.subr.mxu0 0.0
        %601 = vmatpush1.msra.mxu0 0.0
        %602 = vmatprep.subr.mxu0 0.0
        %603 = vmatpush1.msra.mxu0 0.0
        %604 = vmatprep.subr.mxu0 0.0
        %605 = vmatpush1.msra.mxu0 0.0
        %606 = vmatprep.subr.mxu0 0.0
        %607 = vmatpush1.msra.mxu0 0.0
        %608 = vmatprep.subr.mxu0 0.0
        %609 = vmatpush1.msra.mxu0 0.0
        %610 = vmatprep.subr.mxu0 0.0
        %611 = vmatpush1.msra.mxu0 0.0
        %612 = vmatprep.subr.mxu0 0.0
        %613 = vmatpush1.msra.mxu0 0.0
        %614 = vmatprep.subr.mxu0 0.0
        %615 = vmatpush1.msra.mxu0 0.0
        %616 = vmatprep.subr.mxu0 0.0
        %617 = vmatpush1.msra.mxu0 0.0
        %618 = vmatprep.subr.mxu0 0.0
        %619 = vmatpush1.msra.mxu0 0.0
        %620 = vmatprep.subr.mxu0 0.0
        %621 = vmatpush1.msra.mxu0 0.0
        %622 = vmatprep.subr.mxu0 0.0
        %623 = vmatpush1.msra.mxu0 0.0
        %624 = vmatprep.subr.mxu0 0.0
        %625 = vmatpush1.msra.mxu0 0.0
        %626 = vmatprep.subr.mxu0 0.0
        %627 = vmatpush1.msra.mxu0 0.0
        %628 = vmatprep.subr.mxu0 0.0
        %629 = vmatpush1.msra.mxu0 0.0
        %630 = vmatprep.subr.mxu0 0.0
        %631 = vmatpush1.msra.mxu0 0.0
        %632 = vmatprep.subr.mxu0 0.0
        %633 = vmatpush1.msra.mxu0 0.0
        %634 = vmatprep.subr.mxu0 0.0
        %635 = vmatpush1.msra.mxu0 0.0
        %636 = vmatprep.subr.mxu0 0.0
        %637 = vmatpush1.msra.mxu0 0.0
        %638 = vmatprep.subr.mxu0 0.0
        %639 = vmatpush1.msra.mxu0 0.0
        %640 = vmatprep.mubr.f32.mxu0 0.0
        %641 = vmatmul.mubr.f32.gmra.mrb[0].mxu0 %v477
        %v642 = vpop.f32.mrb[0].mxu0
        %v643 = vadd.f32 0.0, %v642
        %v644 = vpop.f32.mrb[0].mxu0
        %645 = vmatprep.mubr.f32.mxu0 0.0
        %646 = vmatmul.mubr.f32.gmra.mrb[0].mxu0 %v480
        %v647 = vpop.f32.mrb[0].mxu0
        %v648 = vadd.f32 0.0, %v647
        %v649 = vpop.f32.mrb[0].mxu0
        %650 = vmatprep.mubr.f32.mxu0 0.0
        %651 = vmatmul.mubr.f32.gmra.mrb[0].mxu0 %v483
        %v652 = vpop.f32.mrb[0].mxu0
        %v653 = vadd.f32 0.0, %v652
        %v654 = vpop.f32.mrb[0].mxu0
        %655 = vmatprep.mubr.f32.mxu0 0.0
        %656 = vmatmul.mubr.f32.gmra.mrb[0].mxu0 %v486
        %v657 = vpop.f32.mrb[0].mxu0
        %v658 = vadd.f32 0.0, %v657
        %v659 = vpop.f32.mrb[0].mxu0
        %660 = vmatprep.mubr.f32.mxu0 0.0
        %661 = vmatmul.mubr.f32.gmra.mrb[0].mxu0 %v489
        %v662 = vpop.f32.mrb[0].mxu0
        %v663 = vadd.f32 0.0, %v662
        %v664 = vpop.f32.mrb[0].mxu0
        %665 = vmatprep.mubr.f32.mxu0 0.0
        %666 = vmatmul.mubr.f32.gmra.mrb[0].mxu0 %v492
        %v667 = vpop.f32.mrb[0].mxu0
        %v668 = vadd.f32 0.0, %v667
        %v669 = vpop.f32.mrb[0].mxu0
        %670 = vmatprep.mubr.f32.mxu0 0.0
        %671 = vmatmul.mubr.f32.gmra.mrb[0].mxu0 %v495
        %v672 = vpop.f32.mrb[0].mxu0
        %v673 = vadd.f32 0.0, %v672
        %v674 = vpop.f32.mrb[0].mxu0
        %675 = vmatprep.mubr.f32.mxu0 0.0
        %676 = vmatmul.mubr.f32.gmra.mrb[0].mxu0 %v498
        %v677 = vpop.f32.mrb[0].mxu0
        %v678 = vadd.f32 0.0, %v677
        %v679 = vpop.f32.mrb[0].mxu0
        %680 = vmatprep.mubr.f32.mxu0 0.0
        %681 = vmatmul.mubr.f32.gmra.mrb[0].mxu0 %v501
        %v682 = vpop.f32.mrb[0].mxu0
        %v683 = vadd.f32 0.0, %v682
        %v684 = vpop.f32.mrb[0].mxu0
        %685 = vmatprep.mubr.f32.mxu0 0.0
        %686 = vmatmul.mubr.f32.gmra.mrb[0].mxu0 %v504
        %v687 = vpop.f32.mrb[0].mxu0
        %v688 = vadd.f32 0.0, %v687
        %v689 = vpop.f32.mrb[0].mxu0
        %690 = vmatprep.mubr.f32.mxu0 0.0
        %691 = vmatmul.mubr.f32.gmra.mrb[0].mxu0 %v507
        %v692 = vpop.f32.mrb[0].mxu0
        %v693 = vadd.f32 0.0, %v692
        %v694 = vpop.f32.mrb[0].mxu0
        %695 = vmatprep.mubr.f32.mxu0 0.0
        %696 = vmatmul.mubr.f32.gmra.mrb[0].mxu0 %v510
        %v697 = vpop.f32.mrb[0].mxu0
        %v698 = vadd.f32 0.0, %v697
        %v699 = vpop.f32.mrb[0].mxu0
        %700 = vmatprep.mubr.f32.mxu0 0.0
        %701 = vmatmul.mubr.f32.gmra.mrb[0].mxu0 %v513
        %v702 = vpop.f32.mrb[0].mxu0
        %v703 = vadd.f32 0.0, %v702
        %v704 = vpop.f32.mrb[0].mxu0
        %705 = vmatprep.mubr.f32.mxu0 0.0
        %706 = vmatmul.mubr.f32.gmra.mrb[0].mxu0 %v516
        %v707 = vpop.f32.mrb[0].mxu0
        %v708 = vadd.f32 0.0, %v707
        %v709 = vpop.f32.mrb[0].mxu0
        %710 = vmatprep.mubr.f32.mxu0 0.0
        %711 = vmatmul.mubr.f32.gmra.mrb[0].mxu0 %v519
        %v712 = vpop.f32.mrb[0].mxu0
        %v713 = vadd.f32 0.0, %v712
        %v714 = vpop.f32.mrb[0].mxu0
        %715 = vmatprep.mubr.f32.mxu0 0.0
        %716 = vmatmul.mubr.f32.gmra.mrb[0].mxu0 %v522
        %v717 = vpop.f32.mrb[0].mxu0
        %v718 = vadd.f32 0.0, %v717
        %v719 = vpop.f32.mrb[0].mxu0
        %720 = vmatprep.mubr.f32.mxu0 0.0
        %721 = vmatmul.mubr.f32.gmra.mrb[0].mxu0 %v525
        %v722 = vpop.f32.mrb[0].mxu0
        %v723 = vadd.f32 0.0, %v722
        %v724 = vpop.f32.mrb[0].mxu0
        %725 = vmatprep.mubr.f32.mxu0 0.0
        %726 = vmatmul.mubr.f32.gmra.mrb[0].mxu0 %v528
        %v727 = vpop.f32.mrb[0].mxu0
        %v728 = vadd.f32 0.0, %v727
        %v729 = vpop.f32.mrb[0].mxu0
        %730 = vmatprep.mubr.f32.mxu0 0.0
        %731 = vmatmul.mubr.f32.gmra.mrb[0].mxu0 %v531
        %v732 = vpop.f32.mrb[0].mxu0
        %v733 = vadd.f32 0.0, %v732
        %v734 = vpop.f32.mrb[0].mxu0
        %735 = vmatprep.mubr.f32.mxu0 0.0
        %736 = vmatmul.mubr.f32.gmra.mrb[0].mxu0 %v534
        %v737 = vpop.f32.mrb[0].mxu0
        %v738 = vadd.f32 0.0, %v737
        %v739 = vpop.f32.mrb[0].mxu0
        %740 = vmatprep.mubr.f32.mxu0 0.0
        %741 = vmatmul.mubr.f32.gmra.mrb[0].mxu0 %v537
        %v742 = vpop.f32.mrb[0].mxu0
        %v743 = vadd.f32 0.0, %v742
        %v744 = vpop.f32.mrb[0].mxu0
        %745 = vmatprep.mubr.f32.mxu0 0.0
        %746 = vmatmul.mubr.f32.gmra.mrb[0].mxu0 %v540
        %v747 = vpop.f32.mrb[0].mxu0
        %v748 = vadd.f32 0.0, %v747
        %v749 = vpop.f32.mrb[0].mxu0
        %750 = vmatprep.mubr.f32.mxu0 0.0
        %751 = vmatmul.mubr.f32.gmra.mrb[0].mxu0 %v543
        %v752 = vpop.f32.mrb[0].mxu0
        %v753 = vadd.f32 0.0, %v752
        %v754 = vpop.f32.mrb[0].mxu0
        %755 = vmatprep.mubr.f32.mxu0 0.0
        %756 = vmatmul.mubr.f32.gmra.mrb[0].mxu0 %v546
        %v757 = vpop.f32.mrb[0].mxu0
        %v758 = vadd.f32 0.0, %v757
        %v759 = vpop.f32.mrb[0].mxu0
        %760 = vmatprep.mubr.f32.mxu0 0.0
        %761 = vmatmul.mubr.f32.gmra.mrb[0].mxu0 %v549
        %v762 = vpop.f32.mrb[0].mxu0
        %v763 = vadd.f32 0.0, %v762
        %v764 = vpop.f32.mrb[0].mxu0
        %765 = vmatprep.mubr.f32.mxu0 0.0
        %766 = vmatmul.mubr.f32.gmra.mrb[0].mxu0 %v552
        %v767 = vpop.f32.mrb[0].mxu0
        %v768 = vadd.f32 0.0, %v767
        %v769 = vpop.f32.mrb[0].mxu0
        %770 = vmatprep.mubr.f32.mxu0 0.0
        %771 = vmatmul.mubr.f32.gmra.mrb[0].mxu0 %v555
        %v772 = vpop.f32.mrb[0].mxu0
        %v773 = vadd.f32 0.0, %v772
        %v774 = vpop.f32.mrb[0].mxu0
        %775 = vmatprep.mubr.f32.mxu0 0.0
        %776 = vmatmul.mubr.f32.gmra.mrb[0].mxu0 %v558
        %v777 = vpop.f32.mrb[0].mxu0
        %v778 = vadd.f32 0.0, %v777
        %v779 = vpop.f32.mrb[0].mxu0
        %780 = vmatprep.mubr.f32.mxu0 0.0
        %781 = vmatmul.mubr.f32.gmra.mrb[0].mxu0 %v561
        %v782 = vpop.f32.mrb[0].mxu0
        %v783 = vadd.f32 0.0, %v782
        %v784 = vpop.f32.mrb[0].mxu0
        %785 = vmatprep.mubr.f32.mxu0 0.0
        %786 = vmatmul.mubr.f32.gmra.mrb[0].mxu0 %v564
        %v787 = vpop.f32.mrb[0].mxu0
        %v788 = vadd.f32 0.0, %v787
        %v789 = vpop.f32.mrb[0].mxu0
        %790 = vmatprep.mubr.f32.mxu0 0.0
        %791 = vmatmul.mubr.f32.gmra.mrb[0].mxu0 %v567
        %v792 = vpop.f32.mrb[0].mxu0
        %v793 = vadd.f32 0.0, %v792
        %v794 = vpop.f32.mrb[0].mxu0
        %795 = vmatprep.mubr.f32.mxu0 0.0
        %796 = vmatmul.mubr.f32.gmra.mrb[0].mxu0 %v570
        %v797 = vpop.f32.mrb[0].mxu0
        %v798 = vadd.f32 0.0, %v797
        %v799 = vpop.f32.mrb[0].mxu0
        %800 = vdwg.mxu0
        %v802 = vsel %vm475, %v182, 0
        %v805 = vsel %vm475, %v183, 0
        %v808 = vsel %vm475, %v184, 0
        %v811 = vsel %vm475, %v185, 0
        %v814 = vsel %vm475, %v186, 0
        %v817 = vsel %vm475, %v187, 0
        %v820 = vsel %vm475, %v188, 0
        %v823 = vsel %vm475, %v189, 0
        %v826 = vsel %vm475, %v190, 0
        %v829 = vsel %vm475, %v191, 0
        %v832 = vsel %vm475, %v192, 0
        %v835 = vsel %vm475, %v193, 0
        %v838 = vsel %vm475, %v194, 0
        %v841 = vsel %vm475, %v195, 0
        %v844 = vsel %vm475, %v196, 0
        %v847 = vsel %vm475, %v197, 0
        %v850 = vsel %vm475, %v198, 0
        %v853 = vsel %vm475, %v199, 0
        %v856 = vsel %vm475, %v200, 0
        %v859 = vsel %vm475, %v201, 0
        %v862 = vsel %vm475, %v202, 0
        %v865 = vsel %vm475, %v203, 0
        %v868 = vsel %vm475, %v204, 0
        %v871 = vsel %vm475, %v205, 0
        %v874 = vsel %vm475, %v206, 0
        %v877 = vsel %vm475, %v207, 0
        %v880 = vsel %vm475, %v208, 0
        %v883 = vsel %vm475, %v209, 0
        %v886 = vsel %vm475, %v210, 0
        %v889 = vsel %vm475, %v211, 0
        %v892 = vsel %vm475, %v212, 0
        %v895 = vsel %vm475, %v213, 0
        %v898 = vsel %vm572, %v472, 0
        %900 = vmatprep.subr.mxu0 0.0
        %901 = vmatpush1.msra.mxu0 %v898
        %902 = vmatprep.subr.mxu0 0.0
        %903 = vmatpush1.msra.mxu0 0.0
        %904 = vmatprep.subr.mxu0 0.0
        %905 = vmatpush1.msra.mxu0 0.0
        %906 = vmatprep.subr.mxu0 0.0
        %907 = vmatpush1.msra.mxu0 0.0
        %908 = vmatprep.subr.mxu0 0.0
        %909 = vmatpush1.msra.mxu0 0.0
        %910 = vmatprep.subr.mxu0 0.0
        %911 = vmatpush1.msra.mxu0 0.0
        %912 = vmatprep.subr.mxu0 0.0
        %913 = vmatpush1.msra.mxu0 0.0
        %914 = vmatprep.subr.mxu0 0.0
        %915 = vmatpush1.msra.mxu0 0.0
        %916 = vmatprep.subr.mxu0 0.0
        %917 = vmatpush1.msra.mxu0 0.0
        %918 = vmatprep.subr.mxu0 0.0
        %919 = vmatpush1.msra.mxu0 0.0
        %920 = vmatprep.subr.mxu0 0.0
        %921 = vmatpush1.msra.mxu0 0.0
        %922 = vmatprep.subr.mxu0 0.0
        %923 = vmatpush1.msra.mxu0 0.0
        %924 = vmatprep.subr.mxu0 0.0
        %925 = vmatpush1.msra.mxu0 0.0
        %926 = vmatprep.subr.mxu0 0.0
        %927 = vmatpush1.msra.mxu0 0.0
        %928 = vmatprep.subr.mxu0 0.0
        %929 = vmatpush1.msra.mxu0 0.0
        %930 = vmatprep.subr.mxu0 0.0
        %931 = vmatpush1.msra.mxu0 0.0
        %932 = vmatprep.subr.mxu0 0.0
        %933 = vmatpush1.msra.mxu0 0.0
        %934 = vmatprep.subr.mxu0 0.0
        %935 = vmatpush1.msra.mxu0 0.0
        %936 = vmatprep.subr.mxu0 0.0
        %937 = vmatpush1.msra.mxu0 0.0
        %938 = vmatprep.subr.mxu0 0.0
        %939 = vmatpush1.msra.mxu0 0.0
        %940 = vmatprep.subr.mxu0 0.0
        %941 = vmatpush1.msra.mxu0 0.0
        %942 = vmatprep.subr.mxu0 0.0
        %943 = vmatpush1.msra.mxu0 0.0
        %944 = vmatprep.subr.mxu0 0.0
        %945 = vmatpush1.msra.mxu0 0.0
        %946 = vmatprep.subr.mxu0 0.0
        %947 = vmatpush1.msra.mxu0 0.0
        %948 = vmatprep.subr.mxu0 0.0
        %949 = vmatpush1.msra.mxu0 0.0
        %950 = vmatprep.subr.mxu0 0.0
        %951 = vmatpush1.msra.mxu0 0.0
        %952 = vmatprep.subr.mxu0 0.0
        %953 = vmatpush1.msra.mxu0 0.0
        %954 = vmatprep.subr.mxu0 0.0
        %955 = vmatpush1.msra.mxu0 0.0
        %956 = vmatprep.subr.mxu0 0.0
        %957 = vmatpush1.msra.mxu0 0.0
        %958 = vmatprep.subr.mxu0 0.0
        %959 = vmatpush1.msra.mxu0 0.0
        %960 = vmatprep.subr.mxu0 0.0
        %961 = vmatpush1.msra.mxu0 0.0
        %962 = vmatprep.subr.mxu0 0.0
        %963 = vmatpush1.msra.mxu0 0.0
        %964 = vmatprep.mubr.f32.mxu0 0.0
        %965 = vmatmul.mubr.f32.gmra.mrb[0].mxu0 %v802
        %v966 = vpop.f32.mrb[0].mxu0
        %v967 = vadd.f32 %v643, %v966
        %v968 = vpop.f32.mrb[0].mxu0
        %969 = vmatprep.mubr.f32.mxu0 0.0
        %970 = vmatmul.mubr.f32.gmra.mrb[0].mxu0 %v805
        %v971 = vpop.f32.mrb[0].mxu0
        %v972 = vadd.f32 %v648, %v971
        %v973 = vpop.f32.mrb[0].mxu0
        %974 = vmatprep.mubr.f32.mxu0 0.0
        %975 = vmatmul.mubr.f32.gmra.mrb[0].mxu0 %v808
        %v976 = vpop.f32.mrb[0].mxu0
        %v977 = vadd.f32 %v653, %v976
        %v978 = vpop.f32.mrb[0].mxu0
        %979 = vmatprep.mubr.f32.mxu0 0.0
        %980 = vmatmul.mubr.f32.gmra.mrb[0].mxu0 %v811
        %v981 = vpop.f32.mrb[0].mxu0
        %v982 = vadd.f32 %v658, %v981
        %v983 = vpop.f32.mrb[0].mxu0
        %984 = vmatprep.mubr.f32.mxu0 0.0
        %985 = vmatmul.mubr.f32.gmra.mrb[0].mxu0 %v814
        %v986 = vpop.f32.mrb[0].mxu0
        %v987 = vadd.f32 %v663, %v986
        %v988 = vpop.f32.mrb[0].mxu0
        %989 = vmatprep.mubr.f32.mxu0 0.0
        %990 = vmatmul.mubr.f32.gmra.mrb[0].mxu0 %v817
        %v991 = vpop.f32.mrb[0].mxu0
        %v992 = vadd.f32 %v668, %v991
        %v993 = vpop.f32.mrb[0].mxu0
        %994 = vmatprep.mubr.f32.mxu0 0.0
        %995 = vmatmul.mubr.f32.gmra.mrb[0].mxu0 %v820
        %v996 = vpop.f32.mrb[0].mxu0
        %v997 = vadd.f32 %v673, %v996
        %v998 = vpop.f32.mrb[0].mxu0
        %999 = vmatprep.mubr.f32.mxu0 0.0
        %1000 = vmatmul.mubr.f32.gmra.mrb[0].mxu0 %v823
        %v1001 = vpop.f32.mrb[0].mxu0
        %v1002 = vadd.f32 %v678, %v1001
        %v1003 = vpop.f32.mrb[0].mxu0
        %1004 = vmatprep.mubr.f32.mxu0 0.0
        %1005 = vmatmul.mubr.f32.gmra.mrb[0].mxu0 %v826
        %v1006 = vpop.f32.mrb[0].mxu0
        %v1007 = vadd.f32 %v683, %v1006
        %v1008 = vpop.f32.mrb[0].mxu0
        %1009 = vmatprep.mubr.f32.mxu0 0.0
        %1010 = vmatmul.mubr.f32.gmra.mrb[0].mxu0 %v829
        %v1011 = vpop.f32.mrb[0].mxu0
        %v1012 = vadd.f32 %v688, %v1011
        %v1013 = vpop.f32.mrb[0].mxu0
        %1014 = vmatprep.mubr.f32.mxu0 0.0
        %1015 = vmatmul.mubr.f32.gmra.mrb[0].mxu0 %v832
        %v1016 = vpop.f32.mrb[0].mxu0
        %v1017 = vadd.f32 %v693, %v1016
        %v1018 = vpop.f32.mrb[0].mxu0
        %1019 = vmatprep.mubr.f32.mxu0 0.0
        %1020 = vmatmul.mubr.f32.gmra.mrb[0].mxu0 %v835
        %v1021 = vpop.f32.mrb[0].mxu0
        %v1022 = vadd.f32 %v698, %v1021
        %v1023 = vpop.f32.mrb[0].mxu0
        %1024 = vmatprep.mubr.f32.mxu0 0.0
        %1025 = vmatmul.mubr.f32.gmra.mrb[0].mxu0 %v838
        %v1026 = vpop.f32.mrb[0].mxu0
        %v1027 = vadd.f32 %v703, %v1026
        %v1028 = vpop.f32.mrb[0].mxu0
        %1029 = vmatprep.mubr.f32.mxu0 0.0
        %1030 = vmatmul.mubr.f32.gmra.mrb[0].mxu0 %v841
        %v1031 = vpop.f32.mrb[0].mxu0
        %v1032 = vadd.f32 %v708, %v1031
        %v1033 = vpop.f32.mrb[0].mxu0
        %1034 = vmatprep.mubr.f32.mxu0 0.0
        %1035 = vmatmul.mubr.f32.gmra.mrb[0].mxu0 %v844
        %v1036 = vpop.f32.mrb[0].mxu0
        %v1037 = vadd.f32 %v713, %v1036
        %v1038 = vpop.f32.mrb[0].mxu0
        %1039 = vmatprep.mubr.f32.mxu0 0.0
        %1040 = vmatmul.mubr.f32.gmra.mrb[0].mxu0 %v847
        %v1041 = vpop.f32.mrb[0].mxu0
        %v1042 = vadd.f32 %v718, %v1041
        %v1043 = vpop.f32.mrb[0].mxu0
        %1044 = vmatprep.mubr.f32.mxu0 0.0
        %1045 = vmatmul.mubr.f32.gmra.mrb[0].mxu0 %v850
        %v1046 = vpop.f32.mrb[0].mxu0
        %v1047 = vadd.f32 %v723, %v1046
        %v1048 = vpop.f32.mrb[0].mxu0
        %1049 = vmatprep.mubr.f32.mxu0 0.0
        %1050 = vmatmul.mubr.f32.gmra.mrb[0].mxu0 %v853
        %v1051 = vpop.f32.mrb[0].mxu0
        %v1052 = vadd.f32 %v728, %v1051
        %v1053 = vpop.f32.mrb[0].mxu0
        %1054 = vmatprep.mubr.f32.mxu0 0.0
        %1055 = vmatmul.mubr.f32.gmra.mrb[0].mxu0 %v856
        %v1056 = vpop.f32.mrb[0].mxu0
        %v1057 = vadd.f32 %v733, %v1056
        %v1058 = vpop.f32.mrb[0].mxu0
        %1059 = vmatprep.mubr.f32.mxu0 0.0
        %1060 = vmatmul.mubr.f32.gmra.mrb[0].mxu0 %v859
        %v1061 = vpop.f32.mrb[0].mxu0
        %v1062 = vadd.f32 %v738, %v1061
        %v1063 = vpop.f32.mrb[0].mxu0
        %1064 = vmatprep.mubr.f32.mxu0 0.0
        %1065 = vmatmul.mubr.f32.gmra.mrb[0].mxu0 %v862
        %v1066 = vpop.f32.mrb[0].mxu0
        %v1067 = vadd.f32 %v743, %v1066
        %v1068 = vpop.f32.mrb[0].mxu0
        %1069 = vmatprep.mubr.f32.mxu0 0.0
        %1070 = vmatmul.mubr.f32.gmra.mrb[0].mxu0 %v865
        %v1071 = vpop.f32.mrb[0].mxu0
        %v1072 = vadd.f32 %v748, %v1071
        %v1073 = vpop.f32.mrb[0].mxu0
        %1074 = vmatprep.mubr.f32.mxu0 0.0
        %1075 = vmatmul.mubr.f32.gmra.mrb[0].mxu0 %v868
        %v1076 = vpop.f32.mrb[0].mxu0
        %v1077 = vadd.f32 %v753, %v1076
        %v1078 = vpop.f32.mrb[0].mxu0
        %1079 = vmatprep.mubr.f32.mxu0 0.0
        %1080 = vmatmul.mubr.f32.gmra.mrb[0].mxu0 %v871
        %v1081 = vpop.f32.mrb[0].mxu0
        %v1082 = vadd.f32 %v758, %v1081
        %v1083 = vpop.f32.mrb[0].mxu0
        %1084 = vmatprep.mubr.f32.mxu0 0.0
        %1085 = vmatmul.mubr.f32.gmra.mrb[0].mxu0 %v874
        %v1086 = vpop.f32.mrb[0].mxu0
        %v1087 = vadd.f32 %v763, %v1086
        %v1088 = vpop.f32.mrb[0].mxu0
        %1089 = vmatprep.mubr.f32.mxu0 0.0
        %1090 = vmatmul.mubr.f32.gmra.mrb[0].mxu0 %v877
        %v1091 = vpop.f32.mrb[0].mxu0
        %v1092 = vadd.f32 %v768, %v1091
        %v1093 = vpop.f32.mrb[0].mxu0
        %1094 = vmatprep.mubr.f32.mxu0 0.0
        %1095 = vmatmul.mubr.f32.gmra.mrb[0].mxu0 %v880
        %v1096 = vpop.f32.mrb[0].mxu0
        %v1097 = vadd.f32 %v773, %v1096
        %v1098 = vpop.f32.mrb[0].mxu0
        %1099 = vmatprep.mubr.f32.mxu0 0.0
        %1100 = vmatmul.mubr.f32.gmra.mrb[0].mxu0 %v883
        %v1101 = vpop.f32.mrb[0].mxu0
        %v1102 = vadd.f32 %v778, %v1101
        %v1103 = vpop.f32.mrb[0].mxu0
        %1104 = vmatprep.mubr.f32.mxu0 0.0
        %1105 = vmatmul.mubr.f32.gmra.mrb[0].mxu0 %v886
        %v1106 = vpop.f32.mrb[0].mxu0
        %v1107 = vadd.f32 %v783, %v1106
        %v1108 = vpop.f32.mrb[0].mxu0
        %1109 = vmatprep.mubr.f32.mxu0 0.0
        %1110 = vmatmul.mubr.f32.gmra.mrb[0].mxu0 %v889
        %v1111 = vpop.f32.mrb[0].mxu0
        %v1112 = vadd.f32 %v788, %v1111
        %v1113 = vpop.f32.mrb[0].mxu0
        %1114 = vmatprep.mubr.f32.mxu0 0.0
        %1115 = vmatmul.mubr.f32.gmra.mrb[0].mxu0 %v892
        %v1116 = vpop.f32.mrb[0].mxu0
        %v1117 = vadd.f32 %v793, %v1116
        %v1118 = vpop.f32.mrb[0].mxu0
        %1119 = vmatprep.mubr.f32.mxu0 0.0
        %1120 = vmatmul.mubr.f32.gmra.mrb[0].mxu0 %v895
        %v1121 = vpop.f32.mrb[0].mxu0
        %v1122 = vadd.f32 %v798, %v1121
        %v1123 = vpop.f32.mrb[0].mxu0
        %1124 = vdwg.mxu0
        %s1125 = scalar_lea.vmem %s1, 8
        %v1126 = vld [vmem:[%s1125] sm:$0xf]
        %v1128 = vsel %vm475, %v279, 0
        %v1131 = vsel %vm475, %v280, 0
        %v1134 = vsel %vm475, %v281, 0
        %v1137 = vsel %vm475, %v282, 0
        %v1140 = vsel %vm475, %v283, 0
        %v1143 = vsel %vm475, %v284, 0
        %v1146 = vsel %vm475, %v285, 0
        %v1149 = vsel %vm475, %v286, 0
        %v1152 = vsel %vm475, %v287, 0
        %v1155 = vsel %vm475, %v288, 0
        %v1158 = vsel %vm475, %v289, 0
        %v1161 = vsel %vm475, %v290, 0
        %v1164 = vsel %vm475, %v291, 0
        %v1167 = vsel %vm475, %v292, 0
        %v1170 = vsel %vm475, %v293, 0
        %v1173 = vsel %vm475, %v294, 0
        %v1176 = vsel %vm475, %v295, 0
        %v1179 = vsel %vm475, %v296, 0
        %v1182 = vsel %vm475, %v297, 0
        %v1185 = vsel %vm475, %v298, 0
        %v1188 = vsel %vm475, %v299, 0
        %v1191 = vsel %vm475, %v300, 0
        %v1194 = vsel %vm475, %v301, 0
        %v1197 = vsel %vm475, %v302, 0
        %v1200 = vsel %vm475, %v303, 0
        %v1203 = vsel %vm475, %v304, 0
        %v1206 = vsel %vm475, %v305, 0
        %v1209 = vsel %vm475, %v306, 0
        %v1212 = vsel %vm475, %v307, 0
        %v1215 = vsel %vm475, %v308, 0
        %v1218 = vsel %vm475, %v309, 0
        %v1221 = vsel %vm475, %v310, 0
        %v1224 = vsel %vm572, %v1126, 0
        %1226 = vmatprep.subr.mxu0 0.0
        %1227 = vmatpush1.msra.mxu0 %v1224
        %1228 = vmatprep.subr.mxu0 0.0
        %1229 = vmatpush1.msra.mxu0 0.0
        %1230 = vmatprep.subr.mxu0 0.0
        %1231 = vmatpush1.msra.mxu0 0.0
        %1232 = vmatprep.subr.mxu0 0.0
        %1233 = vmatpush1.msra.mxu0 0.0
        %1234 = vmatprep.subr.mxu0 0.0
        %1235 = vmatpush1.msra.mxu0 0.0
        %1236 = vmatprep.subr.mxu0 0.0
        %1237 = vmatpush1.msra.mxu0 0.0
        %1238 = vmatprep.subr.mxu0 0.0
        %1239 = vmatpush1.msra.mxu0 0.0
        %1240 = vmatprep.subr.mxu0 0.0
        %1241 = vmatpush1.msra.mxu0 0.0
        %1242 = vmatprep.subr.mxu0 0.0
        %1243 = vmatpush1.msra.mxu0 0.0
        %1244 = vmatprep.subr.mxu0 0.0
        %1245 = vmatpush1.msra.mxu0 0.0
        %1246 = vmatprep.subr.mxu0 0.0
        %1247 = vmatpush1.msra.mxu0 0.0
        %1248 = vmatprep.subr.mxu0 0.0
        %1249 = vmatpush1.msra.mxu0 0.0
        %1250 = vmatprep.subr.mxu0 0.0
        %1251 = vmatpush1.msra.mxu0 0.0
        %1252 = vmatprep.subr.mxu0 0.0
        %1253 = vmatpush1.msra.mxu0 0.0
        %1254 = vmatprep.subr.mxu0 0.0
        %1255 = vmatpush1.msra.mxu0 0.0
        %1256 = vmatprep.subr.mxu0 0.0
        %1257 = vmatpush1.msra.mxu0 0.0
        %1258 = vmatprep.subr.mxu0 0.0
        %1259 = vmatpush1.msra.mxu0 0.0
        %1260 = vmatprep.subr.mxu0 0.0
        %1261 = vmatpush1.msra.mxu0 0.0
        %1262 = vmatprep.subr.mxu0 0.0
        %1263 = vmatpush1.msra.mxu0 0.0
        %1264 = vmatprep.subr.mxu0 0.0
        %1265 = vmatpush1.msra.mxu0 0.0
        %1266 = vmatprep.subr.mxu0 0.0
        %1267 = vmatpush1.msra.mxu0 0.0
        %1268 = vmatprep.subr.mxu0 0.0
        %1269 = vmatpush1.msra.mxu0 0.0
        %1270 = vmatprep.subr.mxu0 0.0
        %1271 = vmatpush1.msra.mxu0 0.0
        %1272 = vmatprep.subr.mxu0 0.0
        %1273 = vmatpush1.msra.mxu0 0.0
        %1274 = vmatprep.subr.mxu0 0.0
        %1275 = vmatpush1.msra.mxu0 0.0
        %1276 = vmatprep.subr.mxu0 0.0
        %1277 = vmatpush1.msra.mxu0 0.0
        %1278 = vmatprep.subr.mxu0 0.0
        %1279 = vmatpush1.msra.mxu0 0.0
        %1280 = vmatprep.subr.mxu0 0.0
        %1281 = vmatpush1.msra.mxu0 0.0
        %1282 = vmatprep.subr.mxu0 0.0
        %1283 = vmatpush1.msra.mxu0 0.0
        %1284 = vmatprep.subr.mxu0 0.0
        %1285 = vmatpush1.msra.mxu0 0.0
        %1286 = vmatprep.subr.mxu0 0.0
        %1287 = vmatpush1.msra.mxu0 0.0
        %1288 = vmatprep.subr.mxu0 0.0
        %1289 = vmatpush1.msra.mxu0 0.0
        %1290 = vmatprep.mubr.f32.mxu0 0.0
        %1291 = vmatmul.mubr.f32.gmra.mrb[0].mxu0 %v1128
        %v1292 = vpop.f32.mrb[0].mxu0
        %v1293 = vadd.f32 0.0, %v1292
        %v1294 = vpop.f32.mrb[0].mxu0
        %1295 = vmatprep.mubr.f32.mxu0 0.0
        %1296 = vmatmul.mubr.f32.gmra.mrb[0].mxu0 %v1131
        %v1297 = vpop.f32.mrb[0].mxu0
        %v1298 = vadd.f32 0.0, %v1297
        %v1299 = vpop.f32.mrb[0].mxu0
        %1300 = vmatprep.mubr.f32.mxu0 0.0
        %1301 = vmatmul.mubr.f32.gmra.mrb[0].mxu0 %v1134
        %v1302 = vpop.f32.mrb[0].mxu0
        %v1303 = vadd.f32 0.0, %v1302
        %v1304 = vpop.f32.mrb[0].mxu0
        %1305 = vmatprep.mubr.f32.mxu0 0.0
        %1306 = vmatmul.mubr.f32.gmra.mrb[0].mxu0 %v1137
        %v1307 = vpop.f32.mrb[0].mxu0
        %v1308 = vadd.f32 0.0, %v1307
        %v1309 = vpop.f32.mrb[0].mxu0
        %1310 = vmatprep.mubr.f32.mxu0 0.0
        %1311 = vmatmul.mubr.f32.gmra.mrb[0].mxu0 %v1140
        %v1312 = vpop.f32.mrb[0].mxu0
        %v1313 = vadd.f32 0.0, %v1312
        %v1314 = vpop.f32.mrb[0].mxu0
        %1315 = vmatprep.mubr.f32.mxu0 0.0
        %1316 = vmatmul.mubr.f32.gmra.mrb[0].mxu0 %v1143
        %v1317 = vpop.f32.mrb[0].mxu0
        %v1318 = vadd.f32 0.0, %v1317
        %v1319 = vpop.f32.mrb[0].mxu0
        %1320 = vmatprep.mubr.f32.mxu0 0.0
        %1321 = vmatmul.mubr.f32.gmra.mrb[0].mxu0 %v1146
        %v1322 = vpop.f32.mrb[0].mxu0
        %v1323 = vadd.f32 0.0, %v1322
        %v1324 = vpop.f32.mrb[0].mxu0
        %1325 = vmatprep.mubr.f32.mxu0 0.0
        %1326 = vmatmul.mubr.f32.gmra.mrb[0].mxu0 %v1149
        %v1327 = vpop.f32.mrb[0].mxu0
        %v1328 = vadd.f32 0.0, %v1327
        %v1329 = vpop.f32.mrb[0].mxu0
        %1330 = vmatprep.mubr.f32.mxu0 0.0
        %1331 = vmatmul.mubr.f32.gmra.mrb[0].mxu0 %v1152
        %v1332 = vpop.f32.mrb[0].mxu0
        %v1333 = vadd.f32 0.0, %v1332
        %v1334 = vpop.f32.mrb[0].mxu0
        %1335 = vmatprep.mubr.f32.mxu0 0.0
        %1336 = vmatmul.mubr.f32.gmra.mrb[0].mxu0 %v1155
        %v1337 = vpop.f32.mrb[0].mxu0
        %v1338 = vadd.f32 0.0, %v1337
        %v1339 = vpop.f32.mrb[0].mxu0
        %1340 = vmatprep.mubr.f32.mxu0 0.0
        %1341 = vmatmul.mubr.f32.gmra.mrb[0].mxu0 %v1158
        %v1342 = vpop.f32.mrb[0].mxu0
        %v1343 = vadd.f32 0.0, %v1342
        %v1344 = vpop.f32.mrb[0].mxu0
        %1345 = vmatprep.mubr.f32.mxu0 0.0
        %1346 = vmatmul.mubr.f32.gmra.mrb[0].mxu0 %v1161
        %v1347 = vpop.f32.mrb[0].mxu0
        %v1348 = vadd.f32 0.0, %v1347
        %v1349 = vpop.f32.mrb[0].mxu0
        %1350 = vmatprep.mubr.f32.mxu0 0.0
        %1351 = vmatmul.mubr.f32.gmra.mrb[0].mxu0 %v1164
        %v1352 = vpop.f32.mrb[0].mxu0
        %v1353 = vadd.f32 0.0, %v1352
        %v1354 = vpop.f32.mrb[0].mxu0
        %1355 = vmatprep.mubr.f32.mxu0 0.0
        %1356 = vmatmul.mubr.f32.gmra.mrb[0].mxu0 %v1167
        %v1357 = vpop.f32.mrb[0].mxu0
        %v1358 = vadd.f32 0.0, %v1357
        %v1359 = vpop.f32.mrb[0].mxu0
        %1360 = vmatprep.mubr.f32.mxu0 0.0
        %1361 = vmatmul.mubr.f32.gmra.mrb[0].mxu0 %v1170
        %v1362 = vpop.f32.mrb[0].mxu0
        %v1363 = vadd.f32 0.0, %v1362
        %v1364 = vpop.f32.mrb[0].mxu0
        %1365 = vmatprep.mubr.f32.mxu0 0.0
        %1366 = vmatmul.mubr.f32.gmra.mrb[0].mxu0 %v1173
        %v1367 = vpop.f32.mrb[0].mxu0
        %v1368 = vadd.f32 0.0, %v1367
        %v1369 = vpop.f32.mrb[0].mxu0
        %1370 = vmatprep.mubr.f32.mxu0 0.0
        %1371 = vmatmul.mubr.f32.gmra.mrb[0].mxu0 %v1176
        %v1372 = vpop.f32.mrb[0].mxu0
        %v1373 = vadd.f32 0.0, %v1372
        %v1374 = vpop.f32.mrb[0].mxu0
        %1375 = vmatprep.mubr.f32.mxu0 0.0
        %1376 = vmatmul.mubr.f32.gmra.mrb[0].mxu0 %v1179
        %v1377 = vpop.f32.mrb[0].mxu0
        %v1378 = vadd.f32 0.0, %v1377
        %v1379 = vpop.f32.mrb[0].mxu0
        %1380 = vmatprep.mubr.f32.mxu0 0.0
        %1381 = vmatmul.mubr.f32.gmra.mrb[0].mxu0 %v1182
        %v1382 = vpop.f32.mrb[0].mxu0
        %v1383 = vadd.f32 0.0, %v1382
        %v1384 = vpop.f32.mrb[0].mxu0
        %1385 = vmatprep.mubr.f32.mxu0 0.0
        %1386 = vmatmul.mubr.f32.gmra.mrb[0].mxu0 %v1185
        %v1387 = vpop.f32.mrb[0].mxu0
        %v1388 = vadd.f32 0.0, %v1387
        %v1389 = vpop.f32.mrb[0].mxu0
        %1390 = vmatprep.mubr.f32.mxu0 0.0
        %1391 = vmatmul.mubr.f32.gmra.mrb[0].mxu0 %v1188
        %v1392 = vpop.f32.mrb[0].mxu0
        %v1393 = vadd.f32 0.0, %v1392
        %v1394 = vpop.f32.mrb[0].mxu0
        %1395 = vmatprep.mubr.f32.mxu0 0.0
        %1396 = vmatmul.mubr.f32.gmra.mrb[0].mxu0 %v1191
        %v1397 = vpop.f32.mrb[0].mxu0
        %v1398 = vadd.f32 0.0, %v1397
        %v1399 = vpop.f32.mrb[0].mxu0
        %1400 = vmatprep.mubr.f32.mxu0 0.0
        %1401 = vmatmul.mubr.f32.gmra.mrb[0].mxu0 %v1194
        %v1402 = vpop.f32.mrb[0].mxu0
        %v1403 = vadd.f32 0.0, %v1402
        %v1404 = vpop.f32.mrb[0].mxu0
        %1405 = vmatprep.mubr.f32.mxu0 0.0
        %1406 = vmatmul.mubr.f32.gmra.mrb[0].mxu0 %v1197
        %v1407 = vpop.f32.mrb[0].mxu0
        %v1408 = vadd.f32 0.0, %v1407
        %v1409 = vpop.f32.mrb[0].mxu0
        %1410 = vmatprep.mubr.f32.mxu0 0.0
        %1411 = vmatmul.mubr.f32.gmra.mrb[0].mxu0 %v1200
        %v1412 = vpop.f32.mrb[0].mxu0
        %v1413 = vadd.f32 0.0, %v1412
        %v1414 = vpop.f32.mrb[0].mxu0
        %1415 = vmatprep.mubr.f32.mxu0 0.0
        %1416 = vmatmul.mubr.f32.gmra.mrb[0].mxu0 %v1203
        %v1417 = vpop.f32.mrb[0].mxu0
        %v1418 = vadd.f32 0.0, %v1417
        %v1419 = vpop.f32.mrb[0].mxu0
        %1420 = vmatprep.mubr.f32.mxu0 0.0
        %1421 = vmatmul.mubr.f32.gmra.mrb[0].mxu0 %v1206
        %v1422 = vpop.f32.mrb[0].mxu0
        %v1423 = vadd.f32 0.0, %v1422
        %v1424 = vpop.f32.mrb[0].mxu0
        %1425 = vmatprep.mubr.f32.mxu0 0.0
        %1426 = vmatmul.mubr.f32.gmra.mrb[0].mxu0 %v1209
        %v1427 = vpop.f32.mrb[0].mxu0
        %v1428 = vadd.f32 0.0, %v1427
        %v1429 = vpop.f32.mrb[0].mxu0
        %1430 = vmatprep.mubr.f32.mxu0 0.0
        %1431 = vmatmul.mubr.f32.gmra.mrb[0].mxu0 %v1212
        %v1432 = vpop.f32.mrb[0].mxu0
        %v1433 = vadd.f32 0.0, %v1432
        %v1434 = vpop.f32.mrb[0].mxu0
        %1435 = vmatprep.mubr.f32.mxu0 0.0
        %1436 = vmatmul.mubr.f32.gmra.mrb[0].mxu0 %v1215
        %v1437 = vpop.f32.mrb[0].mxu0
        %v1438 = vadd.f32 0.0, %v1437
        %v1439 = vpop.f32.mrb[0].mxu0
        %1440 = vmatprep.mubr.f32.mxu0 0.0
        %1441 = vmatmul.mubr.f32.gmra.mrb[0].mxu0 %v1218
        %v1442 = vpop.f32.mrb[0].mxu0
        %v1443 = vadd.f32 0.0, %v1442
        %v1444 = vpop.f32.mrb[0].mxu0
        %1445 = vmatprep.mubr.f32.mxu0 0.0
        %1446 = vmatmul.mubr.f32.gmra.mrb[0].mxu0 %v1221
        %v1447 = vpop.f32.mrb[0].mxu0
        %v1448 = vadd.f32 0.0, %v1447
        %v1449 = vpop.f32.mrb[0].mxu0
        %1450 = vdwg.mxu0
        %v1451 = vadd.f32 %v967, %v1293
        %v1452 = vadd.f32 %v972, %v1298
        %v1453 = vadd.f32 %v977, %v1303
        %v1454 = vadd.f32 %v982, %v1308
        %v1455 = vadd.f32 %v987, %v1313
        %v1456 = vadd.f32 %v992, %v1318
        %v1457 = vadd.f32 %v997, %v1323
        %v1458 = vadd.f32 %v1002, %v1328
        %v1459 = vadd.f32 %v1007, %v1333
        %v1460 = vadd.f32 %v1012, %v1338
        %v1461 = vadd.f32 %v1017, %v1343
        %v1462 = vadd.f32 %v1022, %v1348
        %v1463 = vadd.f32 %v1027, %v1353
        %v1464 = vadd.f32 %v1032, %v1358
        %v1465 = vadd.f32 %v1037, %v1363
        %v1466 = vadd.f32 %v1042, %v1368
        %v1467 = vadd.f32 %v1047, %v1373
        %v1468 = vadd.f32 %v1052, %v1378
        %v1469 = vadd.f32 %v1057, %v1383
        %v1470 = vadd.f32 %v1062, %v1388
        %v1471 = vadd.f32 %v1067, %v1393
        %v1472 = vadd.f32 %v1072, %v1398
        %v1473 = vadd.f32 %v1077, %v1403
        %v1474 = vadd.f32 %v1082, %v1408
        %v1475 = vadd.f32 %v1087, %v1413
        %v1476 = vadd.f32 %v1092, %v1418
        %v1477 = vadd.f32 %v1097, %v1423
        %v1478 = vadd.f32 %v1102, %v1428
        %v1479 = vadd.f32 %v1107, %v1433
        %v1480 = vadd.f32 %v1112, %v1438
        %v1481 = vadd.f32 %v1117, %v1443
        %v1482 = vadd.f32 %v1122, %v1448
        %s1483 = scalar_lea.vmem %s1, 12
        %v1484 = vld [vmem:[%s1483] sm:$0xf]
        %v1486 = vsel %vm475, %v311, 0
        %v1489 = vsel %vm475, %v312, 0
        %v1492 = vsel %vm475, %v313, 0
        %v1495 = vsel %vm475, %v314, 0
        %v1498 = vsel %vm475, %v315, 0
        %v1501 = vsel %vm475, %v316, 0
        %v1504 = vsel %vm475, %v317, 0
        %v1507 = vsel %vm475, %v318, 0
        %v1510 = vsel %vm475, %v319, 0
        %v1513 = vsel %vm475, %v320, 0
        %v1516 = vsel %vm475, %v321, 0
        %v1519 = vsel %vm475, %v322, 0
        %v1522 = vsel %vm475, %v323, 0
        %v1525 = vsel %vm475, %v324, 0
        %v1528 = vsel %vm475, %v325, 0
        %v1531 = vsel %vm475, %v326, 0
        %v1534 = vsel %vm475, %v327, 0
        %v1537 = vsel %vm475, %v328, 0
        %v1540 = vsel %vm475, %v329, 0
        %v1543 = vsel %vm475, %v330, 0
        %v1546 = vsel %vm475, %v331, 0
        %v1549 = vsel %vm475, %v332, 0
        %v1552 = vsel %vm475, %v333, 0
        %v1555 = vsel %vm475, %v334, 0
        %v1558 = vsel %vm475, %v335, 0
        %v1561 = vsel %vm475, %v336, 0
        %v1564 = vsel %vm475, %v337, 0
        %v1567 = vsel %vm475, %v338, 0
        %v1570 = vsel %vm475, %v339, 0
        %v1573 = vsel %vm475, %v340, 0
        %v1576 = vsel %vm475, %v341, 0
        %v1579 = vsel %vm475, %v342, 0
        %v1582 = vsel %vm572, %v1484, 0
        %1584 = vmatprep.subr.mxu0 0.0
        %1585 = vmatpush1.msra.mxu0 %v1582
        %1586 = vmatprep.subr.mxu0 0.0
        %1587 = vmatpush1.msra.mxu0 0.0
        %1588 = vmatprep.subr.mxu0 0.0
        %1589 = vmatpush1.msra.mxu0 0.0
        %1590 = vmatprep.subr.mxu0 0.0
        %1591 = vmatpush1.msra.mxu0 0.0
        %1592 = vmatprep.subr.mxu0 0.0
        %1593 = vmatpush1.msra.mxu0 0.0
        %1594 = vmatprep.subr.mxu0 0.0
        %1595 = vmatpush1.msra.mxu0 0.0
        %1596 = vmatprep.subr.mxu0 0.0
        %1597 = vmatpush1.msra.mxu0 0.0
        %1598 = vmatprep.subr.mxu0 0.0
        %1599 = vmatpush1.msra.mxu0 0.0
        %1600 = vmatprep.subr.mxu0 0.0
        %1601 = vmatpush1.msra.mxu0 0.0
        %1602 = vmatprep.subr.mxu0 0.0
        %1603 = vmatpush1.msra.mxu0 0.0
        %1604 = vmatprep.subr.mxu0 0.0
        %1605 = vmatpush1.msra.mxu0 0.0
        %1606 = vmatprep.subr.mxu0 0.0
        %1607 = vmatpush1.msra.mxu0 0.0
        %1608 = vmatprep.subr.mxu0 0.0
        %1609 = vmatpush1.msra.mxu0 0.0
        %1610 = vmatprep.subr.mxu0 0.0
        %1611 = vmatpush1.msra.mxu0 0.0
        %1612 = vmatprep.subr.mxu0 0.0
        %1613 = vmatpush1.msra.mxu0 0.0
        %1614 = vmatprep.subr.mxu0 0.0
        %1615 = vmatpush1.msra.mxu0 0.0
        %1616 = vmatprep.subr.mxu0 0.0
        %1617 = vmatpush1.msra.mxu0 0.0
        %1618 = vmatprep.subr.mxu0 0.0
        %1619 = vmatpush1.msra.mxu0 0.0
        %1620 = vmatprep.subr.mxu0 0.0
        %1621 = vmatpush1.msra.mxu0 0.0
        %1622 = vmatprep.subr.mxu0 0.0
        %1623 = vmatpush1.msra.mxu0 0.0
        %1624 = vmatprep.subr.mxu0 0.0
        %1625 = vmatpush1.msra.mxu0 0.0
        %1626 = vmatprep.subr.mxu0 0.0
        %1627 = vmatpush1.msra.mxu0 0.0
        %1628 = vmatprep.subr.mxu0 0.0
        %1629 = vmatpush1.msra.mxu0 0.0
        %1630 = vmatprep.subr.mxu0 0.0
        %1631 = vmatpush1.msra.mxu0 0.0
        %1632 = vmatprep.subr.mxu0 0.0
        %1633 = vmatpush1.msra.mxu0 0.0
        %1634 = vmatprep.subr.mxu0 0.0
        %1635 = vmatpush1.msra.mxu0 0.0
        %1636 = vmatprep.subr.mxu0 0.0
        %1637 = vmatpush1.msra.mxu0 0.0
        %1638 = vmatprep.subr.mxu0 0.0
        %1639 = vmatpush1.msra.mxu0 0.0
        %1640 = vmatprep.subr.mxu0 0.0
        %1641 = vmatpush1.msra.mxu0 0.0
        %1642 = vmatprep.subr.mxu0 0.0
        %1643 = vmatpush1.msra.mxu0 0.0
        %1644 = vmatprep.subr.mxu0 0.0
        %1645 = vmatpush1.msra.mxu0 0.0
        %1646 = vmatprep.subr.mxu0 0.0
        %1647 = vmatpush1.msra.mxu0 0.0
        %1648 = vmatprep.mubr.f32.mxu0 0.0
        %1649 = vmatmul.mubr.f32.gmra.mrb[0].mxu0 %v1486
        %v1650 = vpop.f32.mrb[0].mxu0
        %v1651 = vadd.f32 0.0, %v1650
        %v1652 = vpop.f32.mrb[0].mxu0
        %1653 = vmatprep.mubr.f32.mxu0 0.0
        %1654 = vmatmul.mubr.f32.gmra.mrb[0].mxu0 %v1489
        %v1655 = vpop.f32.mrb[0].mxu0
        %v1656 = vadd.f32 0.0, %v1655
        %v1657 = vpop.f32.mrb[0].mxu0
        %1658 = vmatprep.mubr.f32.mxu0 0.0
        %1659 = vmatmul.mubr.f32.gmra.mrb[0].mxu0 %v1492
        %v1660 = vpop.f32.mrb[0].mxu0
        %v1661 = vadd.f32 0.0, %v1660
        %v1662 = vpop.f32.mrb[0].mxu0
        %1663 = vmatprep.mubr.f32.mxu0 0.0
        %1664 = vmatmul.mubr.f32.gmra.mrb[0].mxu0 %v1495
        %v1665 = vpop.f32.mrb[0].mxu0
        %v1666 = vadd.f32 0.0, %v1665
        %v1667 = vpop.f32.mrb[0].mxu0
        %1668 = vmatprep.mubr.f32.mxu0 0.0
        %1669 = vmatmul.mubr.f32.gmra.mrb[0].mxu0 %v1498
        %v1670 = vpop.f32.mrb[0].mxu0
        %v1671 = vadd.f32 0.0, %v1670
        %v1672 = vpop.f32.mrb[0].mxu0
        %1673 = vmatprep.mubr.f32.mxu0 0.0
        %1674 = vmatmul.mubr.f32.gmra.mrb[0].mxu0 %v1501
        %v1675 = vpop.f32.mrb[0].mxu0
        %v1676 = vadd.f32 0.0, %v1675
        %v1677 = vpop.f32.mrb[0].mxu0
        %1678 = vmatprep.mubr.f32.mxu0 0.0
        %1679 = vmatmul.mubr.f32.gmra.mrb[0].mxu0 %v1504
        %v1680 = vpop.f32.mrb[0].mxu0
        %v1681 = vadd.f32 0.0, %v1680
        %v1682 = vpop.f32.mrb[0].mxu0
        %1683 = vmatprep.mubr.f32.mxu0 0.0
        %1684 = vmatmul.mubr.f32.gmra.mrb[0].mxu0 %v1507
        %v1685 = vpop.f32.mrb[0].mxu0
        %v1686 = vadd.f32 0.0, %v1685
        %v1687 = vpop.f32.mrb[0].mxu0
        %1688 = vmatprep.mubr.f32.mxu0 0.0
        %1689 = vmatmul.mubr.f32.gmra.mrb[0].mxu0 %v1510
        %v1690 = vpop.f32.mrb[0].mxu0
        %v1691 = vadd.f32 0.0, %v1690
        %v1692 = vpop.f32.mrb[0].mxu0
        %1693 = vmatprep.mubr.f32.mxu0 0.0
        %1694 = vmatmul.mubr.f32.gmra.mrb[0].mxu0 %v1513
        %v1695 = vpop.f32.mrb[0].mxu0
        %v1696 = vadd.f32 0.0, %v1695
        %v1697 = vpop.f32.mrb[0].mxu0
        %1698 = vmatprep.mubr.f32.mxu0 0.0
        %1699 = vmatmul.mubr.f32.gmra.mrb[0].mxu0 %v1516
        %v1700 = vpop.f32.mrb[0].mxu0
        %v1701 = vadd.f32 0.0, %v1700
        %v1702 = vpop.f32.mrb[0].mxu0
        %1703 = vmatprep.mubr.f32.mxu0 0.0
        %1704 = vmatmul.mubr.f32.gmra.mrb[0].mxu0 %v1519
        %v1705 = vpop.f32.mrb[0].mxu0
        %v1706 = vadd.f32 0.0, %v1705
        %v1707 = vpop.f32.mrb[0].mxu0
        %1708 = vmatprep.mubr.f32.mxu0 0.0
        %1709 = vmatmul.mubr.f32.gmra.mrb[0].mxu0 %v1522
        %v1710 = vpop.f32.mrb[0].mxu0
        %v1711 = vadd.f32 0.0, %v1710
        %v1712 = vpop.f32.mrb[0].mxu0
        %1713 = vmatprep.mubr.f32.mxu0 0.0
        %1714 = vmatmul.mubr.f32.gmra.mrb[0].mxu0 %v1525
        %v1715 = vpop.f32.mrb[0].mxu0
        %v1716 = vadd.f32 0.0, %v1715
        %v1717 = vpop.f32.mrb[0].mxu0
        %1718 = vmatprep.mubr.f32.mxu0 0.0
        %1719 = vmatmul.mubr.f32.gmra.mrb[0].mxu0 %v1528
        %v1720 = vpop.f32.mrb[0].mxu0
        %v1721 = vadd.f32 0.0, %v1720
        %v1722 = vpop.f32.mrb[0].mxu0
        %1723 = vmatprep.mubr.f32.mxu0 0.0
        %1724 = vmatmul.mubr.f32.gmra.mrb[0].mxu0 %v1531
        %v1725 = vpop.f32.mrb[0].mxu0
        %v1726 = vadd.f32 0.0, %v1725
        %v1727 = vpop.f32.mrb[0].mxu0
        %1728 = vmatprep.mubr.f32.mxu0 0.0
        %1729 = vmatmul.mubr.f32.gmra.mrb[0].mxu0 %v1534
        %v1730 = vpop.f32.mrb[0].mxu0
        %v1731 = vadd.f32 0.0, %v1730
        %v1732 = vpop.f32.mrb[0].mxu0
        %1733 = vmatprep.mubr.f32.mxu0 0.0
        %1734 = vmatmul.mubr.f32.gmra.mrb[0].mxu0 %v1537
        %v1735 = vpop.f32.mrb[0].mxu0
        %v1736 = vadd.f32 0.0, %v1735
        %v1737 = vpop.f32.mrb[0].mxu0
        %1738 = vmatprep.mubr.f32.mxu0 0.0
        %1739 = vmatmul.mubr.f32.gmra.mrb[0].mxu0 %v1540
        %v1740 = vpop.f32.mrb[0].mxu0
        %v1741 = vadd.f32 0.0, %v1740
        %v1742 = vpop.f32.mrb[0].mxu0
        %1743 = vmatprep.mubr.f32.mxu0 0.0
        %1744 = vmatmul.mubr.f32.gmra.mrb[0].mxu0 %v1543
        %v1745 = vpop.f32.mrb[0].mxu0
        %v1746 = vadd.f32 0.0, %v1745
        %v1747 = vpop.f32.mrb[0].mxu0
        %1748 = vmatprep.mubr.f32.mxu0 0.0
        %1749 = vmatmul.mubr.f32.gmra.mrb[0].mxu0 %v1546
        %v1750 = vpop.f32.mrb[0].mxu0
        %v1751 = vadd.f32 0.0, %v1750
        %v1752 = vpop.f32.mrb[0].mxu0
        %1753 = vmatprep.mubr.f32.mxu0 0.0
        %1754 = vmatmul.mubr.f32.gmra.mrb[0].mxu0 %v1549
        %v1755 = vpop.f32.mrb[0].mxu0
        %v1756 = vadd.f32 0.0, %v1755
        %v1757 = vpop.f32.mrb[0].mxu0
        %1758 = vmatprep.mubr.f32.mxu0 0.0
        %1759 = vmatmul.mubr.f32.gmra.mrb[0].mxu0 %v1552
        %v1760 = vpop.f32.mrb[0].mxu0
        %v1761 = vadd.f32 0.0, %v1760
        %v1762 = vpop.f32.mrb[0].mxu0
        %1763 = vmatprep.mubr.f32.mxu0 0.0
        %1764 = vmatmul.mubr.f32.gmra.mrb[0].mxu0 %v1555
        %v1765 = vpop.f32.mrb[0].mxu0
        %v1766 = vadd.f32 0.0, %v1765
        %v1767 = vpop.f32.mrb[0].mxu0
        %1768 = vmatprep.mubr.f32.mxu0 0.0
        %1769 = vmatmul.mubr.f32.gmra.mrb[0].mxu0 %v1558
        %v1770 = vpop.f32.mrb[0].mxu0
        %v1771 = vadd.f32 0.0, %v1770
        %v1772 = vpop.f32.mrb[0].mxu0
        %1773 = vmatprep.mubr.f32.mxu0 0.0
        %1774 = vmatmul.mubr.f32.gmra.mrb[0].mxu0 %v1561
        %v1775 = vpop.f32.mrb[0].mxu0
        %v1776 = vadd.f32 0.0, %v1775
        %v1777 = vpop.f32.mrb[0].mxu0
        %1778 = vmatprep.mubr.f32.mxu0 0.0
        %1779 = vmatmul.mubr.f32.gmra.mrb[0].mxu0 %v1564
        %v1780 = vpop.f32.mrb[0].mxu0
        %v1781 = vadd.f32 0.0, %v1780
        %v1782 = vpop.f32.mrb[0].mxu0
        %1783 = vmatprep.mubr.f32.mxu0 0.0
        %1784 = vmatmul.mubr.f32.gmra.mrb[0].mxu0 %v1567
        %v1785 = vpop.f32.mrb[0].mxu0
        %v1786 = vadd.f32 0.0, %v1785
        %v1787 = vpop.f32.mrb[0].mxu0
        %1788 = vmatprep.mubr.f32.mxu0 0.0
        %1789 = vmatmul.mubr.f32.gmra.mrb[0].mxu0 %v1570
        %v1790 = vpop.f32.mrb[0].mxu0
        %v1791 = vadd.f32 0.0, %v1790
        %v1792 = vpop.f32.mrb[0].mxu0
        %1793 = vmatprep.mubr.f32.mxu0 0.0
        %1794 = vmatmul.mubr.f32.gmra.mrb[0].mxu0 %v1573
        %v1795 = vpop.f32.mrb[0].mxu0
        %v1796 = vadd.f32 0.0, %v1795
        %v1797 = vpop.f32.mrb[0].mxu0
        %1798 = vmatprep.mubr.f32.mxu0 0.0
        %1799 = vmatmul.mubr.f32.gmra.mrb[0].mxu0 %v1576
        %v1800 = vpop.f32.mrb[0].mxu0
        %v1801 = vadd.f32 0.0, %v1800
        %v1802 = vpop.f32.mrb[0].mxu0
        %1803 = vmatprep.mubr.f32.mxu0 0.0
        %1804 = vmatmul.mubr.f32.gmra.mrb[0].mxu0 %v1579
        %v1805 = vpop.f32.mrb[0].mxu0
        %v1806 = vadd.f32 0.0, %v1805
        %v1807 = vpop.f32.mrb[0].mxu0
        %1808 = vdwg.mxu0
        %v1809 = vadd.f32 %v1451, %v1651
        %v1810 = vadd.f32 %v1452, %v1656
        %v1811 = vadd.f32 %v1453, %v1661
        %v1812 = vadd.f32 %v1454, %v1666
        %v1813 = vadd.f32 %v1455, %v1671
        %v1814 = vadd.f32 %v1456, %v1676
        %v1815 = vadd.f32 %v1457, %v1681
        %v1816 = vadd.f32 %v1458, %v1686
        %v1817 = vadd.f32 %v1459, %v1691
        %v1818 = vadd.f32 %v1460, %v1696
        %v1819 = vadd.f32 %v1461, %v1701
        %v1820 = vadd.f32 %v1462, %v1706
        %v1821 = vadd.f32 %v1463, %v1711
        %v1822 = vadd.f32 %v1464, %v1716
        %v1823 = vadd.f32 %v1465, %v1721
        %v1824 = vadd.f32 %v1466, %v1726
        %v1825 = vadd.f32 %v1467, %v1731
        %v1826 = vadd.f32 %v1468, %v1736
        %v1827 = vadd.f32 %v1469, %v1741
        %v1828 = vadd.f32 %v1470, %v1746
        %v1829 = vadd.f32 %v1471, %v1751
        %v1830 = vadd.f32 %v1472, %v1756
        %v1831 = vadd.f32 %v1473, %v1761
        %v1832 = vadd.f32 %v1474, %v1766
        %v1833 = vadd.f32 %v1475, %v1771
        %v1834 = vadd.f32 %v1476, %v1776
        %v1835 = vadd.f32 %v1477, %v1781
        %v1836 = vadd.f32 %v1478, %v1786
        %v1837 = vadd.f32 %v1479, %v1791
        %v1838 = vadd.f32 %v1480, %v1796
        %v1839 = vadd.f32 %v1481, %v1801
        %v1840 = vadd.f32 %v1482, %v1806
        %vm1841 = vcmask 64512
        %1842 = vst.msk [vmem:[%s181] sm:$0xff] %vm1841, %v1809
        %1843 = vst.msk [vmem:[%s181 + $0x8] sm:$0xff] %vm1841, %v1810
        %1844 = vst.msk [vmem:[%s181 + $0x10] sm:$0xff] %vm1841, %v1811
        %1845 = vst.msk [vmem:[%s181 + $0x18] sm:$0xff] %vm1841, %v1812
        %1846 = vst.msk [vmem:[%s181 + $0x20] sm:$0xff] %vm1841, %v1813
        %1847 = vst.msk [vmem:[%s181 + $0x28] sm:$0xff] %vm1841, %v1814
        %1848 = vst.msk [vmem:[%s181 + $0x30] sm:$0xff] %vm1841, %v1815
        %1849 = vst.msk [vmem:[%s181 + $0x38] sm:$0xff] %vm1841, %v1816
        %1850 = vst.msk [vmem:[%s181 + $0x40] sm:$0xff] %vm1841, %v1817
        %1851 = vst.msk [vmem:[%s181 + $0x48] sm:$0xff] %vm1841, %v1818
        %1852 = vst.msk [vmem:[%s181 + $0x50] sm:$0xff] %vm1841, %v1819
        %1853 = vst.msk [vmem:[%s181 + $0x58] sm:$0xff] %vm1841, %v1820
        %1854 = vst.msk [vmem:[%s181 + $0x60] sm:$0xff] %vm1841, %v1821
        %1855 = vst.msk [vmem:[%s181 + $0x68] sm:$0xff] %vm1841, %v1822
        %1856 = vst.msk [vmem:[%s181 + $0x70] sm:$0xff] %vm1841, %v1823
        %1857 = vst.msk [vmem:[%s181 + $0x78] sm:$0xff] %vm1841, %v1824
        %1858 = vst.msk [vmem:[%s181 + $0x80] sm:$0xff] %vm1841, %v1825
        %1859 = vst.msk [vmem:[%s181 + $0x88] sm:$0xff] %vm1841, %v1826
        %1860 = vst.msk [vmem:[%s181 + $0x90] sm:$0xff] %vm1841, %v1827
        %1861 = vst.msk [vmem:[%s181 + $0x98] sm:$0xff] %vm1841, %v1828
        %1862 = vst.msk [vmem:[%s181 + $0xa0] sm:$0xff] %vm1841, %v1829
        %1863 = vst.msk [vmem:[%s181 + $0xa8] sm:$0xff] %vm1841, %v1830
        %1864 = vst.msk [vmem:[%s181 + $0xb0] sm:$0xff] %vm1841, %v1831
        %1865 = vst.msk [vmem:[%s181 + $0xb8] sm:$0xff] %vm1841, %v1832
        %1866 = vst.msk [vmem:[%s181 + $0xc0] sm:$0xff] %vm1841, %v1833
        %1867 = vst.msk [vmem:[%s181 + $0xc8] sm:$0xff] %vm1841, %v1834
        %1868 = vst.msk [vmem:[%s181 + $0xd0] sm:$0xff] %vm1841, %v1835
        %1869 = vst.msk [vmem:[%s181 + $0xd8] sm:$0xff] %vm1841, %v1836
        %1870 = vst.msk [vmem:[%s181 + $0xe0] sm:$0xff] %vm1841, %v1837
        %1871 = vst.msk [vmem:[%s181 + $0xe8] sm:$0xff] %vm1841, %v1838
        %1872 = vst.msk [vmem:[%s181 + $0xf0] sm:$0xff] %vm1841, %v1839
        %1873 = vst.msk [vmem:[%s181 + $0xf8] sm:$0xff] %vm1841, %v1840
        %v1874 = vsel %vm1841, %v1809, 0.0
        %v1875 = vsel %vm1841, %v1810, 0.0
        %v1876 = vadd.f32 %v1874, %v1875
        %v1877 = vsel %vm1841, %v1811, 0.0
        %v1878 = vadd.f32 %v1876, %v1877
        %v1879 = vsel %vm1841, %v1812, 0.0
        %v1880 = vadd.f32 %v1878, %v1879
        %v1881 = vsel %vm1841, %v1813, 0.0
        %v1882 = vadd.f32 %v1880, %v1881
        %v1883 = vsel %vm1841, %v1814, 0.0
        %v1884 = vadd.f32 %v1882, %v1883
        %v1885 = vsel %vm1841, %v1815, 0.0
        %v1886 = vadd.f32 %v1884, %v1885
        %v1887 = vsel %vm1841, %v1816, 0.0
        %v1888 = vadd.f32 %v1886, %v1887
        %v1889 = vsel %vm1841, %v1817, 0.0
        %v1890 = vadd.f32 %v1888, %v1889
        %v1891 = vsel %vm1841, %v1818, 0.0
        %v1892 = vadd.f32 %v1890, %v1891
        %v1893 = vsel %vm1841, %v1819, 0.0
        %v1894 = vadd.f32 %v1892, %v1893
        %v1895 = vsel %vm1841, %v1820, 0.0
        %v1896 = vadd.f32 %v1894, %v1895
        %v1897 = vsel %vm1841, %v1821, 0.0
        %v1898 = vadd.f32 %v1896, %v1897
        %v1899 = vsel %vm1841, %v1822, 0.0
        %v1900 = vadd.f32 %v1898, %v1899
        %v1901 = vsel %vm1841, %v1823, 0.0
        %v1902 = vadd.f32 %v1900, %v1901
        %v1903 = vsel %vm1841, %v1824, 0.0
        %v1904 = vadd.f32 %v1902, %v1903
        %v1905 = vsel %vm1841, %v1825, 0.0
        %v1906 = vadd.f32 %v1904, %v1905
        %v1907 = vsel %vm1841, %v1826, 0.0
        %v1908 = vadd.f32 %v1906, %v1907
        %v1909 = vsel %vm1841, %v1827, 0.0
        %v1910 = vadd.f32 %v1908, %v1909
        %v1911 = vsel %vm1841, %v1828, 0.0
        %v1912 = vadd.f32 %v1910, %v1911
        %v1913 = vsel %vm1841, %v1829, 0.0
        %v1914 = vadd.f32 %v1912, %v1913
        %v1915 = vsel %vm1841, %v1830, 0.0
        %v1916 = vadd.f32 %v1914, %v1915
        %v1917 = vsel %vm1841, %v1831, 0.0
        %v1918 = vadd.f32 %v1916, %v1917
        %v1919 = vsel %vm1841, %v1832, 0.0
        %v1920 = vadd.f32 %v1918, %v1919
        %v1921 = vsel %vm1841, %v1833, 0.0
        %v1922 = vadd.f32 %v1920, %v1921
        %v1923 = vsel %vm1841, %v1834, 0.0
        %v1924 = vadd.f32 %v1922, %v1923
        %v1925 = vsel %vm1841, %v1835, 0.0
        %v1926 = vadd.f32 %v1924, %v1925
        %v1927 = vsel %vm1841, %v1836, 0.0
        %v1928 = vadd.f32 %v1926, %v1927
        %v1929 = vsel %vm1841, %v1837, 0.0
        %v1930 = vadd.f32 %v1928, %v1929
        %v1931 = vsel %vm1841, %v1838, 0.0
        %v1932 = vadd.f32 %v1930, %v1931
        %v1933 = vsel %vm1841, %v1839, 0.0
        %v1934 = vadd.f32 %v1932, %v1933
        %v1935 = vsel %vm1841, %v1840, 0.0
        %v1936 = vadd.f32 %v1934, %v1935
        %v1937 = vrot.slane %v1936, 4
        %v1938 = vadd.f32 %v1936, %v1937
        %v1939 = vrot.slane %v1938, 2
        %v1940 = vadd.f32 %v1938, %v1939
        %v1941 = vrot.slane %v1940, 1
        %v1942 = vadd.f32 %v1940, %v1941
        %v1943 = vadd.f32 %v1942, 0.0
        %v1944 = vmul.f32 %v1809, %v1809
        %v1945 = vmul.f32 %v1810, %v1810
        %v1946 = vmul.f32 %v1811, %v1811
        %v1947 = vmul.f32 %v1812, %v1812
        %v1948 = vmul.f32 %v1813, %v1813
        %v1949 = vmul.f32 %v1814, %v1814
        %v1950 = vmul.f32 %v1815, %v1815
        %v1951 = vmul.f32 %v1816, %v1816
        %v1952 = vmul.f32 %v1817, %v1817
        %v1953 = vmul.f32 %v1818, %v1818
        %v1954 = vmul.f32 %v1819, %v1819
        %v1955 = vmul.f32 %v1820, %v1820
        %v1956 = vmul.f32 %v1821, %v1821
        %v1957 = vmul.f32 %v1822, %v1822
        %v1958 = vmul.f32 %v1823, %v1823
        %v1959 = vmul.f32 %v1824, %v1824
        %v1960 = vmul.f32 %v1825, %v1825
        %v1961 = vmul.f32 %v1826, %v1826
        %v1962 = vmul.f32 %v1827, %v1827
        %v1963 = vmul.f32 %v1828, %v1828
        %v1964 = vmul.f32 %v1829, %v1829
        %v1965 = vmul.f32 %v1830, %v1830
        %v1966 = vmul.f32 %v1831, %v1831
        %v1967 = vmul.f32 %v1832, %v1832
        %v1968 = vmul.f32 %v1833, %v1833
        %v1969 = vmul.f32 %v1834, %v1834
        %v1970 = vmul.f32 %v1835, %v1835
        %v1971 = vmul.f32 %v1836, %v1836
        %v1972 = vmul.f32 %v1837, %v1837
        %v1973 = vmul.f32 %v1838, %v1838
        %v1974 = vmul.f32 %v1839, %v1839
        %v1975 = vmul.f32 %v1840, %v1840
        %v1976 = vsel %vm1841, %v1944, 0.0
        %v1977 = vsel %vm1841, %v1945, 0.0
        %v1978 = vadd.f32 %v1976, %v1977
        %v1979 = vsel %vm1841, %v1946, 0.0
        %v1980 = vadd.f32 %v1978, %v1979
        %v1981 = vsel %vm1841, %v1947, 0.0
        %v1982 = vadd.f32 %v1980, %v1981
        %v1983 = vsel %vm1841, %v1948, 0.0
        %v1984 = vadd.f32 %v1982, %v1983
        %v1985 = vsel %vm1841, %v1949, 0.0
        %v1986 = vadd.f32 %v1984, %v1985
        %v1987 = vsel %vm1841, %v1950, 0.0
        %v1988 = vadd.f32 %v1986, %v1987
        %v1989 = vsel %vm1841, %v1951, 0.0
        %v1990 = vadd.f32 %v1988, %v1989
        %v1991 = vsel %vm1841, %v1952, 0.0
        %v1992 = vadd.f32 %v1990, %v1991
        %v1993 = vsel %vm1841, %v1953, 0.0
        %v1994 = vadd.f32 %v1992, %v1993
        %v1995 = vsel %vm1841, %v1954, 0.0
        %v1996 = vadd.f32 %v1994, %v1995
        %v1997 = vsel %vm1841, %v1955, 0.0
        %v1998 = vadd.f32 %v1996, %v1997
        %v1999 = vsel %vm1841, %v1956, 0.0
        %v2000 = vadd.f32 %v1998, %v1999
        %v2001 = vsel %vm1841, %v1957, 0.0
        %v2002 = vadd.f32 %v2000, %v2001
        %v2003 = vsel %vm1841, %v1958, 0.0
        %v2004 = vadd.f32 %v2002, %v2003
        %v2005 = vsel %vm1841, %v1959, 0.0
        %v2006 = vadd.f32 %v2004, %v2005
        %v2007 = vsel %vm1841, %v1960, 0.0
        %v2008 = vadd.f32 %v2006, %v2007
        %v2009 = vsel %vm1841, %v1961, 0.0
        %v2010 = vadd.f32 %v2008, %v2009
        %v2011 = vsel %vm1841, %v1962, 0.0
        %v2012 = vadd.f32 %v2010, %v2011
        %v2013 = vsel %vm1841, %v1963, 0.0
        %v2014 = vadd.f32 %v2012, %v2013
        %v2015 = vsel %vm1841, %v1964, 0.0
        %v2016 = vadd.f32 %v2014, %v2015
        %v2017 = vsel %vm1841, %v1965, 0.0
        %v2018 = vadd.f32 %v2016, %v2017
        %v2019 = vsel %vm1841, %v1966, 0.0
        %v2020 = vadd.f32 %v2018, %v2019
        %v2021 = vsel %vm1841, %v1967, 0.0
        %v2022 = vadd.f32 %v2020, %v2021
        %v2023 = vsel %vm1841, %v1968, 0.0
        %v2024 = vadd.f32 %v2022, %v2023
        %v2025 = vsel %vm1841, %v1969, 0.0
        %v2026 = vadd.f32 %v2024, %v2025
        %v2027 = vsel %vm1841, %v1970, 0.0
        %v2028 = vadd.f32 %v2026, %v2027
        %v2029 = vsel %vm1841, %v1971, 0.0
        %v2030 = vadd.f32 %v2028, %v2029
        %v2031 = vsel %vm1841, %v1972, 0.0
        %v2032 = vadd.f32 %v2030, %v2031
        %v2033 = vsel %vm1841, %v1973, 0.0
        %v2034 = vadd.f32 %v2032, %v2033
        %v2035 = vsel %vm1841, %v1974, 0.0
        %v2036 = vadd.f32 %v2034, %v2035
        %v2037 = vsel %vm1841, %v1975, 0.0
        %v2038 = vadd.f32 %v2036, %v2037
        %v2039 = vrot.slane %v2038, 4
        %v2040 = vadd.f32 %v2038, %v2039
        %v2041 = vrot.slane %v2040, 2
        %v2042 = vadd.f32 %v2040, %v2041
        %v2043 = vrot.slane %v2042, 1
        %v2044 = vadd.f32 %v2042, %v2043
        %v2045 = vadd.f32 %v2044, 0.0
        %s2046 = scalar_lea.vmem %s1, 16
        %v2047 = vld [vmem:[%s2046] sm:$0xf]
        %s2048 = scalar_lea.vmem %s1, 20
        %v2049 = vld [vmem:[%s2048] sm:$0xf]
        %v2051 = vsel %vm475, %v246, 0
        %v2054 = vsel %vm475, %v247, 0
        %v2057 = vsel %vm475, %v248, 0
        %v2060 = vsel %vm475, %v249, 0
        %v2063 = vsel %vm475, %v250, 0
        %v2066 = vsel %vm475, %v251, 0
        %v2069 = vsel %vm475, %v252, 0
        %v2072 = vsel %vm475, %v253, 0
        %v2075 = vsel %vm475, %v254, 0
        %v2078 = vsel %vm475, %v255, 0
        %v2081 = vsel %vm475, %v256, 0
        %v2084 = vsel %vm475, %v257, 0
        %v2087 = vsel %vm475, %v258, 0
        %v2090 = vsel %vm475, %v259, 0
        %v2093 = vsel %vm475, %v260, 0
        %v2096 = vsel %vm475, %v261, 0
        %v2099 = vsel %vm475, %v262, 0
        %v2102 = vsel %vm475, %v263, 0
        %v2105 = vsel %vm475, %v264, 0
        %v2108 = vsel %vm475, %v265, 0
        %v2111 = vsel %vm475, %v266, 0
        %v2114 = vsel %vm475, %v267, 0
        %v2117 = vsel %vm475, %v268, 0
        %v2120 = vsel %vm475, %v269, 0
        %v2123 = vsel %vm475, %v270, 0
        %v2126 = vsel %vm475, %v271, 0
        %v2129 = vsel %vm475, %v272, 0
        %v2132 = vsel %vm475, %v273, 0
        %v2135 = vsel %vm475, %v274, 0
        %v2138 = vsel %vm475, %v275, 0
        %v2141 = vsel %vm475, %v276, 0
        %v2144 = vsel %vm475, %v277, 0
        %v2147 = vsel %vm572, %v2049, 0
        %2149 = vmatprep.subr.mxu0 0.0
        %2150 = vmatpush1.msra.mxu0 %v2147
        %2151 = vmatprep.subr.mxu0 0.0
        %2152 = vmatpush1.msra.mxu0 0.0
        %2153 = vmatprep.subr.mxu0 0.0
        %2154 = vmatpush1.msra.mxu0 0.0
        %2155 = vmatprep.subr.mxu0 0.0
        %2156 = vmatpush1.msra.mxu0 0.0
        %2157 = vmatprep.subr.mxu0 0.0
        %2158 = vmatpush1.msra.mxu0 0.0
        %2159 = vmatprep.subr.mxu0 0.0
        %2160 = vmatpush1.msra.mxu0 0.0
        %2161 = vmatprep.subr.mxu0 0.0
        %2162 = vmatpush1.msra.mxu0 0.0
        %2163 = vmatprep.subr.mxu0 0.0
        %2164 = vmatpush1.msra.mxu0 0.0
        %2165 = vmatprep.subr.mxu0 0.0
        %2166 = vmatpush1.msra.mxu0 0.0
        %2167 = vmatprep.subr.mxu0 0.0
        %2168 = vmatpush1.msra.mxu0 0.0
        %2169 = vmatprep.subr.mxu0 0.0
        %2170 = vmatpush1.msra.mxu0 0.0
        %2171 = vmatprep.subr.mxu0 0.0
        %2172 = vmatpush1.msra.mxu0 0.0
        %2173 = vmatprep.subr.mxu0 0.0
        %2174 = vmatpush1.msra.mxu0 0.0
        %2175 = vmatprep.subr.mxu0 0.0
        %2176 = vmatpush1.msra.mxu0 0.0
        %2177 = vmatprep.subr.mxu0 0.0
        %2178 = vmatpush1.msra.mxu0 0.0
        %2179 = vmatprep.subr.mxu0 0.0
        %2180 = vmatpush1.msra.mxu0 0.0
        %2181 = vmatprep.subr.mxu0 0.0
        %2182 = vmatpush1.msra.mxu0 0.0
        %2183 = vmatprep.subr.mxu0 0.0
        %2184 = vmatpush1.msra.mxu0 0.0
        %2185 = vmatprep.subr.mxu0 0.0
        %2186 = vmatpush1.msra.mxu0 0.0
        %2187 = vmatprep.subr.mxu0 0.0
        %2188 = vmatpush1.msra.mxu0 0.0
        %2189 = vmatprep.subr.mxu0 0.0
        %2190 = vmatpush1.msra.mxu0 0.0
        %2191 = vmatprep.subr.mxu0 0.0
        %2192 = vmatpush1.msra.mxu0 0.0
        %2193 = vmatprep.subr.mxu0 0.0
        %2194 = vmatpush1.msra.mxu0 0.0
        %2195 = vmatprep.subr.mxu0 0.0
        %2196 = vmatpush1.msra.mxu0 0.0
        %2197 = vmatprep.subr.mxu0 0.0
        %2198 = vmatpush1.msra.mxu0 0.0
        %2199 = vmatprep.subr.mxu0 0.0
        %2200 = vmatpush1.msra.mxu0 0.0
        %2201 = vmatprep.subr.mxu0 0.0
        %2202 = vmatpush1.msra.mxu0 0.0
        %2203 = vmatprep.subr.mxu0 0.0
        %2204 = vmatpush1.msra.mxu0 0.0
        %2205 = vmatprep.subr.mxu0 0.0
        %2206 = vmatpush1.msra.mxu0 0.0
        %2207 = vmatprep.subr.mxu0 0.0
        %2208 = vmatpush1.msra.mxu0 0.0
        %2209 = vmatprep.subr.mxu0 0.0
        %2210 = vmatpush1.msra.mxu0 0.0
        %2211 = vmatprep.subr.mxu0 0.0
        %2212 = vmatpush1.msra.mxu0 0.0
        %2213 = vmatprep.mubr.f32.mxu0 0.0
        %2214 = vmatmul.mubr.f32.gmra.mrb[0].mxu0 %v2051
        %v2215 = vpop.f32.mrb[0].mxu0
        %v2216 = vadd.f32 0.0, %v2215
        %v2217 = vpop.f32.mrb[0].mxu0
        %2218 = vmatprep.mubr.f32.mxu0 0.0
        %2219 = vmatmul.mubr.f32.gmra.mrb[0].mxu0 %v2054
        %v2220 = vpop.f32.mrb[0].mxu0
        %v2221 = vadd.f32 0.0, %v2220
        %v2222 = vpop.f32.mrb[0].mxu0
        %2223 = vmatprep.mubr.f32.mxu0 0.0
        %2224 = vmatmul.mubr.f32.gmra.mrb[0].mxu0 %v2057
        %v2225 = vpop.f32.mrb[0].mxu0
        %v2226 = vadd.f32 0.0, %v2225
        %v2227 = vpop.f32.mrb[0].mxu0
        %2228 = vmatprep.mubr.f32.mxu0 0.0
        %2229 = vmatmul.mubr.f32.gmra.mrb[0].mxu0 %v2060
        %v2230 = vpop.f32.mrb[0].mxu0
        %v2231 = vadd.f32 0.0, %v2230
        %v2232 = vpop.f32.mrb[0].mxu0
        %2233 = vmatprep.mubr.f32.mxu0 0.0
        %2234 = vmatmul.mubr.f32.gmra.mrb[0].mxu0 %v2063
        %v2235 = vpop.f32.mrb[0].mxu0
        %v2236 = vadd.f32 0.0, %v2235
        %v2237 = vpop.f32.mrb[0].mxu0
        %2238 = vmatprep.mubr.f32.mxu0 0.0
        %2239 = vmatmul.mubr.f32.gmra.mrb[0].mxu0 %v2066
        %v2240 = vpop.f32.mrb[0].mxu0
        %v2241 = vadd.f32 0.0, %v2240
        %v2242 = vpop.f32.mrb[0].mxu0
        %2243 = vmatprep.mubr.f32.mxu0 0.0
        %2244 = vmatmul.mubr.f32.gmra.mrb[0].mxu0 %v2069
        %v2245 = vpop.f32.mrb[0].mxu0
        %v2246 = vadd.f32 0.0, %v2245
        %v2247 = vpop.f32.mrb[0].mxu0
        %2248 = vmatprep.mubr.f32.mxu0 0.0
        %2249 = vmatmul.mubr.f32.gmra.mrb[0].mxu0 %v2072
        %v2250 = vpop.f32.mrb[0].mxu0
        %v2251 = vadd.f32 0.0, %v2250
        %v2252 = vpop.f32.mrb[0].mxu0
        %2253 = vmatprep.mubr.f32.mxu0 0.0
        %2254 = vmatmul.mubr.f32.gmra.mrb[0].mxu0 %v2075
        %v2255 = vpop.f32.mrb[0].mxu0
        %v2256 = vadd.f32 0.0, %v2255
        %v2257 = vpop.f32.mrb[0].mxu0
        %2258 = vmatprep.mubr.f32.mxu0 0.0
        %2259 = vmatmul.mubr.f32.gmra.mrb[0].mxu0 %v2078
        %v2260 = vpop.f32.mrb[0].mxu0
        %v2261 = vadd.f32 0.0, %v2260
        %v2262 = vpop.f32.mrb[0].mxu0
        %2263 = vmatprep.mubr.f32.mxu0 0.0
        %2264 = vmatmul.mubr.f32.gmra.mrb[0].mxu0 %v2081
        %v2265 = vpop.f32.mrb[0].mxu0
        %v2266 = vadd.f32 0.0, %v2265
        %v2267 = vpop.f32.mrb[0].mxu0
        %2268 = vmatprep.mubr.f32.mxu0 0.0
        %2269 = vmatmul.mubr.f32.gmra.mrb[0].mxu0 %v2084
        %v2270 = vpop.f32.mrb[0].mxu0
        %v2271 = vadd.f32 0.0, %v2270
        %v2272 = vpop.f32.mrb[0].mxu0
        %2273 = vmatprep.mubr.f32.mxu0 0.0
        %2274 = vmatmul.mubr.f32.gmra.mrb[0].mxu0 %v2087
        %v2275 = vpop.f32.mrb[0].mxu0
        %v2276 = vadd.f32 0.0, %v2275
        %v2277 = vpop.f32.mrb[0].mxu0
        %2278 = vmatprep.mubr.f32.mxu0 0.0
        %2279 = vmatmul.mubr.f32.gmra.mrb[0].mxu0 %v2090
        %v2280 = vpop.f32.mrb[0].mxu0
        %v2281 = vadd.f32 0.0, %v2280
        %v2282 = vpop.f32.mrb[0].mxu0
        %2283 = vmatprep.mubr.f32.mxu0 0.0
        %2284 = vmatmul.mubr.f32.gmra.mrb[0].mxu0 %v2093
        %v2285 = vpop.f32.mrb[0].mxu0
        %v2286 = vadd.f32 0.0, %v2285
        %v2287 = vpop.f32.mrb[0].mxu0
        %2288 = vmatprep.mubr.f32.mxu0 0.0
        %2289 = vmatmul.mubr.f32.gmra.mrb[0].mxu0 %v2096
        %v2290 = vpop.f32.mrb[0].mxu0
        %v2291 = vadd.f32 0.0, %v2290
        %v2292 = vpop.f32.mrb[0].mxu0
        %2293 = vmatprep.mubr.f32.mxu0 0.0
        %2294 = vmatmul.mubr.f32.gmra.mrb[0].mxu0 %v2099
        %v2295 = vpop.f32.mrb[0].mxu0
        %v2296 = vadd.f32 0.0, %v2295
        %v2297 = vpop.f32.mrb[0].mxu0
        %2298 = vmatprep.mubr.f32.mxu0 0.0
        %2299 = vmatmul.mubr.f32.gmra.mrb[0].mxu0 %v2102
        %v2300 = vpop.f32.mrb[0].mxu0
        %v2301 = vadd.f32 0.0, %v2300
        %v2302 = vpop.f32.mrb[0].mxu0
        %2303 = vmatprep.mubr.f32.mxu0 0.0
        %2304 = vmatmul.mubr.f32.gmra.mrb[0].mxu0 %v2105
        %v2305 = vpop.f32.mrb[0].mxu0
        %v2306 = vadd.f32 0.0, %v2305
        %v2307 = vpop.f32.mrb[0].mxu0
        %2308 = vmatprep.mubr.f32.mxu0 0.0
        %2309 = vmatmul.mubr.f32.gmra.mrb[0].mxu0 %v2108
        %v2310 = vpop.f32.mrb[0].mxu0
        %v2311 = vadd.f32 0.0, %v2310
        %v2312 = vpop.f32.mrb[0].mxu0
        %2313 = vmatprep.mubr.f32.mxu0 0.0
        %2314 = vmatmul.mubr.f32.gmra.mrb[0].mxu0 %v2111
        %v2315 = vpop.f32.mrb[0].mxu0
        %v2316 = vadd.f32 0.0, %v2315
        %v2317 = vpop.f32.mrb[0].mxu0
        %2318 = vmatprep.mubr.f32.mxu0 0.0
        %2319 = vmatmul.mubr.f32.gmra.mrb[0].mxu0 %v2114
        %v2320 = vpop.f32.mrb[0].mxu0
        %v2321 = vadd.f32 0.0, %v2320
        %v2322 = vpop.f32.mrb[0].mxu0
        %2323 = vmatprep.mubr.f32.mxu0 0.0
        %2324 = vmatmul.mubr.f32.gmra.mrb[0].mxu0 %v2117
        %v2325 = vpop.f32.mrb[0].mxu0
        %v2326 = vadd.f32 0.0, %v2325
        %v2327 = vpop.f32.mrb[0].mxu0
        %2328 = vmatprep.mubr.f32.mxu0 0.0
        %2329 = vmatmul.mubr.f32.gmra.mrb[0].mxu0 %v2120
        %v2330 = vpop.f32.mrb[0].mxu0
        %v2331 = vadd.f32 0.0, %v2330
        %v2332 = vpop.f32.mrb[0].mxu0
        %2333 = vmatprep.mubr.f32.mxu0 0.0
        %2334 = vmatmul.mubr.f32.gmra.mrb[0].mxu0 %v2123
        %v2335 = vpop.f32.mrb[0].mxu0
        %v2336 = vadd.f32 0.0, %v2335
        %v2337 = vpop.f32.mrb[0].mxu0
        %2338 = vmatprep.mubr.f32.mxu0 0.0
        %2339 = vmatmul.mubr.f32.gmra.mrb[0].mxu0 %v2126
        %v2340 = vpop.f32.mrb[0].mxu0
        %v2341 = vadd.f32 0.0, %v2340
        %v2342 = vpop.f32.mrb[0].mxu0
        %2343 = vmatprep.mubr.f32.mxu0 0.0
        %2344 = vmatmul.mubr.f32.gmra.mrb[0].mxu0 %v2129
        %v2345 = vpop.f32.mrb[0].mxu0
        %v2346 = vadd.f32 0.0, %v2345
        %v2347 = vpop.f32.mrb[0].mxu0
        %2348 = vmatprep.mubr.f32.mxu0 0.0
        %2349 = vmatmul.mubr.f32.gmra.mrb[0].mxu0 %v2132
        %v2350 = vpop.f32.mrb[0].mxu0
        %v2351 = vadd.f32 0.0, %v2350
        %v2352 = vpop.f32.mrb[0].mxu0
        %2353 = vmatprep.mubr.f32.mxu0 0.0
        %2354 = vmatmul.mubr.f32.gmra.mrb[0].mxu0 %v2135
        %v2355 = vpop.f32.mrb[0].mxu0
        %v2356 = vadd.f32 0.0, %v2355
        %v2357 = vpop.f32.mrb[0].mxu0
        %2358 = vmatprep.mubr.f32.mxu0 0.0
        %2359 = vmatmul.mubr.f32.gmra.mrb[0].mxu0 %v2138
        %v2360 = vpop.f32.mrb[0].mxu0
        %v2361 = vadd.f32 0.0, %v2360
        %v2362 = vpop.f32.mrb[0].mxu0
        %2363 = vmatprep.mubr.f32.mxu0 0.0
        %2364 = vmatmul.mubr.f32.gmra.mrb[0].mxu0 %v2141
        %v2365 = vpop.f32.mrb[0].mxu0
        %v2366 = vadd.f32 0.0, %v2365
        %v2367 = vpop.f32.mrb[0].mxu0
        %2368 = vmatprep.mubr.f32.mxu0 0.0
        %2369 = vmatmul.mubr.f32.gmra.mrb[0].mxu0 %v2144
        %v2370 = vpop.f32.mrb[0].mxu0
        %v2371 = vadd.f32 0.0, %v2370
        %v2372 = vpop.f32.mrb[0].mxu0
        %2373 = vdwg.mxu0
        %v2375 = vsel %vm572, %v2047, 0
        %2377 = vmatprep.subr.mxu0 0.0
        %2378 = vmatpush1.msra.mxu0 %v2375
        %2379 = vmatprep.subr.mxu0 0.0
        %2380 = vmatpush1.msra.mxu0 0.0
        %2381 = vmatprep.subr.mxu0 0.0
        %2382 = vmatpush1.msra.mxu0 0.0
        %2383 = vmatprep.subr.mxu0 0.0
        %2384 = vmatpush1.msra.mxu0 0.0
        %2385 = vmatprep.subr.mxu0 0.0
        %2386 = vmatpush1.msra.mxu0 0.0
        %2387 = vmatprep.subr.mxu0 0.0
        %2388 = vmatpush1.msra.mxu0 0.0
        %2389 = vmatprep.subr.mxu0 0.0
        %2390 = vmatpush1.msra.mxu0 0.0
        %2391 = vmatprep.subr.mxu0 0.0
        %2392 = vmatpush1.msra.mxu0 0.0
        %2393 = vmatprep.subr.mxu0 0.0
        %2394 = vmatpush1.msra.mxu0 0.0
        %2395 = vmatprep.subr.mxu0 0.0
        %2396 = vmatpush1.msra.mxu0 0.0
        %2397 = vmatprep.subr.mxu0 0.0
        %2398 = vmatpush1.msra.mxu0 0.0
        %2399 = vmatprep.subr.mxu0 0.0
        %2400 = vmatpush1.msra.mxu0 0.0
        %2401 = vmatprep.subr.mxu0 0.0
        %2402 = vmatpush1.msra.mxu0 0.0
        %2403 = vmatprep.subr.mxu0 0.0
        %2404 = vmatpush1.msra.mxu0 0.0
        %2405 = vmatprep.subr.mxu0 0.0
        %2406 = vmatpush1.msra.mxu0 0.0
        %2407 = vmatprep.subr.mxu0 0.0
        %2408 = vmatpush1.msra.mxu0 0.0
        %2409 = vmatprep.subr.mxu0 0.0
        %2410 = vmatpush1.msra.mxu0 0.0
        %2411 = vmatprep.subr.mxu0 0.0
        %2412 = vmatpush1.msra.mxu0 0.0
        %2413 = vmatprep.subr.mxu0 0.0
        %2414 = vmatpush1.msra.mxu0 0.0
        %2415 = vmatprep.subr.mxu0 0.0
        %2416 = vmatpush1.msra.mxu0 0.0
        %2417 = vmatprep.subr.mxu0 0.0
        %2418 = vmatpush1.msra.mxu0 0.0
        %2419 = vmatprep.subr.mxu0 0.0
        %2420 = vmatpush1.msra.mxu0 0.0
        %2421 = vmatprep.subr.mxu0 0.0
        %2422 = vmatpush1.msra.mxu0 0.0
        %2423 = vmatprep.subr.mxu0 0.0
        %2424 = vmatpush1.msra.mxu0 0.0
        %2425 = vmatprep.subr.mxu0 0.0
        %2426 = vmatpush1.msra.mxu0 0.0
        %2427 = vmatprep.subr.mxu0 0.0
        %2428 = vmatpush1.msra.mxu0 0.0
        %2429 = vmatprep.subr.mxu0 0.0
        %2430 = vmatpush1.msra.mxu0 0.0
        %2431 = vmatprep.subr.mxu0 0.0
        %2432 = vmatpush1.msra.mxu0 0.0
        %2433 = vmatprep.subr.mxu0 0.0
        %2434 = vmatpush1.msra.mxu0 0.0
        %2435 = vmatprep.subr.mxu0 0.0
        %2436 = vmatpush1.msra.mxu0 0.0
        %2437 = vmatprep.subr.mxu0 0.0
        %2438 = vmatpush1.msra.mxu0 0.0
        %2439 = vmatprep.subr.mxu0 0.0
        %2440 = vmatpush1.msra.mxu0 0.0
        %2441 = vmatprep.mubr.f32.mxu0 0.0
        %2442 = vmatmul.mubr.f32.gmra.mrb[0].mxu0 %v477
        %v2443 = vpop.f32.mrb[0].mxu0
        %v2444 = vadd.f32 %v2216, %v2443
        %v2445 = vpop.f32.mrb[0].mxu0
        %2446 = vmatprep.mubr.f32.mxu0 0.0
        %2447 = vmatmul.mubr.f32.gmra.mrb[0].mxu0 %v480
        %v2448 = vpop.f32.mrb[0].mxu0
        %v2449 = vadd.f32 %v2221, %v2448
        %v2450 = vpop.f32.mrb[0].mxu0
        %2451 = vmatprep.mubr.f32.mxu0 0.0
        %2452 = vmatmul.mubr.f32.gmra.mrb[0].mxu0 %v483
        %v2453 = vpop.f32.mrb[0].mxu0
        %v2454 = vadd.f32 %v2226, %v2453
        %v2455 = vpop.f32.mrb[0].mxu0
        %2456 = vmatprep.mubr.f32.mxu0 0.0
        %2457 = vmatmul.mubr.f32.gmra.mrb[0].mxu0 %v486
        %v2458 = vpop.f32.mrb[0].mxu0
        %v2459 = vadd.f32 %v2231, %v2458
        %v2460 = vpop.f32.mrb[0].mxu0
        %2461 = vmatprep.mubr.f32.mxu0 0.0
        %2462 = vmatmul.mubr.f32.gmra.mrb[0].mxu0 %v489
        %v2463 = vpop.f32.mrb[0].mxu0
        %v2464 = vadd.f32 %v2236, %v2463
        %v2465 = vpop.f32.mrb[0].mxu0
        %2466 = vmatprep.mubr.f32.mxu0 0.0
        %2467 = vmatmul.mubr.f32.gmra.mrb[0].mxu0 %v492
        %v2468 = vpop.f32.mrb[0].mxu0
        %v2469 = vadd.f32 %v2241, %v2468
        %v2470 = vpop.f32.mrb[0].mxu0
        %2471 = vmatprep.mubr.f32.mxu0 0.0
        %2472 = vmatmul.mubr.f32.gmra.mrb[0].mxu0 %v495
        %v2473 = vpop.f32.mrb[0].mxu0
        %v2474 = vadd.f32 %v2246, %v2473
        %v2475 = vpop.f32.mrb[0].mxu0
        %2476 = vmatprep.mubr.f32.mxu0 0.0
        %2477 = vmatmul.mubr.f32.gmra.mrb[0].mxu0 %v498
        %v2478 = vpop.f32.mrb[0].mxu0
        %v2479 = vadd.f32 %v2251, %v2478
        %v2480 = vpop.f32.mrb[0].mxu0
        %2481 = vmatprep.mubr.f32.mxu0 0.0
        %2482 = vmatmul.mubr.f32.gmra.mrb[0].mxu0 %v501
        %v2483 = vpop.f32.mrb[0].mxu0
        %v2484 = vadd.f32 %v2256, %v2483
        %v2485 = vpop.f32.mrb[0].mxu0
        %2486 = vmatprep.mubr.f32.mxu0 0.0
        %2487 = vmatmul.mubr.f32.gmra.mrb[0].mxu0 %v504
        %v2488 = vpop.f32.mrb[0].mxu0
        %v2489 = vadd.f32 %v2261, %v2488
        %v2490 = vpop.f32.mrb[0].mxu0
        %2491 = vmatprep.mubr.f32.mxu0 0.0
        %2492 = vmatmul.mubr.f32.gmra.mrb[0].mxu0 %v507
        %v2493 = vpop.f32.mrb[0].mxu0
        %v2494 = vadd.f32 %v2266, %v2493
        %v2495 = vpop.f32.mrb[0].mxu0
        %2496 = vmatprep.mubr.f32.mxu0 0.0
        %2497 = vmatmul.mubr.f32.gmra.mrb[0].mxu0 %v510
        %v2498 = vpop.f32.mrb[0].mxu0
        %v2499 = vadd.f32 %v2271, %v2498
        %v2500 = vpop.f32.mrb[0].mxu0
        %2501 = vmatprep.mubr.f32.mxu0 0.0
        %2502 = vmatmul.mubr.f32.gmra.mrb[0].mxu0 %v513
        %v2503 = vpop.f32.mrb[0].mxu0
        %v2504 = vadd.f32 %v2276, %v2503
        %v2505 = vpop.f32.mrb[0].mxu0
        %2506 = vmatprep.mubr.f32.mxu0 0.0
        %2507 = vmatmul.mubr.f32.gmra.mrb[0].mxu0 %v516
        %v2508 = vpop.f32.mrb[0].mxu0
        %v2509 = vadd.f32 %v2281, %v2508
        %v2510 = vpop.f32.mrb[0].mxu0
        %2511 = vmatprep.mubr.f32.mxu0 0.0
        %2512 = vmatmul.mubr.f32.gmra.mrb[0].mxu0 %v519
        %v2513 = vpop.f32.mrb[0].mxu0
        %v2514 = vadd.f32 %v2286, %v2513
        %v2515 = vpop.f32.mrb[0].mxu0
        %2516 = vmatprep.mubr.f32.mxu0 0.0
        %2517 = vmatmul.mubr.f32.gmra.mrb[0].mxu0 %v522
        %v2518 = vpop.f32.mrb[0].mxu0
        %v2519 = vadd.f32 %v2291, %v2518
        %v2520 = vpop.f32.mrb[0].mxu0
        %2521 = vmatprep.mubr.f32.mxu0 0.0
        %2522 = vmatmul.mubr.f32.gmra.mrb[0].mxu0 %v525
        %v2523 = vpop.f32.mrb[0].mxu0
        %v2524 = vadd.f32 %v2296, %v2523
        %v2525 = vpop.f32.mrb[0].mxu0
        %2526 = vmatprep.mubr.f32.mxu0 0.0
        %2527 = vmatmul.mubr.f32.gmra.mrb[0].mxu0 %v528
        %v2528 = vpop.f32.mrb[0].mxu0
        %v2529 = vadd.f32 %v2301, %v2528
        %v2530 = vpop.f32.mrb[0].mxu0
        %2531 = vmatprep.mubr.f32.mxu0 0.0
        %2532 = vmatmul.mubr.f32.gmra.mrb[0].mxu0 %v531
        %v2533 = vpop.f32.mrb[0].mxu0
        %v2534 = vadd.f32 %v2306, %v2533
        %v2535 = vpop.f32.mrb[0].mxu0
        %2536 = vmatprep.mubr.f32.mxu0 0.0
        %2537 = vmatmul.mubr.f32.gmra.mrb[0].mxu0 %v534
        %v2538 = vpop.f32.mrb[0].mxu0
        %v2539 = vadd.f32 %v2311, %v2538
        %v2540 = vpop.f32.mrb[0].mxu0
        %2541 = vmatprep.mubr.f32.mxu0 0.0
        %2542 = vmatmul.mubr.f32.gmra.mrb[0].mxu0 %v537
        %v2543 = vpop.f32.mrb[0].mxu0
        %v2544 = vadd.f32 %v2316, %v2543
        %v2545 = vpop.f32.mrb[0].mxu0
        %2546 = vmatprep.mubr.f32.mxu0 0.0
        %2547 = vmatmul.mubr.f32.gmra.mrb[0].mxu0 %v540
        %v2548 = vpop.f32.mrb[0].mxu0
        %v2549 = vadd.f32 %v2321, %v2548
        %v2550 = vpop.f32.mrb[0].mxu0
        %2551 = vmatprep.mubr.f32.mxu0 0.0
        %2552 = vmatmul.mubr.f32.gmra.mrb[0].mxu0 %v543
        %v2553 = vpop.f32.mrb[0].mxu0
        %v2554 = vadd.f32 %v2326, %v2553
        %v2555 = vpop.f32.mrb[0].mxu0
        %2556 = vmatprep.mubr.f32.mxu0 0.0
        %2557 = vmatmul.mubr.f32.gmra.mrb[0].mxu0 %v546
        %v2558 = vpop.f32.mrb[0].mxu0
        %v2559 = vadd.f32 %v2331, %v2558
        %v2560 = vpop.f32.mrb[0].mxu0
        %2561 = vmatprep.mubr.f32.mxu0 0.0
        %2562 = vmatmul.mubr.f32.gmra.mrb[0].mxu0 %v549
        %v2563 = vpop.f32.mrb[0].mxu0
        %v2564 = vadd.f32 %v2336, %v2563
        %v2565 = vpop.f32.mrb[0].mxu0
        %2566 = vmatprep.mubr.f32.mxu0 0.0
        %2567 = vmatmul.mubr.f32.gmra.mrb[0].mxu0 %v552
        %v2568 = vpop.f32.mrb[0].mxu0
        %v2569 = vadd.f32 %v2341, %v2568
        %v2570 = vpop.f32.mrb[0].mxu0
        %2571 = vmatprep.mubr.f32.mxu0 0.0
        %2572 = vmatmul.mubr.f32.gmra.mrb[0].mxu0 %v555
        %v2573 = vpop.f32.mrb[0].mxu0
        %v2574 = vadd.f32 %v2346, %v2573
        %v2575 = vpop.f32.mrb[0].mxu0
        %2576 = vmatprep.mubr.f32.mxu0 0.0
        %2577 = vmatmul.mubr.f32.gmra.mrb[0].mxu0 %v558
        %v2578 = vpop.f32.mrb[0].mxu0
        %v2579 = vadd.f32 %v2351, %v2578
        %v2580 = vpop.f32.mrb[0].mxu0
        %2581 = vmatprep.mubr.f32.mxu0 0.0
        %2582 = vmatmul.mubr.f32.gmra.mrb[0].mxu0 %v561
        %v2583 = vpop.f32.mrb[0].mxu0
        %v2584 = vadd.f32 %v2356, %v2583
        %v2585 = vpop.f32.mrb[0].mxu0
        %2586 = vmatprep.mubr.f32.mxu0 0.0
        %2587 = vmatmul.mubr.f32.gmra.mrb[0].mxu0 %v564
        %v2588 = vpop.f32.mrb[0].mxu0
        %v2589 = vadd.f32 %v2361, %v2588
        %v2590 = vpop.f32.mrb[0].mxu0
        %2591 = vmatprep.mubr.f32.mxu0 0.0
        %2592 = vmatmul.mubr.f32.gmra.mrb[0].mxu0 %v567
        %v2593 = vpop.f32.mrb[0].mxu0
        %v2594 = vadd.f32 %v2366, %v2593
        %v2595 = vpop.f32.mrb[0].mxu0
        %2596 = vmatprep.mubr.f32.mxu0 0.0
        %2597 = vmatmul.mubr.f32.gmra.mrb[0].mxu0 %v570
        %v2598 = vpop.f32.mrb[0].mxu0
        %v2599 = vadd.f32 %v2371, %v2598
        %v2600 = vpop.f32.mrb[0].mxu0
        %2601 = vdwg.mxu0
        %s2602 = scalar_lea.vmem %s1, 24
        %v2603 = vld [vmem:[%s2602] sm:$0xf]
        %v2605 = vsel %vm572, %v2603, 0
        %2607 = vmatprep.subr.mxu0 0.0
        %2608 = vmatpush1.msra.mxu0 %v2605
        %2609 = vmatprep.subr.mxu0 0.0
        %2610 = vmatpush1.msra.mxu0 0.0
        %2611 = vmatprep.subr.mxu0 0.0
        %2612 = vmatpush1.msra.mxu0 0.0
        %2613 = vmatprep.subr.mxu0 0.0
        %2614 = vmatpush1.msra.mxu0 0.0
        %2615 = vmatprep.subr.mxu0 0.0
        %2616 = vmatpush1.msra.mxu0 0.0
        %2617 = vmatprep.subr.mxu0 0.0
        %2618 = vmatpush1.msra.mxu0 0.0
        %2619 = vmatprep.subr.mxu0 0.0
        %2620 = vmatpush1.msra.mxu0 0.0
        %2621 = vmatprep.subr.mxu0 0.0
        %2622 = vmatpush1.msra.mxu0 0.0
        %2623 = vmatprep.subr.mxu0 0.0
        %2624 = vmatpush1.msra.mxu0 0.0
        %2625 = vmatprep.subr.mxu0 0.0
        %2626 = vmatpush1.msra.mxu0 0.0
        %2627 = vmatprep.subr.mxu0 0.0
        %2628 = vmatpush1.msra.mxu0 0.0
        %2629 = vmatprep.subr.mxu0 0.0
        %2630 = vmatpush1.msra.mxu0 0.0
        %2631 = vmatprep.subr.mxu0 0.0
        %2632 = vmatpush1.msra.mxu0 0.0
        %2633 = vmatprep.subr.mxu0 0.0
        %2634 = vmatpush1.msra.mxu0 0.0
        %2635 = vmatprep.subr.mxu0 0.0
        %2636 = vmatpush1.msra.mxu0 0.0
        %2637 = vmatprep.subr.mxu0 0.0
        %2638 = vmatpush1.msra.mxu0 0.0
        %2639 = vmatprep.subr.mxu0 0.0
        %2640 = vmatpush1.msra.mxu0 0.0
        %2641 = vmatprep.subr.mxu0 0.0
        %2642 = vmatpush1.msra.mxu0 0.0
        %2643 = vmatprep.subr.mxu0 0.0
        %2644 = vmatpush1.msra.mxu0 0.0
        %2645 = vmatprep.subr.mxu0 0.0
        %2646 = vmatpush1.msra.mxu0 0.0
        %2647 = vmatprep.subr.mxu0 0.0
        %2648 = vmatpush1.msra.mxu0 0.0
        %2649 = vmatprep.subr.mxu0 0.0
        %2650 = vmatpush1.msra.mxu0 0.0
        %2651 = vmatprep.subr.mxu0 0.0
        %2652 = vmatpush1.msra.mxu0 0.0
        %2653 = vmatprep.subr.mxu0 0.0
        %2654 = vmatpush1.msra.mxu0 0.0
        %2655 = vmatprep.subr.mxu0 0.0
        %2656 = vmatpush1.msra.mxu0 0.0
        %2657 = vmatprep.subr.mxu0 0.0
        %2658 = vmatpush1.msra.mxu0 0.0
        %2659 = vmatprep.subr.mxu0 0.0
        %2660 = vmatpush1.msra.mxu0 0.0
        %2661 = vmatprep.subr.mxu0 0.0
        %2662 = vmatpush1.msra.mxu0 0.0
        %2663 = vmatprep.subr.mxu0 0.0
        %2664 = vmatpush1.msra.mxu0 0.0
        %2665 = vmatprep.subr.mxu0 0.0
        %2666 = vmatpush1.msra.mxu0 0.0
        %2667 = vmatprep.subr.mxu0 0.0
        %2668 = vmatpush1.msra.mxu0 0.0
        %2669 = vmatprep.subr.mxu0 0.0
        %2670 = vmatpush1.msra.mxu0 0.0
        %2671 = vmatprep.mubr.f32.mxu0 0.0
        %2672 = vmatmul.mubr.f32.gmra.mrb[0].mxu0 %v1486
        %v2673 = vpop.f32.mrb[0].mxu0
        %v2674 = vadd.f32 0.0, %v2673
        %v2675 = vpop.f32.mrb[0].mxu0
        %2676 = vmatprep.mubr.f32.mxu0 0.0
        %2677 = vmatmul.mubr.f32.gmra.mrb[0].mxu0 %v1489
        %v2678 = vpop.f32.mrb[0].mxu0
        %v2679 = vadd.f32 0.0, %v2678
        %v2680 = vpop.f32.mrb[0].mxu0
        %2681 = vmatprep.mubr.f32.mxu0 0.0
        %2682 = vmatmul.mubr.f32.gmra.mrb[0].mxu0 %v1492
        %v2683 = vpop.f32.mrb[0].mxu0
        %v2684 = vadd.f32 0.0, %v2683
        %v2685 = vpop.f32.mrb[0].mxu0
        %2686 = vmatprep.mubr.f32.mxu0 0.0
        %2687 = vmatmul.mubr.f32.gmra.mrb[0].mxu0 %v1495
        %v2688 = vpop.f32.mrb[0].mxu0
        %v2689 = vadd.f32 0.0, %v2688
        %v2690 = vpop.f32.mrb[0].mxu0
        %2691 = vmatprep.mubr.f32.mxu0 0.0
        %2692 = vmatmul.mubr.f32.gmra.mrb[0].mxu0 %v1498
        %v2693 = vpop.f32.mrb[0].mxu0
        %v2694 = vadd.f32 0.0, %v2693
        %v2695 = vpop.f32.mrb[0].mxu0
        %2696 = vmatprep.mubr.f32.mxu0 0.0
        %2697 = vmatmul.mubr.f32.gmra.mrb[0].mxu0 %v1501
        %v2698 = vpop.f32.mrb[0].mxu0
        %v2699 = vadd.f32 0.0, %v2698
        %v2700 = vpop.f32.mrb[0].mxu0
        %2701 = vmatprep.mubr.f32.mxu0 0.0
        %2702 = vmatmul.mubr.f32.gmra.mrb[0].mxu0 %v1504
        %v2703 = vpop.f32.mrb[0].mxu0
        %v2704 = vadd.f32 0.0, %v2703
        %v2705 = vpop.f32.mrb[0].mxu0
        %2706 = vmatprep.mubr.f32.mxu0 0.0
        %2707 = vmatmul.mubr.f32.gmra.mrb[0].mxu0 %v1507
        %v2708 = vpop.f32.mrb[0].mxu0
        %v2709 = vadd.f32 0.0, %v2708
        %v2710 = vpop.f32.mrb[0].mxu0
        %2711 = vmatprep.mubr.f32.mxu0 0.0
        %2712 = vmatmul.mubr.f32.gmra.mrb[0].mxu0 %v1510
        %v2713 = vpop.f32.mrb[0].mxu0
        %v2714 = vadd.f32 0.0, %v2713
        %v2715 = vpop.f32.mrb[0].mxu0
        %2716 = vmatprep.mubr.f32.mxu0 0.0
        %2717 = vmatmul.mubr.f32.gmra.mrb[0].mxu0 %v1513
        %v2718 = vpop.f32.mrb[0].mxu0
        %v2719 = vadd.f32 0.0, %v2718
        %v2720 = vpop.f32.mrb[0].mxu0
        %2721 = vmatprep.mubr.f32.mxu0 0.0
        %2722 = vmatmul.mubr.f32.gmra.mrb[0].mxu0 %v1516
        %v2723 = vpop.f32.mrb[0].mxu0
        %v2724 = vadd.f32 0.0, %v2723
        %v2725 = vpop.f32.mrb[0].mxu0
        %2726 = vmatprep.mubr.f32.mxu0 0.0
        %2727 = vmatmul.mubr.f32.gmra.mrb[0].mxu0 %v1519
        %v2728 = vpop.f32.mrb[0].mxu0
        %v2729 = vadd.f32 0.0, %v2728
        %v2730 = vpop.f32.mrb[0].mxu0
        %2731 = vmatprep.mubr.f32.mxu0 0.0
        %2732 = vmatmul.mubr.f32.gmra.mrb[0].mxu0 %v1522
        %v2733 = vpop.f32.mrb[0].mxu0
        %v2734 = vadd.f32 0.0, %v2733
        %v2735 = vpop.f32.mrb[0].mxu0
        %2736 = vmatprep.mubr.f32.mxu0 0.0
        %2737 = vmatmul.mubr.f32.gmra.mrb[0].mxu0 %v1525
        %v2738 = vpop.f32.mrb[0].mxu0
        %v2739 = vadd.f32 0.0, %v2738
        %v2740 = vpop.f32.mrb[0].mxu0
        %2741 = vmatprep.mubr.f32.mxu0 0.0
        %2742 = vmatmul.mubr.f32.gmra.mrb[0].mxu0 %v1528
        %v2743 = vpop.f32.mrb[0].mxu0
        %v2744 = vadd.f32 0.0, %v2743
        %v2745 = vpop.f32.mrb[0].mxu0
        %2746 = vmatprep.mubr.f32.mxu0 0.0
        %2747 = vmatmul.mubr.f32.gmra.mrb[0].mxu0 %v1531
        %v2748 = vpop.f32.mrb[0].mxu0
        %v2749 = vadd.f32 0.0, %v2748
        %v2750 = vpop.f32.mrb[0].mxu0
        %2751 = vmatprep.mubr.f32.mxu0 0.0
        %2752 = vmatmul.mubr.f32.gmra.mrb[0].mxu0 %v1534
        %v2753 = vpop.f32.mrb[0].mxu0
        %v2754 = vadd.f32 0.0, %v2753
        %v2755 = vpop.f32.mrb[0].mxu0
        %2756 = vmatprep.mubr.f32.mxu0 0.0
        %2757 = vmatmul.mubr.f32.gmra.mrb[0].mxu0 %v1537
        %v2758 = vpop.f32.mrb[0].mxu0
        %v2759 = vadd.f32 0.0, %v2758
        %v2760 = vpop.f32.mrb[0].mxu0
        %2761 = vmatprep.mubr.f32.mxu0 0.0
        %2762 = vmatmul.mubr.f32.gmra.mrb[0].mxu0 %v1540
        %v2763 = vpop.f32.mrb[0].mxu0
        %v2764 = vadd.f32 0.0, %v2763
        %v2765 = vpop.f32.mrb[0].mxu0
        %2766 = vmatprep.mubr.f32.mxu0 0.0
        %2767 = vmatmul.mubr.f32.gmra.mrb[0].mxu0 %v1543
        %v2768 = vpop.f32.mrb[0].mxu0
        %v2769 = vadd.f32 0.0, %v2768
        %v2770 = vpop.f32.mrb[0].mxu0
        %2771 = vmatprep.mubr.f32.mxu0 0.0
        %2772 = vmatmul.mubr.f32.gmra.mrb[0].mxu0 %v1546
        %v2773 = vpop.f32.mrb[0].mxu0
        %v2774 = vadd.f32 0.0, %v2773
        %v2775 = vpop.f32.mrb[0].mxu0
        %2776 = vmatprep.mubr.f32.mxu0 0.0
        %2777 = vmatmul.mubr.f32.gmra.mrb[0].mxu0 %v1549
        %v2778 = vpop.f32.mrb[0].mxu0
        %v2779 = vadd.f32 0.0, %v2778
        %v2780 = vpop.f32.mrb[0].mxu0
        %2781 = vmatprep.mubr.f32.mxu0 0.0
        %2782 = vmatmul.mubr.f32.gmra.mrb[0].mxu0 %v1552
        %v2783 = vpop.f32.mrb[0].mxu0
        %v2784 = vadd.f32 0.0, %v2783
        %v2785 = vpop.f32.mrb[0].mxu0
        %2786 = vmatprep.mubr.f32.mxu0 0.0
        %2787 = vmatmul.mubr.f32.gmra.mrb[0].mxu0 %v1555
        %v2788 = vpop.f32.mrb[0].mxu0
        %v2789 = vadd.f32 0.0, %v2788
        %v2790 = vpop.f32.mrb[0].mxu0
        %2791 = vmatprep.mubr.f32.mxu0 0.0
        %2792 = vmatmul.mubr.f32.gmra.mrb[0].mxu0 %v1558
        %v2793 = vpop.f32.mrb[0].mxu0
        %v2794 = vadd.f32 0.0, %v2793
        %v2795 = vpop.f32.mrb[0].mxu0
        %2796 = vmatprep.mubr.f32.mxu0 0.0
        %2797 = vmatmul.mubr.f32.gmra.mrb[0].mxu0 %v1561
        %v2798 = vpop.f32.mrb[0].mxu0
        %v2799 = vadd.f32 0.0, %v2798
        %v2800 = vpop.f32.mrb[0].mxu0
        %2801 = vmatprep.mubr.f32.mxu0 0.0
        %2802 = vmatmul.mubr.f32.gmra.mrb[0].mxu0 %v1564
        %v2803 = vpop.f32.mrb[0].mxu0
        %v2804 = vadd.f32 0.0, %v2803
        %v2805 = vpop.f32.mrb[0].mxu0
        %2806 = vmatprep.mubr.f32.mxu0 0.0
        %2807 = vmatmul.mubr.f32.gmra.mrb[0].mxu0 %v1567
        %v2808 = vpop.f32.mrb[0].mxu0
        %v2809 = vadd.f32 0.0, %v2808
        %v2810 = vpop.f32.mrb[0].mxu0
        %2811 = vmatprep.mubr.f32.mxu0 0.0
        %2812 = vmatmul.mubr.f32.gmra.mrb[0].mxu0 %v1570
        %v2813 = vpop.f32.mrb[0].mxu0
        %v2814 = vadd.f32 0.0, %v2813
        %v2815 = vpop.f32.mrb[0].mxu0
        %2816 = vmatprep.mubr.f32.mxu0 0.0
        %2817 = vmatmul.mubr.f32.gmra.mrb[0].mxu0 %v1573
        %v2818 = vpop.f32.mrb[0].mxu0
        %v2819 = vadd.f32 0.0, %v2818
        %v2820 = vpop.f32.mrb[0].mxu0
        %2821 = vmatprep.mubr.f32.mxu0 0.0
        %2822 = vmatmul.mubr.f32.gmra.mrb[0].mxu0 %v1576
        %v2823 = vpop.f32.mrb[0].mxu0
        %v2824 = vadd.f32 0.0, %v2823
        %v2825 = vpop.f32.mrb[0].mxu0
        %2826 = vmatprep.mubr.f32.mxu0 0.0
        %2827 = vmatmul.mubr.f32.gmra.mrb[0].mxu0 %v1579
        %v2828 = vpop.f32.mrb[0].mxu0
        %v2829 = vadd.f32 0.0, %v2828
        %v2830 = vpop.f32.mrb[0].mxu0
        %2831 = vdwg.mxu0
        %v2832 = vadd.f32 %v2444, %v2674
        %v2833 = vadd.f32 %v2449, %v2679
        %v2834 = vadd.f32 %v2454, %v2684
        %v2835 = vadd.f32 %v2459, %v2689
        %v2836 = vadd.f32 %v2464, %v2694
        %v2837 = vadd.f32 %v2469, %v2699
        %v2838 = vadd.f32 %v2474, %v2704
        %v2839 = vadd.f32 %v2479, %v2709
        %v2840 = vadd.f32 %v2484, %v2714
        %v2841 = vadd.f32 %v2489, %v2719
        %v2842 = vadd.f32 %v2494, %v2724
        %v2843 = vadd.f32 %v2499, %v2729
        %v2844 = vadd.f32 %v2504, %v2734
        %v2845 = vadd.f32 %v2509, %v2739
        %v2846 = vadd.f32 %v2514, %v2744
        %v2847 = vadd.f32 %v2519, %v2749
        %v2848 = vadd.f32 %v2524, %v2754
        %v2849 = vadd.f32 %v2529, %v2759
        %v2850 = vadd.f32 %v2534, %v2764
        %v2851 = vadd.f32 %v2539, %v2769
        %v2852 = vadd.f32 %v2544, %v2774
        %v2853 = vadd.f32 %v2549, %v2779
        %v2854 = vadd.f32 %v2554, %v2784
        %v2855 = vadd.f32 %v2559, %v2789
        %v2856 = vadd.f32 %v2564, %v2794
        %v2857 = vadd.f32 %v2569, %v2799
        %v2858 = vadd.f32 %v2574, %v2804
        %v2859 = vadd.f32 %v2579, %v2809
        %v2860 = vadd.f32 %v2584, %v2814
        %v2861 = vadd.f32 %v2589, %v2819
        %v2862 = vadd.f32 %v2594, %v2824
        %v2863 = vadd.f32 %v2599, %v2829
        %s2864 = scalar_lea.vmem %s1, 28
        %v2865 = vld [vmem:[%s2864] sm:$0xf]
        %v2867 = vsel %vm475, %v343, 0
        %v2870 = vsel %vm475, %v344, 0
        %v2873 = vsel %vm475, %v345, 0
        %v2876 = vsel %vm475, %v346, 0
        %v2879 = vsel %vm475, %v347, 0
        %v2882 = vsel %vm475, %v348, 0
        %v2885 = vsel %vm475, %v349, 0
        %v2888 = vsel %vm475, %v350, 0
        %v2891 = vsel %vm475, %v351, 0
        %v2894 = vsel %vm475, %v352, 0
        %v2897 = vsel %vm475, %v353, 0
        %v2900 = vsel %vm475, %v354, 0
        %v2903 = vsel %vm475, %v355, 0
        %v2906 = vsel %vm475, %v356, 0
        %v2909 = vsel %vm475, %v357, 0
        %v2912 = vsel %vm475, %v358, 0
        %v2915 = vsel %vm475, %v359, 0
        %v2918 = vsel %vm475, %v360, 0
        %v2921 = vsel %vm475, %v361, 0
        %v2924 = vsel %vm475, %v362, 0
        %v2927 = vsel %vm475, %v363, 0
        %v2930 = vsel %vm475, %v364, 0
        %v2933 = vsel %vm475, %v365, 0
        %v2936 = vsel %vm475, %v366, 0
        %v2939 = vsel %vm475, %v367, 0
        %v2942 = vsel %vm475, %v368, 0
        %v2945 = vsel %vm475, %v369, 0
        %v2948 = vsel %vm475, %v370, 0
        %v2951 = vsel %vm475, %v371, 0
        %v2954 = vsel %vm475, %v372, 0
        %v2957 = vsel %vm475, %v373, 0
        %v2960 = vsel %vm475, %v374, 0
        %v2963 = vsel %vm572, %v2865, 0
        %2965 = vmatprep.subr.mxu0 0.0
        %2966 = vmatpush1.msra.mxu0 %v2963
        %2967 = vmatprep.subr.mxu0 0.0
        %2968 = vmatpush1.msra.mxu0 0.0
        %2969 = vmatprep.subr.mxu0 0.0
        %2970 = vmatpush1.msra.mxu0 0.0
        %2971 = vmatprep.subr.mxu0 0.0
        %2972 = vmatpush1.msra.mxu0 0.0
        %2973 = vmatprep.subr.mxu0 0.0
        %2974 = vmatpush1.msra.mxu0 0.0
        %2975 = vmatprep.subr.mxu0 0.0
        %2976 = vmatpush1.msra.mxu0 0.0
        %2977 = vmatprep.subr.mxu0 0.0
        %2978 = vmatpush1.msra.mxu0 0.0
        %2979 = vmatprep.subr.mxu0 0.0
        %2980 = vmatpush1.msra.mxu0 0.0
        %2981 = vmatprep.subr.mxu0 0.0
        %2982 = vmatpush1.msra.mxu0 0.0
        %2983 = vmatprep.subr.mxu0 0.0
        %2984 = vmatpush1.msra.mxu0 0.0
        %2985 = vmatprep.subr.mxu0 0.0
        %2986 = vmatpush1.msra.mxu0 0.0
        %2987 = vmatprep.subr.mxu0 0.0
        %2988 = vmatpush1.msra.mxu0 0.0
        %2989 = vmatprep.subr.mxu0 0.0
        %2990 = vmatpush1.msra.mxu0 0.0
        %2991 = vmatprep.subr.mxu0 0.0
        %2992 = vmatpush1.msra.mxu0 0.0
        %2993 = vmatprep.subr.mxu0 0.0
        %2994 = vmatpush1.msra.mxu0 0.0
        %2995 = vmatprep.subr.mxu0 0.0
        %2996 = vmatpush1.msra.mxu0 0.0
        %2997 = vmatprep.subr.mxu0 0.0
        %2998 = vmatpush1.msra.mxu0 0.0
        %2999 = vmatprep.subr.mxu0 0.0
        %3000 = vmatpush1.msra.mxu0 0.0
        %3001 = vmatprep.subr.mxu0 0.0
        %3002 = vmatpush1.msra.mxu0 0.0
        %3003 = vmatprep.subr.mxu0 0.0
        %3004 = vmatpush1.msra.mxu0 0.0
        %3005 = vmatprep.subr.mxu0 0.0
        %3006 = vmatpush1.msra.mxu0 0.0
        %3007 = vmatprep.subr.mxu0 0.0
        %3008 = vmatpush1.msra.mxu0 0.0
        %3009 = vmatprep.subr.mxu0 0.0
        %3010 = vmatpush1.msra.mxu0 0.0
        %3011 = vmatprep.subr.mxu0 0.0
        %3012 = vmatpush1.msra.mxu0 0.0
        %3013 = vmatprep.subr.mxu0 0.0
        %3014 = vmatpush1.msra.mxu0 0.0
        %3015 = vmatprep.subr.mxu0 0.0
        %3016 = vmatpush1.msra.mxu0 0.0
        %3017 = vmatprep.subr.mxu0 0.0
        %3018 = vmatpush1.msra.mxu0 0.0
        %3019 = vmatprep.subr.mxu0 0.0
        %3020 = vmatpush1.msra.mxu0 0.0
        %3021 = vmatprep.subr.mxu0 0.0
        %3022 = vmatpush1.msra.mxu0 0.0
        %3023 = vmatprep.subr.mxu0 0.0
        %3024 = vmatpush1.msra.mxu0 0.0
        %3025 = vmatprep.subr.mxu0 0.0
        %3026 = vmatpush1.msra.mxu0 0.0
        %3027 = vmatprep.subr.mxu0 0.0
        %3028 = vmatpush1.msra.mxu0 0.0
        %3029 = vmatprep.mubr.f32.mxu0 0.0
        %3030 = vmatmul.mubr.f32.gmra.mrb[0].mxu0 %v2867
        %v3031 = vpop.f32.mrb[0].mxu0
        %v3032 = vadd.f32 0.0, %v3031
        %v3033 = vpop.f32.mrb[0].mxu0
        %3034 = vmatprep.mubr.f32.mxu0 0.0
        %3035 = vmatmul.mubr.f32.gmra.mrb[0].mxu0 %v2870
        %v3036 = vpop.f32.mrb[0].mxu0
        %v3037 = vadd.f32 0.0, %v3036
        %v3038 = vpop.f32.mrb[0].mxu0
        %3039 = vmatprep.mubr.f32.mxu0 0.0
        %3040 = vmatmul.mubr.f32.gmra.mrb[0].mxu0 %v2873
        %v3041 = vpop.f32.mrb[0].mxu0
        %v3042 = vadd.f32 0.0, %v3041
        %v3043 = vpop.f32.mrb[0].mxu0
        %3044 = vmatprep.mubr.f32.mxu0 0.0
        %3045 = vmatmul.mubr.f32.gmra.mrb[0].mxu0 %v2876
        %v3046 = vpop.f32.mrb[0].mxu0
        %v3047 = vadd.f32 0.0, %v3046
        %v3048 = vpop.f32.mrb[0].mxu0
        %3049 = vmatprep.mubr.f32.mxu0 0.0
        %3050 = vmatmul.mubr.f32.gmra.mrb[0].mxu0 %v2879
        %v3051 = vpop.f32.mrb[0].mxu0
        %v3052 = vadd.f32 0.0, %v3051
        %v3053 = vpop.f32.mrb[0].mxu0
        %3054 = vmatprep.mubr.f32.mxu0 0.0
        %3055 = vmatmul.mubr.f32.gmra.mrb[0].mxu0 %v2882
        %v3056 = vpop.f32.mrb[0].mxu0
        %v3057 = vadd.f32 0.0, %v3056
        %v3058 = vpop.f32.mrb[0].mxu0
        %3059 = vmatprep.mubr.f32.mxu0 0.0
        %3060 = vmatmul.mubr.f32.gmra.mrb[0].mxu0 %v2885
        %v3061 = vpop.f32.mrb[0].mxu0
        %v3062 = vadd.f32 0.0, %v3061
        %v3063 = vpop.f32.mrb[0].mxu0
        %3064 = vmatprep.mubr.f32.mxu0 0.0
        %3065 = vmatmul.mubr.f32.gmra.mrb[0].mxu0 %v2888
        %v3066 = vpop.f32.mrb[0].mxu0
        %v3067 = vadd.f32 0.0, %v3066
        %v3068 = vpop.f32.mrb[0].mxu0
        %3069 = vmatprep.mubr.f32.mxu0 0.0
        %3070 = vmatmul.mubr.f32.gmra.mrb[0].mxu0 %v2891
        %v3071 = vpop.f32.mrb[0].mxu0
        %v3072 = vadd.f32 0.0, %v3071
        %v3073 = vpop.f32.mrb[0].mxu0
        %3074 = vmatprep.mubr.f32.mxu0 0.0
        %3075 = vmatmul.mubr.f32.gmra.mrb[0].mxu0 %v2894
        %v3076 = vpop.f32.mrb[0].mxu0
        %v3077 = vadd.f32 0.0, %v3076
        %v3078 = vpop.f32.mrb[0].mxu0
        %3079 = vmatprep.mubr.f32.mxu0 0.0
        %3080 = vmatmul.mubr.f32.gmra.mrb[0].mxu0 %v2897
        %v3081 = vpop.f32.mrb[0].mxu0
        %v3082 = vadd.f32 0.0, %v3081
        %v3083 = vpop.f32.mrb[0].mxu0
        %3084 = vmatprep.mubr.f32.mxu0 0.0
        %3085 = vmatmul.mubr.f32.gmra.mrb[0].mxu0 %v2900
        %v3086 = vpop.f32.mrb[0].mxu0
        %v3087 = vadd.f32 0.0, %v3086
        %v3088 = vpop.f32.mrb[0].mxu0
        %3089 = vmatprep.mubr.f32.mxu0 0.0
        %3090 = vmatmul.mubr.f32.gmra.mrb[0].mxu0 %v2903
        %v3091 = vpop.f32.mrb[0].mxu0
        %v3092 = vadd.f32 0.0, %v3091
        %v3093 = vpop.f32.mrb[0].mxu0
        %3094 = vmatprep.mubr.f32.mxu0 0.0
        %3095 = vmatmul.mubr.f32.gmra.mrb[0].mxu0 %v2906
        %v3096 = vpop.f32.mrb[0].mxu0
        %v3097 = vadd.f32 0.0, %v3096
        %v3098 = vpop.f32.mrb[0].mxu0
        %3099 = vmatprep.mubr.f32.mxu0 0.0
        %3100 = vmatmul.mubr.f32.gmra.mrb[0].mxu0 %v2909
        %v3101 = vpop.f32.mrb[0].mxu0
        %v3102 = vadd.f32 0.0, %v3101
        %v3103 = vpop.f32.mrb[0].mxu0
        %3104 = vmatprep.mubr.f32.mxu0 0.0
        %3105 = vmatmul.mubr.f32.gmra.mrb[0].mxu0 %v2912
        %v3106 = vpop.f32.mrb[0].mxu0
        %v3107 = vadd.f32 0.0, %v3106
        %v3108 = vpop.f32.mrb[0].mxu0
        %3109 = vmatprep.mubr.f32.mxu0 0.0
        %3110 = vmatmul.mubr.f32.gmra.mrb[0].mxu0 %v2915
        %v3111 = vpop.f32.mrb[0].mxu0
        %v3112 = vadd.f32 0.0, %v3111
        %v3113 = vpop.f32.mrb[0].mxu0
        %3114 = vmatprep.mubr.f32.mxu0 0.0
        %3115 = vmatmul.mubr.f32.gmra.mrb[0].mxu0 %v2918
        %v3116 = vpop.f32.mrb[0].mxu0
        %v3117 = vadd.f32 0.0, %v3116
        %v3118 = vpop.f32.mrb[0].mxu0
        %3119 = vmatprep.mubr.f32.mxu0 0.0
        %3120 = vmatmul.mubr.f32.gmra.mrb[0].mxu0 %v2921
        %v3121 = vpop.f32.mrb[0].mxu0
        %v3122 = vadd.f32 0.0, %v3121
        %v3123 = vpop.f32.mrb[0].mxu0
        %3124 = vmatprep.mubr.f32.mxu0 0.0
        %3125 = vmatmul.mubr.f32.gmra.mrb[0].mxu0 %v2924
        %v3126 = vpop.f32.mrb[0].mxu0
        %v3127 = vadd.f32 0.0, %v3126
        %v3128 = vpop.f32.mrb[0].mxu0
        %3129 = vmatprep.mubr.f32.mxu0 0.0
        %3130 = vmatmul.mubr.f32.gmra.mrb[0].mxu0 %v2927
        %v3131 = vpop.f32.mrb[0].mxu0
        %v3132 = vadd.f32 0.0, %v3131
        %v3133 = vpop.f32.mrb[0].mxu0
        %3134 = vmatprep.mubr.f32.mxu0 0.0
        %3135 = vmatmul.mubr.f32.gmra.mrb[0].mxu0 %v2930
        %v3136 = vpop.f32.mrb[0].mxu0
        %v3137 = vadd.f32 0.0, %v3136
        %v3138 = vpop.f32.mrb[0].mxu0
        %3139 = vmatprep.mubr.f32.mxu0 0.0
        %3140 = vmatmul.mubr.f32.gmra.mrb[0].mxu0 %v2933
        %v3141 = vpop.f32.mrb[0].mxu0
        %v3142 = vadd.f32 0.0, %v3141
        %v3143 = vpop.f32.mrb[0].mxu0
        %3144 = vmatprep.mubr.f32.mxu0 0.0
        %3145 = vmatmul.mubr.f32.gmra.mrb[0].mxu0 %v2936
        %v3146 = vpop.f32.mrb[0].mxu0
        %v3147 = vadd.f32 0.0, %v3146
        %v3148 = vpop.f32.mrb[0].mxu0
        %3149 = vmatprep.mubr.f32.mxu0 0.0
        %3150 = vmatmul.mubr.f32.gmra.mrb[0].mxu0 %v2939
        %v3151 = vpop.f32.mrb[0].mxu0
        %v3152 = vadd.f32 0.0, %v3151
        %v3153 = vpop.f32.mrb[0].mxu0
        %3154 = vmatprep.mubr.f32.mxu0 0.0
        %3155 = vmatmul.mubr.f32.gmra.mrb[0].mxu0 %v2942
        %v3156 = vpop.f32.mrb[0].mxu0
        %v3157 = vadd.f32 0.0, %v3156
        %v3158 = vpop.f32.mrb[0].mxu0
        %3159 = vmatprep.mubr.f32.mxu0 0.0
        %3160 = vmatmul.mubr.f32.gmra.mrb[0].mxu0 %v2945
        %v3161 = vpop.f32.mrb[0].mxu0
        %v3162 = vadd.f32 0.0, %v3161
        %v3163 = vpop.f32.mrb[0].mxu0
        %3164 = vmatprep.mubr.f32.mxu0 0.0
        %3165 = vmatmul.mubr.f32.gmra.mrb[0].mxu0 %v2948
        %v3166 = vpop.f32.mrb[0].mxu0
        %v3167 = vadd.f32 0.0, %v3166
        %v3168 = vpop.f32.mrb[0].mxu0
        %3169 = vmatprep.mubr.f32.mxu0 0.0
        %3170 = vmatmul.mubr.f32.gmra.mrb[0].mxu0 %v2951
        %v3171 = vpop.f32.mrb[0].mxu0
        %v3172 = vadd.f32 0.0, %v3171
        %v3173 = vpop.f32.mrb[0].mxu0
        %3174 = vmatprep.mubr.f32.mxu0 0.0
        %3175 = vmatmul.mubr.f32.gmra.mrb[0].mxu0 %v2954
        %v3176 = vpop.f32.mrb[0].mxu0
        %v3177 = vadd.f32 0.0, %v3176
        %v3178 = vpop.f32.mrb[0].mxu0
        %3179 = vmatprep.mubr.f32.mxu0 0.0
        %3180 = vmatmul.mubr.f32.gmra.mrb[0].mxu0 %v2957
        %v3181 = vpop.f32.mrb[0].mxu0
        %v3182 = vadd.f32 0.0, %v3181
        %v3183 = vpop.f32.mrb[0].mxu0
        %3184 = vmatprep.mubr.f32.mxu0 0.0
        %3185 = vmatmul.mubr.f32.gmra.mrb[0].mxu0 %v2960
        %v3186 = vpop.f32.mrb[0].mxu0
        %v3187 = vadd.f32 0.0, %v3186
        %v3188 = vpop.f32.mrb[0].mxu0
        %3189 = vdwg.mxu0
        %v3190 = vadd.f32 %v2832, %v3032
        %v3191 = vadd.f32 %v2833, %v3037
        %v3192 = vadd.f32 %v2834, %v3042
        %v3193 = vadd.f32 %v2835, %v3047
        %v3194 = vadd.f32 %v2836, %v3052
        %v3195 = vadd.f32 %v2837, %v3057
        %v3196 = vadd.f32 %v2838, %v3062
        %v3197 = vadd.f32 %v2839, %v3067
        %v3198 = vadd.f32 %v2840, %v3072
        %v3199 = vadd.f32 %v2841, %v3077
        %v3200 = vadd.f32 %v2842, %v3082
        %v3201 = vadd.f32 %v2843, %v3087
        %v3202 = vadd.f32 %v2844, %v3092
        %v3203 = vadd.f32 %v2845, %v3097
        %v3204 = vadd.f32 %v2846, %v3102
        %v3205 = vadd.f32 %v2847, %v3107
        %v3206 = vadd.f32 %v2848, %v3112
        %v3207 = vadd.f32 %v2849, %v3117
        %v3208 = vadd.f32 %v2850, %v3122
        %v3209 = vadd.f32 %v2851, %v3127
        %v3210 = vadd.f32 %v2852, %v3132
        %v3211 = vadd.f32 %v2853, %v3137
        %v3212 = vadd.f32 %v2854, %v3142
        %v3213 = vadd.f32 %v2855, %v3147
        %v3214 = vadd.f32 %v2856, %v3152
        %v3215 = vadd.f32 %v2857, %v3157
        %v3216 = vadd.f32 %v2858, %v3162
        %v3217 = vadd.f32 %v2859, %v3167
        %v3218 = vadd.f32 %v2860, %v3172
        %v3219 = vadd.f32 %v2861, %v3177
        %v3220 = vadd.f32 %v2862, %v3182
        %v3221 = vadd.f32 %v2863, %v3187
        %s3222 = scalar_lea.vmem %s181, 256
        %3223 = vst.msk [vmem:[%s3222] sm:$0xff] %vm1841, %v3190
        %3224 = vst.msk [vmem:[%s3222 + $0x8] sm:$0xff] %vm1841, %v3191
        %3225 = vst.msk [vmem:[%s3222 + $0x10] sm:$0xff] %vm1841, %v3192
        %3226 = vst.msk [vmem:[%s3222 + $0x18] sm:$0xff] %vm1841, %v3193
        %3227 = vst.msk [vmem:[%s3222 + $0x20] sm:$0xff] %vm1841, %v3194
        %3228 = vst.msk [vmem:[%s3222 + $0x28] sm:$0xff] %vm1841, %v3195
        %3229 = vst.msk [vmem:[%s3222 + $0x30] sm:$0xff] %vm1841, %v3196
        %3230 = vst.msk [vmem:[%s3222 + $0x38] sm:$0xff] %vm1841, %v3197
        %3231 = vst.msk [vmem:[%s3222 + $0x40] sm:$0xff] %vm1841, %v3198
        %3232 = vst.msk [vmem:[%s3222 + $0x48] sm:$0xff] %vm1841, %v3199
        %3233 = vst.msk [vmem:[%s3222 + $0x50] sm:$0xff] %vm1841, %v3200
        %3234 = vst.msk [vmem:[%s3222 + $0x58] sm:$0xff] %vm1841, %v3201
        %3235 = vst.msk [vmem:[%s3222 + $0x60] sm:$0xff] %vm1841, %v3202
        %3236 = vst.msk [vmem:[%s3222 + $0x68] sm:$0xff] %vm1841, %v3203
        %3237 = vst.msk [vmem:[%s3222 + $0x70] sm:$0xff] %vm1841, %v3204
        %3238 = vst.msk [vmem:[%s3222 + $0x78] sm:$0xff] %vm1841, %v3205
        %3239 = vst.msk [vmem:[%s3222 + $0x80] sm:$0xff] %vm1841, %v3206
        %3240 = vst.msk [vmem:[%s3222 + $0x88] sm:$0xff] %vm1841, %v3207
        %3241 = vst.msk [vmem:[%s3222 + $0x90] sm:$0xff] %vm1841, %v3208
        %3242 = vst.msk [vmem:[%s3222 + $0x98] sm:$0xff] %vm1841, %v3209
        %3243 = vst.msk [vmem:[%s3222 + $0xa0] sm:$0xff] %vm1841, %v3210
        %3244 = vst.msk [vmem:[%s3222 + $0xa8] sm:$0xff] %vm1841, %v3211
        %3245 = vst.msk [vmem:[%s3222 + $0xb0] sm:$0xff] %vm1841, %v3212
        %3246 = vst.msk [vmem:[%s3222 + $0xb8] sm:$0xff] %vm1841, %v3213
        %3247 = vst.msk [vmem:[%s3222 + $0xc0] sm:$0xff] %vm1841, %v3214
        %3248 = vst.msk [vmem:[%s3222 + $0xc8] sm:$0xff] %vm1841, %v3215
        %3249 = vst.msk [vmem:[%s3222 + $0xd0] sm:$0xff] %vm1841, %v3216
        %3250 = vst.msk [vmem:[%s3222 + $0xd8] sm:$0xff] %vm1841, %v3217
        %3251 = vst.msk [vmem:[%s3222 + $0xe0] sm:$0xff] %vm1841, %v3218
        %3252 = vst.msk [vmem:[%s3222 + $0xe8] sm:$0xff] %vm1841, %v3219
        %3253 = vst.msk [vmem:[%s3222 + $0xf0] sm:$0xff] %vm1841, %v3220
        %3254 = vst.msk [vmem:[%s3222 + $0xf8] sm:$0xff] %vm1841, %v3221
        %v3255 = vsel %vm1841, %v3190, 0.0
        %v3256 = vsel %vm1841, %v3191, 0.0
        %v3257 = vadd.f32 %v3255, %v3256
        %v3258 = vsel %vm1841, %v3192, 0.0
        %v3259 = vadd.f32 %v3257, %v3258
        %v3260 = vsel %vm1841, %v3193, 0.0
        %v3261 = vadd.f32 %v3259, %v3260
        %v3262 = vsel %vm1841, %v3194, 0.0
        %v3263 = vadd.f32 %v3261, %v3262
        %v3264 = vsel %vm1841, %v3195, 0.0
        %v3265 = vadd.f32 %v3263, %v3264
        %v3266 = vsel %vm1841, %v3196, 0.0
        %v3267 = vadd.f32 %v3265, %v3266
        %v3268 = vsel %vm1841, %v3197, 0.0
        %v3269 = vadd.f32 %v3267, %v3268
        %v3270 = vsel %vm1841, %v3198, 0.0
        %v3271 = vadd.f32 %v3269, %v3270
        %v3272 = vsel %vm1841, %v3199, 0.0
        %v3273 = vadd.f32 %v3271, %v3272
        %v3274 = vsel %vm1841, %v3200, 0.0
        %v3275 = vadd.f32 %v3273, %v3274
        %v3276 = vsel %vm1841, %v3201, 0.0
        %v3277 = vadd.f32 %v3275, %v3276
        %v3278 = vsel %vm1841, %v3202, 0.0
        %v3279 = vadd.f32 %v3277, %v3278
        %v3280 = vsel %vm1841, %v3203, 0.0
        %v3281 = vadd.f32 %v3279, %v3280
        %v3282 = vsel %vm1841, %v3204, 0.0
        %v3283 = vadd.f32 %v3281, %v3282
        %v3284 = vsel %vm1841, %v3205, 0.0
        %v3285 = vadd.f32 %v3283, %v3284
        %v3286 = vsel %vm1841, %v3206, 0.0
        %v3287 = vadd.f32 %v3285, %v3286
        %v3288 = vsel %vm1841, %v3207, 0.0
        %v3289 = vadd.f32 %v3287, %v3288
        %v3290 = vsel %vm1841, %v3208, 0.0
        %v3291 = vadd.f32 %v3289, %v3290
        %v3292 = vsel %vm1841, %v3209, 0.0
        %v3293 = vadd.f32 %v3291, %v3292
        %v3294 = vsel %vm1841, %v3210, 0.0
        %v3295 = vadd.f32 %v3293, %v3294
        %v3296 = vsel %vm1841, %v3211, 0.0
        %v3297 = vadd.f32 %v3295, %v3296
        %v3298 = vsel %vm1841, %v3212, 0.0
        %v3299 = vadd.f32 %v3297, %v3298
        %v3300 = vsel %vm1841, %v3213, 0.0
        %v3301 = vadd.f32 %v3299, %v3300
        %v3302 = vsel %vm1841, %v3214, 0.0
        %v3303 = vadd.f32 %v3301, %v3302
        %v3304 = vsel %vm1841, %v3215, 0.0
        %v3305 = vadd.f32 %v3303, %v3304
        %v3306 = vsel %vm1841, %v3216, 0.0
        %v3307 = vadd.f32 %v3305, %v3306
        %v3308 = vsel %vm1841, %v3217, 0.0
        %v3309 = vadd.f32 %v3307, %v3308
        %v3310 = vsel %vm1841, %v3218, 0.0
        %v3311 = vadd.f32 %v3309, %v3310
        %v3312 = vsel %vm1841, %v3219, 0.0
        %v3313 = vadd.f32 %v3311, %v3312
        %v3314 = vsel %vm1841, %v3220, 0.0
        %v3315 = vadd.f32 %v3313, %v3314
        %v3316 = vsel %vm1841, %v3221, 0.0
        %v3317 = vadd.f32 %v3315, %v3316
        %v3318 = vrot.slane %v3317, 4
        %v3319 = vadd.f32 %v3317, %v3318
        %v3320 = vrot.slane %v3319, 2
        %v3321 = vadd.f32 %v3319, %v3320
        %v3322 = vrot.slane %v3321, 1
        %v3323 = vadd.f32 %v3321, %v3322
        %v3324 = vadd.f32 %v1943, %v3323
        %v3325 = vmul.f32 %v3190, %v3190
        %v3326 = vmul.f32 %v3191, %v3191
        %v3327 = vmul.f32 %v3192, %v3192
        %v3328 = vmul.f32 %v3193, %v3193
        %v3329 = vmul.f32 %v3194, %v3194
        %v3330 = vmul.f32 %v3195, %v3195
        %v3331 = vmul.f32 %v3196, %v3196
        %v3332 = vmul.f32 %v3197, %v3197
        %v3333 = vmul.f32 %v3198, %v3198
        %v3334 = vmul.f32 %v3199, %v3199
        %v3335 = vmul.f32 %v3200, %v3200
        %v3336 = vmul.f32 %v3201, %v3201
        %v3337 = vmul.f32 %v3202, %v3202
        %v3338 = vmul.f32 %v3203, %v3203
        %v3339 = vmul.f32 %v3204, %v3204
        %v3340 = vmul.f32 %v3205, %v3205
        %v3341 = vmul.f32 %v3206, %v3206
        %v3342 = vmul.f32 %v3207, %v3207
        %v3343 = vmul.f32 %v3208, %v3208
        %v3344 = vmul.f32 %v3209, %v3209
        %v3345 = vmul.f32 %v3210, %v3210
        %v3346 = vmul.f32 %v3211, %v3211
        %v3347 = vmul.f32 %v3212, %v3212
        %v3348 = vmul.f32 %v3213, %v3213
        %v3349 = vmul.f32 %v3214, %v3214
        %v3350 = vmul.f32 %v3215, %v3215
        %v3351 = vmul.f32 %v3216, %v3216
        %v3352 = vmul.f32 %v3217, %v3217
        %v3353 = vmul.f32 %v3218, %v3218
        %v3354 = vmul.f32 %v3219, %v3219
        %v3355 = vmul.f32 %v3220, %v3220
        %v3356 = vmul.f32 %v3221, %v3221
        %v3357 = vsel %vm1841, %v3325, 0.0
        %v3358 = vsel %vm1841, %v3326, 0.0
        %v3359 = vadd.f32 %v3357, %v3358
        %v3360 = vsel %vm1841, %v3327, 0.0
        %v3361 = vadd.f32 %v3359, %v3360
        %v3362 = vsel %vm1841, %v3328, 0.0
        %v3363 = vadd.f32 %v3361, %v3362
        %v3364 = vsel %vm1841, %v3329, 0.0
        %v3365 = vadd.f32 %v3363, %v3364
        %v3366 = vsel %vm1841, %v3330, 0.0
        %v3367 = vadd.f32 %v3365, %v3366
        %v3368 = vsel %vm1841, %v3331, 0.0
        %v3369 = vadd.f32 %v3367, %v3368
        %v3370 = vsel %vm1841, %v3332, 0.0
        %v3371 = vadd.f32 %v3369, %v3370
        %v3372 = vsel %vm1841, %v3333, 0.0
        %v3373 = vadd.f32 %v3371, %v3372
        %v3374 = vsel %vm1841, %v3334, 0.0
        %v3375 = vadd.f32 %v3373, %v3374
        %v3376 = vsel %vm1841, %v3335, 0.0
        %v3377 = vadd.f32 %v3375, %v3376
        %v3378 = vsel %vm1841, %v3336, 0.0
        %v3379 = vadd.f32 %v3377, %v3378
        %v3380 = vsel %vm1841, %v3337, 0.0
        %v3381 = vadd.f32 %v3379, %v3380
        %v3382 = vsel %vm1841, %v3338, 0.0
        %v3383 = vadd.f32 %v3381, %v3382
        %v3384 = vsel %vm1841, %v3339, 0.0
        %v3385 = vadd.f32 %v3383, %v3384
        %v3386 = vsel %vm1841, %v3340, 0.0
        %v3387 = vadd.f32 %v3385, %v3386
        %v3388 = vsel %vm1841, %v3341, 0.0
        %v3389 = vadd.f32 %v3387, %v3388
        %v3390 = vsel %vm1841, %v3342, 0.0
        %v3391 = vadd.f32 %v3389, %v3390
        %v3392 = vsel %vm1841, %v3343, 0.0
        %v3393 = vadd.f32 %v3391, %v3392
        %v3394 = vsel %vm1841, %v3344, 0.0
        %v3395 = vadd.f32 %v3393, %v3394
        %v3396 = vsel %vm1841, %v3345, 0.0
        %v3397 = vadd.f32 %v3395, %v3396
        %v3398 = vsel %vm1841, %v3346, 0.0
        %v3399 = vadd.f32 %v3397, %v3398
        %v3400 = vsel %vm1841, %v3347, 0.0
        %v3401 = vadd.f32 %v3399, %v3400
        %v3402 = vsel %vm1841, %v3348, 0.0
        %v3403 = vadd.f32 %v3401, %v3402
        %v3404 = vsel %vm1841, %v3349, 0.0
        %v3405 = vadd.f32 %v3403, %v3404
        %v3406 = vsel %vm1841, %v3350, 0.0
        %v3407 = vadd.f32 %v3405, %v3406
        %v3408 = vsel %vm1841, %v3351, 0.0
        %v3409 = vadd.f32 %v3407, %v3408
        %v3410 = vsel %vm1841, %v3352, 0.0
        %v3411 = vadd.f32 %v3409, %v3410
        %v3412 = vsel %vm1841, %v3353, 0.0
        %v3413 = vadd.f32 %v3411, %v3412
        %v3414 = vsel %vm1841, %v3354, 0.0
        %v3415 = vadd.f32 %v3413, %v3414
        %v3416 = vsel %vm1841, %v3355, 0.0
        %v3417 = vadd.f32 %v3415, %v3416
        %v3418 = vsel %vm1841, %v3356, 0.0
        %v3419 = vadd.f32 %v3417, %v3418
        %v3420 = vrot.slane %v3419, 4
        %v3421 = vadd.f32 %v3419, %v3420
        %v3422 = vrot.slane %v3421, 2
        %v3423 = vadd.f32 %v3421, %v3422
        %v3424 = vrot.slane %v3423, 1
        %v3425 = vadd.f32 %v3423, %v3424
        %v3426 = vadd.f32 %v2045, %v3425
        %s3427 = scalar_lea.vmem %s1, 32
        %v3428 = vld [vmem:[%s3427] sm:$0xf]
        %s3429 = scalar_lea.vmem %s1, 36
        %v3430 = vld [vmem:[%s3429] sm:$0xf]
        %v3432 = vsel %vm572, %v3430, 0
        %3434 = vmatprep.subr.mxu0 0.0
        %3435 = vmatpush1.msra.mxu0 %v3432
        %3436 = vmatprep.subr.mxu0 0.0
        %3437 = vmatpush1.msra.mxu0 0.0
        %3438 = vmatprep.subr.mxu0 0.0
        %3439 = vmatpush1.msra.mxu0 0.0
        %3440 = vmatprep.subr.mxu0 0.0
        %3441 = vmatpush1.msra.mxu0 0.0
        %3442 = vmatprep.subr.mxu0 0.0
        %3443 = vmatpush1.msra.mxu0 0.0
        %3444 = vmatprep.subr.mxu0 0.0
        %3445 = vmatpush1.msra.mxu0 0.0
        %3446 = vmatprep.subr.mxu0 0.0
        %3447 = vmatpush1.msra.mxu0 0.0
        %3448 = vmatprep.subr.mxu0 0.0
        %3449 = vmatpush1.msra.mxu0 0.0
        %3450 = vmatprep.subr.mxu0 0.0
        %3451 = vmatpush1.msra.mxu0 0.0
        %3452 = vmatprep.subr.mxu0 0.0
        %3453 = vmatpush1.msra.mxu0 0.0
        %3454 = vmatprep.subr.mxu0 0.0
        %3455 = vmatpush1.msra.mxu0 0.0
        %3456 = vmatprep.subr.mxu0 0.0
        %3457 = vmatpush1.msra.mxu0 0.0
        %3458 = vmatprep.subr.mxu0 0.0
        %3459 = vmatpush1.msra.mxu0 0.0
        %3460 = vmatprep.subr.mxu0 0.0
        %3461 = vmatpush1.msra.mxu0 0.0
        %3462 = vmatprep.subr.mxu0 0.0
        %3463 = vmatpush1.msra.mxu0 0.0
        %3464 = vmatprep.subr.mxu0 0.0
        %3465 = vmatpush1.msra.mxu0 0.0
        %3466 = vmatprep.subr.mxu0 0.0
        %3467 = vmatpush1.msra.mxu0 0.0
        %3468 = vmatprep.subr.mxu0 0.0
        %3469 = vmatpush1.msra.mxu0 0.0
        %3470 = vmatprep.subr.mxu0 0.0
        %3471 = vmatpush1.msra.mxu0 0.0
        %3472 = vmatprep.subr.mxu0 0.0
        %3473 = vmatpush1.msra.mxu0 0.0
        %3474 = vmatprep.subr.mxu0 0.0
        %3475 = vmatpush1.msra.mxu0 0.0
        %3476 = vmatprep.subr.mxu0 0.0
        %3477 = vmatpush1.msra.mxu0 0.0
        %3478 = vmatprep.subr.mxu0 0.0
        %3479 = vmatpush1.msra.mxu0 0.0
        %3480 = vmatprep.subr.mxu0 0.0
        %3481 = vmatpush1.msra.mxu0 0.0
        %3482 = vmatprep.subr.mxu0 0.0
        %3483 = vmatpush1.msra.mxu0 0.0
        %3484 = vmatprep.subr.mxu0 0.0
        %3485 = vmatpush1.msra.mxu0 0.0
        %3486 = vmatprep.subr.mxu0 0.0
        %3487 = vmatpush1.msra.mxu0 0.0
        %3488 = vmatprep.subr.mxu0 0.0
        %3489 = vmatpush1.msra.mxu0 0.0
        %3490 = vmatprep.subr.mxu0 0.0
        %3491 = vmatpush1.msra.mxu0 0.0
        %3492 = vmatprep.subr.mxu0 0.0
        %3493 = vmatpush1.msra.mxu0 0.0
        %3494 = vmatprep.subr.mxu0 0.0
        %3495 = vmatpush1.msra.mxu0 0.0
        %3496 = vmatprep.subr.mxu0 0.0
        %3497 = vmatpush1.msra.mxu0 0.0
        %3498 = vmatprep.mubr.f32.mxu0 0.0
        %3499 = vmatmul.mubr.f32.gmra.mrb[0].mxu0 %v1486
        %v3500 = vpop.f32.mrb[0].mxu0
        %v3501 = vadd.f32 0.0, %v3500
        %v3502 = vpop.f32.mrb[0].mxu0
        %3503 = vmatprep.mubr.f32.mxu0 0.0
        %3504 = vmatmul.mubr.f32.gmra.mrb[0].mxu0 %v1489
        %v3505 = vpop.f32.mrb[0].mxu0
        %v3506 = vadd.f32 0.0, %v3505
        %v3507 = vpop.f32.mrb[0].mxu0
        %3508 = vmatprep.mubr.f32.mxu0 0.0
        %3509 = vmatmul.mubr.f32.gmra.mrb[0].mxu0 %v1492
        %v3510 = vpop.f32.mrb[0].mxu0
        %v3511 = vadd.f32 0.0, %v3510
        %v3512 = vpop.f32.mrb[0].mxu0
        %3513 = vmatprep.mubr.f32.mxu0 0.0
        %3514 = vmatmul.mubr.f32.gmra.mrb[0].mxu0 %v1495
        %v3515 = vpop.f32.mrb[0].mxu0
        %v3516 = vadd.f32 0.0, %v3515
        %v3517 = vpop.f32.mrb[0].mxu0
        %3518 = vmatprep.mubr.f32.mxu0 0.0
        %3519 = vmatmul.mubr.f32.gmra.mrb[0].mxu0 %v1498
        %v3520 = vpop.f32.mrb[0].mxu0
        %v3521 = vadd.f32 0.0, %v3520
        %v3522 = vpop.f32.mrb[0].mxu0
        %3523 = vmatprep.mubr.f32.mxu0 0.0
        %3524 = vmatmul.mubr.f32.gmra.mrb[0].mxu0 %v1501
        %v3525 = vpop.f32.mrb[0].mxu0
        %v3526 = vadd.f32 0.0, %v3525
        %v3527 = vpop.f32.mrb[0].mxu0
        %3528 = vmatprep.mubr.f32.mxu0 0.0
        %3529 = vmatmul.mubr.f32.gmra.mrb[0].mxu0 %v1504
        %v3530 = vpop.f32.mrb[0].mxu0
        %v3531 = vadd.f32 0.0, %v3530
        %v3532 = vpop.f32.mrb[0].mxu0
        %3533 = vmatprep.mubr.f32.mxu0 0.0
        %3534 = vmatmul.mubr.f32.gmra.mrb[0].mxu0 %v1507
        %v3535 = vpop.f32.mrb[0].mxu0
        %v3536 = vadd.f32 0.0, %v3535
        %v3537 = vpop.f32.mrb[0].mxu0
        %3538 = vmatprep.mubr.f32.mxu0 0.0
        %3539 = vmatmul.mubr.f32.gmra.mrb[0].mxu0 %v1510
        %v3540 = vpop.f32.mrb[0].mxu0
        %v3541 = vadd.f32 0.0, %v3540
        %v3542 = vpop.f32.mrb[0].mxu0
        %3543 = vmatprep.mubr.f32.mxu0 0.0
        %3544 = vmatmul.mubr.f32.gmra.mrb[0].mxu0 %v1513
        %v3545 = vpop.f32.mrb[0].mxu0
        %v3546 = vadd.f32 0.0, %v3545
        %v3547 = vpop.f32.mrb[0].mxu0
        %3548 = vmatprep.mubr.f32.mxu0 0.0
        %3549 = vmatmul.mubr.f32.gmra.mrb[0].mxu0 %v1516
        %v3550 = vpop.f32.mrb[0].mxu0
        %v3551 = vadd.f32 0.0, %v3550
        %v3552 = vpop.f32.mrb[0].mxu0
        %3553 = vmatprep.mubr.f32.mxu0 0.0
        %3554 = vmatmul.mubr.f32.gmra.mrb[0].mxu0 %v1519
        %v3555 = vpop.f32.mrb[0].mxu0
        %v3556 = vadd.f32 0.0, %v3555
        %v3557 = vpop.f32.mrb[0].mxu0
        %3558 = vmatprep.mubr.f32.mxu0 0.0
        %3559 = vmatmul.mubr.f32.gmra.mrb[0].mxu0 %v1522
        %v3560 = vpop.f32.mrb[0].mxu0
        %v3561 = vadd.f32 0.0, %v3560
        %v3562 = vpop.f32.mrb[0].mxu0
        %3563 = vmatprep.mubr.f32.mxu0 0.0
        %3564 = vmatmul.mubr.f32.gmra.mrb[0].mxu0 %v1525
        %v3565 = vpop.f32.mrb[0].mxu0
        %v3566 = vadd.f32 0.0, %v3565
        %v3567 = vpop.f32.mrb[0].mxu0
        %3568 = vmatprep.mubr.f32.mxu0 0.0
        %3569 = vmatmul.mubr.f32.gmra.mrb[0].mxu0 %v1528
        %v3570 = vpop.f32.mrb[0].mxu0
        %v3571 = vadd.f32 0.0, %v3570
        %v3572 = vpop.f32.mrb[0].mxu0
        %3573 = vmatprep.mubr.f32.mxu0 0.0
        %3574 = vmatmul.mubr.f32.gmra.mrb[0].mxu0 %v1531
        %v3575 = vpop.f32.mrb[0].mxu0
        %v3576 = vadd.f32 0.0, %v3575
        %v3577 = vpop.f32.mrb[0].mxu0
        %3578 = vmatprep.mubr.f32.mxu0 0.0
        %3579 = vmatmul.mubr.f32.gmra.mrb[0].mxu0 %v1534
        %v3580 = vpop.f32.mrb[0].mxu0
        %v3581 = vadd.f32 0.0, %v3580
        %v3582 = vpop.f32.mrb[0].mxu0
        %3583 = vmatprep.mubr.f32.mxu0 0.0
        %3584 = vmatmul.mubr.f32.gmra.mrb[0].mxu0 %v1537
        %v3585 = vpop.f32.mrb[0].mxu0
        %v3586 = vadd.f32 0.0, %v3585
        %v3587 = vpop.f32.mrb[0].mxu0
        %3588 = vmatprep.mubr.f32.mxu0 0.0
        %3589 = vmatmul.mubr.f32.gmra.mrb[0].mxu0 %v1540
        %v3590 = vpop.f32.mrb[0].mxu0
        %v3591 = vadd.f32 0.0, %v3590
        %v3592 = vpop.f32.mrb[0].mxu0
        %3593 = vmatprep.mubr.f32.mxu0 0.0
        %3594 = vmatmul.mubr.f32.gmra.mrb[0].mxu0 %v1543
        %v3595 = vpop.f32.mrb[0].mxu0
        %v3596 = vadd.f32 0.0, %v3595
        %v3597 = vpop.f32.mrb[0].mxu0
        %3598 = vmatprep.mubr.f32.mxu0 0.0
        %3599 = vmatmul.mubr.f32.gmra.mrb[0].mxu0 %v1546
        %v3600 = vpop.f32.mrb[0].mxu0
        %v3601 = vadd.f32 0.0, %v3600
        %v3602 = vpop.f32.mrb[0].mxu0
        %3603 = vmatprep.mubr.f32.mxu0 0.0
        %3604 = vmatmul.mubr.f32.gmra.mrb[0].mxu0 %v1549
        %v3605 = vpop.f32.mrb[0].mxu0
        %v3606 = vadd.f32 0.0, %v3605
        %v3607 = vpop.f32.mrb[0].mxu0
        %3608 = vmatprep.mubr.f32.mxu0 0.0
        %3609 = vmatmul.mubr.f32.gmra.mrb[0].mxu0 %v1552
        %v3610 = vpop.f32.mrb[0].mxu0
        %v3611 = vadd.f32 0.0, %v3610
        %v3612 = vpop.f32.mrb[0].mxu0
        %3613 = vmatprep.mubr.f32.mxu0 0.0
        %3614 = vmatmul.mubr.f32.gmra.mrb[0].mxu0 %v1555
        %v3615 = vpop.f32.mrb[0].mxu0
        %v3616 = vadd.f32 0.0, %v3615
        %v3617 = vpop.f32.mrb[0].mxu0
        %3618 = vmatprep.mubr.f32.mxu0 0.0
        %3619 = vmatmul.mubr.f32.gmra.mrb[0].mxu0 %v1558
        %v3620 = vpop.f32.mrb[0].mxu0
        %v3621 = vadd.f32 0.0, %v3620
        %v3622 = vpop.f32.mrb[0].mxu0
        %3623 = vmatprep.mubr.f32.mxu0 0.0
        %3624 = vmatmul.mubr.f32.gmra.mrb[0].mxu0 %v1561
        %v3625 = vpop.f32.mrb[0].mxu0
        %v3626 = vadd.f32 0.0, %v3625
        %v3627 = vpop.f32.mrb[0].mxu0
        %3628 = vmatprep.mubr.f32.mxu0 0.0
        %3629 = vmatmul.mubr.f32.gmra.mrb[0].mxu0 %v1564
        %v3630 = vpop.f32.mrb[0].mxu0
        %v3631 = vadd.f32 0.0, %v3630
        %v3632 = vpop.f32.mrb[0].mxu0
        %3633 = vmatprep.mubr.f32.mxu0 0.0
        %3634 = vmatmul.mubr.f32.gmra.mrb[0].mxu0 %v1567
        %v3635 = vpop.f32.mrb[0].mxu0
        %v3636 = vadd.f32 0.0, %v3635
        %v3637 = vpop.f32.mrb[0].mxu0
        %3638 = vmatprep.mubr.f32.mxu0 0.0
        %3639 = vmatmul.mubr.f32.gmra.mrb[0].mxu0 %v1570
        %v3640 = vpop.f32.mrb[0].mxu0
        %v3641 = vadd.f32 0.0, %v3640
        %v3642 = vpop.f32.mrb[0].mxu0
        %3643 = vmatprep.mubr.f32.mxu0 0.0
        %3644 = vmatmul.mubr.f32.gmra.mrb[0].mxu0 %v1573
        %v3645 = vpop.f32.mrb[0].mxu0
        %v3646 = vadd.f32 0.0, %v3645
        %v3647 = vpop.f32.mrb[0].mxu0
        %3648 = vmatprep.mubr.f32.mxu0 0.0
        %3649 = vmatmul.mubr.f32.gmra.mrb[0].mxu0 %v1576
        %v3650 = vpop.f32.mrb[0].mxu0
        %v3651 = vadd.f32 0.0, %v3650
        %v3652 = vpop.f32.mrb[0].mxu0
        %3653 = vmatprep.mubr.f32.mxu0 0.0
        %3654 = vmatmul.mubr.f32.gmra.mrb[0].mxu0 %v1579
        %v3655 = vpop.f32.mrb[0].mxu0
        %v3656 = vadd.f32 0.0, %v3655
        %v3657 = vpop.f32.mrb[0].mxu0
        %3658 = vdwg.mxu0
        %v3660 = vsel %vm572, %v3428, 0
        %3662 = vmatprep.subr.mxu0 0.0
        %3663 = vmatpush1.msra.mxu0 %v3660
        %3664 = vmatprep.subr.mxu0 0.0
        %3665 = vmatpush1.msra.mxu0 0.0
        %3666 = vmatprep.subr.mxu0 0.0
        %3667 = vmatpush1.msra.mxu0 0.0
        %3668 = vmatprep.subr.mxu0 0.0
        %3669 = vmatpush1.msra.mxu0 0.0
        %3670 = vmatprep.subr.mxu0 0.0
        %3671 = vmatpush1.msra.mxu0 0.0
        %3672 = vmatprep.subr.mxu0 0.0
        %3673 = vmatpush1.msra.mxu0 0.0
        %3674 = vmatprep.subr.mxu0 0.0
        %3675 = vmatpush1.msra.mxu0 0.0
        %3676 = vmatprep.subr.mxu0 0.0
        %3677 = vmatpush1.msra.mxu0 0.0
        %3678 = vmatprep.subr.mxu0 0.0
        %3679 = vmatpush1.msra.mxu0 0.0
        %3680 = vmatprep.subr.mxu0 0.0
        %3681 = vmatpush1.msra.mxu0 0.0
        %3682 = vmatprep.subr.mxu0 0.0
        %3683 = vmatpush1.msra.mxu0 0.0
        %3684 = vmatprep.subr.mxu0 0.0
        %3685 = vmatpush1.msra.mxu0 0.0
        %3686 = vmatprep.subr.mxu0 0.0
        %3687 = vmatpush1.msra.mxu0 0.0
        %3688 = vmatprep.subr.mxu0 0.0
        %3689 = vmatpush1.msra.mxu0 0.0
        %3690 = vmatprep.subr.mxu0 0.0
        %3691 = vmatpush1.msra.mxu0 0.0
        %3692 = vmatprep.subr.mxu0 0.0
        %3693 = vmatpush1.msra.mxu0 0.0
        %3694 = vmatprep.subr.mxu0 0.0
        %3695 = vmatpush1.msra.mxu0 0.0
        %3696 = vmatprep.subr.mxu0 0.0
        %3697 = vmatpush1.msra.mxu0 0.0
        %3698 = vmatprep.subr.mxu0 0.0
        %3699 = vmatpush1.msra.mxu0 0.0
        %3700 = vmatprep.subr.mxu0 0.0
        %3701 = vmatpush1.msra.mxu0 0.0
        %3702 = vmatprep.subr.mxu0 0.0
        %3703 = vmatpush1.msra.mxu0 0.0
        %3704 = vmatprep.subr.mxu0 0.0
        %3705 = vmatpush1.msra.mxu0 0.0
        %3706 = vmatprep.subr.mxu0 0.0
        %3707 = vmatpush1.msra.mxu0 0.0
        %3708 = vmatprep.subr.mxu0 0.0
        %3709 = vmatpush1.msra.mxu0 0.0
        %3710 = vmatprep.subr.mxu0 0.0
        %3711 = vmatpush1.msra.mxu0 0.0
        %3712 = vmatprep.subr.mxu0 0.0
        %3713 = vmatpush1.msra.mxu0 0.0
        %3714 = vmatprep.subr.mxu0 0.0
        %3715 = vmatpush1.msra.mxu0 0.0
        %3716 = vmatprep.subr.mxu0 0.0
        %3717 = vmatpush1.msra.mxu0 0.0
        %3718 = vmatprep.subr.mxu0 0.0
        %3719 = vmatpush1.msra.mxu0 0.0
        %3720 = vmatprep.subr.mxu0 0.0
        %3721 = vmatpush1.msra.mxu0 0.0
        %3722 = vmatprep.subr.mxu0 0.0
        %3723 = vmatpush1.msra.mxu0 0.0
        %3724 = vmatprep.subr.mxu0 0.0
        %3725 = vmatpush1.msra.mxu0 0.0
        %3726 = vmatprep.mubr.f32.mxu0 0.0
        %3727 = vmatmul.mubr.f32.gmra.mrb[0].mxu0 %v1128
        %v3728 = vpop.f32.mrb[0].mxu0
        %v3729 = vadd.f32 %v3501, %v3728
        %v3730 = vpop.f32.mrb[0].mxu0
        %3731 = vmatprep.mubr.f32.mxu0 0.0
        %3732 = vmatmul.mubr.f32.gmra.mrb[0].mxu0 %v1131
        %v3733 = vpop.f32.mrb[0].mxu0
        %v3734 = vadd.f32 %v3506, %v3733
        %v3735 = vpop.f32.mrb[0].mxu0
        %3736 = vmatprep.mubr.f32.mxu0 0.0
        %3737 = vmatmul.mubr.f32.gmra.mrb[0].mxu0 %v1134
        %v3738 = vpop.f32.mrb[0].mxu0
        %v3739 = vadd.f32 %v3511, %v3738
        %v3740 = vpop.f32.mrb[0].mxu0
        %3741 = vmatprep.mubr.f32.mxu0 0.0
        %3742 = vmatmul.mubr.f32.gmra.mrb[0].mxu0 %v1137
        %v3743 = vpop.f32.mrb[0].mxu0
        %v3744 = vadd.f32 %v3516, %v3743
        %v3745 = vpop.f32.mrb[0].mxu0
        %3746 = vmatprep.mubr.f32.mxu0 0.0
        %3747 = vmatmul.mubr.f32.gmra.mrb[0].mxu0 %v1140
        %v3748 = vpop.f32.mrb[0].mxu0
        %v3749 = vadd.f32 %v3521, %v3748
        %v3750 = vpop.f32.mrb[0].mxu0
        %3751 = vmatprep.mubr.f32.mxu0 0.0
        %3752 = vmatmul.mubr.f32.gmra.mrb[0].mxu0 %v1143
        %v3753 = vpop.f32.mrb[0].mxu0
        %v3754 = vadd.f32 %v3526, %v3753
        %v3755 = vpop.f32.mrb[0].mxu0
        %3756 = vmatprep.mubr.f32.mxu0 0.0
        %3757 = vmatmul.mubr.f32.gmra.mrb[0].mxu0 %v1146
        %v3758 = vpop.f32.mrb[0].mxu0
        %v3759 = vadd.f32 %v3531, %v3758
        %v3760 = vpop.f32.mrb[0].mxu0
        %3761 = vmatprep.mubr.f32.mxu0 0.0
        %3762 = vmatmul.mubr.f32.gmra.mrb[0].mxu0 %v1149
        %v3763 = vpop.f32.mrb[0].mxu0
        %v3764 = vadd.f32 %v3536, %v3763
        %v3765 = vpop.f32.mrb[0].mxu0
        %3766 = vmatprep.mubr.f32.mxu0 0.0
        %3767 = vmatmul.mubr.f32.gmra.mrb[0].mxu0 %v1152
        %v3768 = vpop.f32.mrb[0].mxu0
        %v3769 = vadd.f32 %v3541, %v3768
        %v3770 = vpop.f32.mrb[0].mxu0
        %3771 = vmatprep.mubr.f32.mxu0 0.0
        %3772 = vmatmul.mubr.f32.gmra.mrb[0].mxu0 %v1155
        %v3773 = vpop.f32.mrb[0].mxu0
        %v3774 = vadd.f32 %v3546, %v3773
        %v3775 = vpop.f32.mrb[0].mxu0
        %3776 = vmatprep.mubr.f32.mxu0 0.0
        %3777 = vmatmul.mubr.f32.gmra.mrb[0].mxu0 %v1158
        %v3778 = vpop.f32.mrb[0].mxu0
        %v3779 = vadd.f32 %v3551, %v3778
        %v3780 = vpop.f32.mrb[0].mxu0
        %3781 = vmatprep.mubr.f32.mxu0 0.0
        %3782 = vmatmul.mubr.f32.gmra.mrb[0].mxu0 %v1161
        %v3783 = vpop.f32.mrb[0].mxu0
        %v3784 = vadd.f32 %v3556, %v3783
        %v3785 = vpop.f32.mrb[0].mxu0
        %3786 = vmatprep.mubr.f32.mxu0 0.0
        %3787 = vmatmul.mubr.f32.gmra.mrb[0].mxu0 %v1164
        %v3788 = vpop.f32.mrb[0].mxu0
        %v3789 = vadd.f32 %v3561, %v3788
        %v3790 = vpop.f32.mrb[0].mxu0
        %3791 = vmatprep.mubr.f32.mxu0 0.0
        %3792 = vmatmul.mubr.f32.gmra.mrb[0].mxu0 %v1167
        %v3793 = vpop.f32.mrb[0].mxu0
        %v3794 = vadd.f32 %v3566, %v3793
        %v3795 = vpop.f32.mrb[0].mxu0
        %3796 = vmatprep.mubr.f32.mxu0 0.0
        %3797 = vmatmul.mubr.f32.gmra.mrb[0].mxu0 %v1170
        %v3798 = vpop.f32.mrb[0].mxu0
        %v3799 = vadd.f32 %v3571, %v3798
        %v3800 = vpop.f32.mrb[0].mxu0
        %3801 = vmatprep.mubr.f32.mxu0 0.0
        %3802 = vmatmul.mubr.f32.gmra.mrb[0].mxu0 %v1173
        %v3803 = vpop.f32.mrb[0].mxu0
        %v3804 = vadd.f32 %v3576, %v3803
        %v3805 = vpop.f32.mrb[0].mxu0
        %3806 = vmatprep.mubr.f32.mxu0 0.0
        %3807 = vmatmul.mubr.f32.gmra.mrb[0].mxu0 %v1176
        %v3808 = vpop.f32.mrb[0].mxu0
        %v3809 = vadd.f32 %v3581, %v3808
        %v3810 = vpop.f32.mrb[0].mxu0
        %3811 = vmatprep.mubr.f32.mxu0 0.0
        %3812 = vmatmul.mubr.f32.gmra.mrb[0].mxu0 %v1179
        %v3813 = vpop.f32.mrb[0].mxu0
        %v3814 = vadd.f32 %v3586, %v3813
        %v3815 = vpop.f32.mrb[0].mxu0
        %3816 = vmatprep.mubr.f32.mxu0 0.0
        %3817 = vmatmul.mubr.f32.gmra.mrb[0].mxu0 %v1182
        %v3818 = vpop.f32.mrb[0].mxu0
        %v3819 = vadd.f32 %v3591, %v3818
        %v3820 = vpop.f32.mrb[0].mxu0
        %3821 = vmatprep.mubr.f32.mxu0 0.0
        %3822 = vmatmul.mubr.f32.gmra.mrb[0].mxu0 %v1185
        %v3823 = vpop.f32.mrb[0].mxu0
        %v3824 = vadd.f32 %v3596, %v3823
        %v3825 = vpop.f32.mrb[0].mxu0
        %3826 = vmatprep.mubr.f32.mxu0 0.0
        %3827 = vmatmul.mubr.f32.gmra.mrb[0].mxu0 %v1188
        %v3828 = vpop.f32.mrb[0].mxu0
        %v3829 = vadd.f32 %v3601, %v3828
        %v3830 = vpop.f32.mrb[0].mxu0
        %3831 = vmatprep.mubr.f32.mxu0 0.0
        %3832 = vmatmul.mubr.f32.gmra.mrb[0].mxu0 %v1191
        %v3833 = vpop.f32.mrb[0].mxu0
        %v3834 = vadd.f32 %v3606, %v3833
        %v3835 = vpop.f32.mrb[0].mxu0
        %3836 = vmatprep.mubr.f32.mxu0 0.0
        %3837 = vmatmul.mubr.f32.gmra.mrb[0].mxu0 %v1194
        %v3838 = vpop.f32.mrb[0].mxu0
        %v3839 = vadd.f32 %v3611, %v3838
        %v3840 = vpop.f32.mrb[0].mxu0
        %3841 = vmatprep.mubr.f32.mxu0 0.0
        %3842 = vmatmul.mubr.f32.gmra.mrb[0].mxu0 %v1197
        %v3843 = vpop.f32.mrb[0].mxu0
        %v3844 = vadd.f32 %v3616, %v3843
        %v3845 = vpop.f32.mrb[0].mxu0
        %3846 = vmatprep.mubr.f32.mxu0 0.0
        %3847 = vmatmul.mubr.f32.gmra.mrb[0].mxu0 %v1200
        %v3848 = vpop.f32.mrb[0].mxu0
        %v3849 = vadd.f32 %v3621, %v3848
        %v3850 = vpop.f32.mrb[0].mxu0
        %3851 = vmatprep.mubr.f32.mxu0 0.0
        %3852 = vmatmul.mubr.f32.gmra.mrb[0].mxu0 %v1203
        %v3853 = vpop.f32.mrb[0].mxu0
        %v3854 = vadd.f32 %v3626, %v3853
        %v3855 = vpop.f32.mrb[0].mxu0
        %3856 = vmatprep.mubr.f32.mxu0 0.0
        %3857 = vmatmul.mubr.f32.gmra.mrb[0].mxu0 %v1206
        %v3858 = vpop.f32.mrb[0].mxu0
        %v3859 = vadd.f32 %v3631, %v3858
        %v3860 = vpop.f32.mrb[0].mxu0
        %3861 = vmatprep.mubr.f32.mxu0 0.0
        %3862 = vmatmul.mubr.f32.gmra.mrb[0].mxu0 %v1209
        %v3863 = vpop.f32.mrb[0].mxu0
        %v3864 = vadd.f32 %v3636, %v3863
        %v3865 = vpop.f32.mrb[0].mxu0
        %3866 = vmatprep.mubr.f32.mxu0 0.0
        %3867 = vmatmul.mubr.f32.gmra.mrb[0].mxu0 %v1212
        %v3868 = vpop.f32.mrb[0].mxu0
        %v3869 = vadd.f32 %v3641, %v3868
        %v3870 = vpop.f32.mrb[0].mxu0
        %3871 = vmatprep.mubr.f32.mxu0 0.0
        %3872 = vmatmul.mubr.f32.gmra.mrb[0].mxu0 %v1215
        %v3873 = vpop.f32.mrb[0].mxu0
        %v3874 = vadd.f32 %v3646, %v3873
        %v3875 = vpop.f32.mrb[0].mxu0
        %3876 = vmatprep.mubr.f32.mxu0 0.0
        %3877 = vmatmul.mubr.f32.gmra.mrb[0].mxu0 %v1218
        %v3878 = vpop.f32.mrb[0].mxu0
        %v3879 = vadd.f32 %v3651, %v3878
        %v3880 = vpop.f32.mrb[0].mxu0
        %3881 = vmatprep.mubr.f32.mxu0 0.0
        %3882 = vmatmul.mubr.f32.gmra.mrb[0].mxu0 %v1221
        %v3883 = vpop.f32.mrb[0].mxu0
        %v3884 = vadd.f32 %v3656, %v3883
        %v3885 = vpop.f32.mrb[0].mxu0
        %3886 = vdwg.mxu0
        %s3887 = scalar_lea.vmem %s1, 40
        %v3888 = vld [vmem:[%s3887] sm:$0xf]
        %v3890 = vsel %vm475, %v376, 0
        %v3893 = vsel %vm475, %v377, 0
        %v3896 = vsel %vm475, %v378, 0
        %v3899 = vsel %vm475, %v379, 0
        %v3902 = vsel %vm475, %v380, 0
        %v3905 = vsel %vm475, %v381, 0
        %v3908 = vsel %vm475, %v382, 0
        %v3911 = vsel %vm475, %v383, 0
        %v3914 = vsel %vm475, %v384, 0
        %v3917 = vsel %vm475, %v385, 0
        %v3920 = vsel %vm475, %v386, 0
        %v3923 = vsel %vm475, %v387, 0
        %v3926 = vsel %vm475, %v388, 0
        %v3929 = vsel %vm475, %v389, 0
        %v3932 = vsel %vm475, %v390, 0
        %v3935 = vsel %vm475, %v391, 0
        %v3938 = vsel %vm475, %v392, 0
        %v3941 = vsel %vm475, %v393, 0
        %v3944 = vsel %vm475, %v394, 0
        %v3947 = vsel %vm475, %v395, 0
        %v3950 = vsel %vm475, %v396, 0
        %v3953 = vsel %vm475, %v397, 0
        %v3956 = vsel %vm475, %v398, 0
        %v3959 = vsel %vm475, %v399, 0
        %v3962 = vsel %vm475, %v400, 0
        %v3965 = vsel %vm475, %v401, 0
        %v3968 = vsel %vm475, %v402, 0
        %v3971 = vsel %vm475, %v403, 0
        %v3974 = vsel %vm475, %v404, 0
        %v3977 = vsel %vm475, %v405, 0
        %v3980 = vsel %vm475, %v406, 0
        %v3983 = vsel %vm475, %v407, 0
        %v3986 = vsel %vm572, %v3888, 0
        %3988 = vmatprep.subr.mxu0 0.0
        %3989 = vmatpush1.msra.mxu0 %v3986
        %3990 = vmatprep.subr.mxu0 0.0
        %3991 = vmatpush1.msra.mxu0 0.0
        %3992 = vmatprep.subr.mxu0 0.0
        %3993 = vmatpush1.msra.mxu0 0.0
        %3994 = vmatprep.subr.mxu0 0.0
        %3995 = vmatpush1.msra.mxu0 0.0
        %3996 = vmatprep.subr.mxu0 0.0
        %3997 = vmatpush1.msra.mxu0 0.0
        %3998 = vmatprep.subr.mxu0 0.0
        %3999 = vmatpush1.msra.mxu0 0.0
        %4000 = vmatprep.subr.mxu0 0.0
        %4001 = vmatpush1.msra.mxu0 0.0
        %4002 = vmatprep.subr.mxu0 0.0
        %4003 = vmatpush1.msra.mxu0 0.0
        %4004 = vmatprep.subr.mxu0 0.0
        %4005 = vmatpush1.msra.mxu0 0.0
        %4006 = vmatprep.subr.mxu0 0.0
        %4007 = vmatpush1.msra.mxu0 0.0
        %4008 = vmatprep.subr.mxu0 0.0
        %4009 = vmatpush1.msra.mxu0 0.0
        %4010 = vmatprep.subr.mxu0 0.0
        %4011 = vmatpush1.msra.mxu0 0.0
        %4012 = vmatprep.subr.mxu0 0.0
        %4013 = vmatpush1.msra.mxu0 0.0
        %4014 = vmatprep.subr.mxu0 0.0
        %4015 = vmatpush1.msra.mxu0 0.0
        %4016 = vmatprep.subr.mxu0 0.0
        %4017 = vmatpush1.msra.mxu0 0.0
        %4018 = vmatprep.subr.mxu0 0.0
        %4019 = vmatpush1.msra.mxu0 0.0
        %4020 = vmatprep.subr.mxu0 0.0
        %4021 = vmatpush1.msra.mxu0 0.0
        %4022 = vmatprep.subr.mxu0 0.0
        %4023 = vmatpush1.msra.mxu0 0.0
        %4024 = vmatprep.subr.mxu0 0.0
        %4025 = vmatpush1.msra.mxu0 0.0
        %4026 = vmatprep.subr.mxu0 0.0
        %4027 = vmatpush1.msra.mxu0 0.0
        %4028 = vmatprep.subr.mxu0 0.0
        %4029 = vmatpush1.msra.mxu0 0.0
        %4030 = vmatprep.subr.mxu0 0.0
        %4031 = vmatpush1.msra.mxu0 0.0
        %4032 = vmatprep.subr.mxu0 0.0
        %4033 = vmatpush1.msra.mxu0 0.0
        %4034 = vmatprep.subr.mxu0 0.0
        %4035 = vmatpush1.msra.mxu0 0.0
        %4036 = vmatprep.subr.mxu0 0.0
        %4037 = vmatpush1.msra.mxu0 0.0
        %4038 = vmatprep.subr.mxu0 0.0
        %4039 = vmatpush1.msra.mxu0 0.0
        %4040 = vmatprep.subr.mxu0 0.0
        %4041 = vmatpush1.msra.mxu0 0.0
        %4042 = vmatprep.subr.mxu0 0.0
        %4043 = vmatpush1.msra.mxu0 0.0
        %4044 = vmatprep.subr.mxu0 0.0
        %4045 = vmatpush1.msra.mxu0 0.0
        %4046 = vmatprep.subr.mxu0 0.0
        %4047 = vmatpush1.msra.mxu0 0.0
        %4048 = vmatprep.subr.mxu0 0.0
        %4049 = vmatpush1.msra.mxu0 0.0
        %4050 = vmatprep.subr.mxu0 0.0
        %4051 = vmatpush1.msra.mxu0 0.0
        %4052 = vmatprep.mubr.f32.mxu0 0.0
        %4053 = vmatmul.mubr.f32.gmra.mrb[0].mxu0 %v3890
        %v4054 = vpop.f32.mrb[0].mxu0
        %v4055 = vadd.f32 0.0, %v4054
        %v4056 = vpop.f32.mrb[0].mxu0
        %4057 = vmatprep.mubr.f32.mxu0 0.0
        %4058 = vmatmul.mubr.f32.gmra.mrb[0].mxu0 %v3893
        %v4059 = vpop.f32.mrb[0].mxu0
        %v4060 = vadd.f32 0.0, %v4059
        %v4061 = vpop.f32.mrb[0].mxu0
        %4062 = vmatprep.mubr.f32.mxu0 0.0
        %4063 = vmatmul.mubr.f32.gmra.mrb[0].mxu0 %v3896
        %v4064 = vpop.f32.mrb[0].mxu0
        %v4065 = vadd.f32 0.0, %v4064
        %v4066 = vpop.f32.mrb[0].mxu0
        %4067 = vmatprep.mubr.f32.mxu0 0.0
        %4068 = vmatmul.mubr.f32.gmra.mrb[0].mxu0 %v3899
        %v4069 = vpop.f32.mrb[0].mxu0
        %v4070 = vadd.f32 0.0, %v4069
        %v4071 = vpop.f32.mrb[0].mxu0
        %4072 = vmatprep.mubr.f32.mxu0 0.0
        %4073 = vmatmul.mubr.f32.gmra.mrb[0].mxu0 %v3902
        %v4074 = vpop.f32.mrb[0].mxu0
        %v4075 = vadd.f32 0.0, %v4074
        %v4076 = vpop.f32.mrb[0].mxu0
        %4077 = vmatprep.mubr.f32.mxu0 0.0
        %4078 = vmatmul.mubr.f32.gmra.mrb[0].mxu0 %v3905
        %v4079 = vpop.f32.mrb[0].mxu0
        %v4080 = vadd.f32 0.0, %v4079
        %v4081 = vpop.f32.mrb[0].mxu0
        %4082 = vmatprep.mubr.f32.mxu0 0.0
        %4083 = vmatmul.mubr.f32.gmra.mrb[0].mxu0 %v3908
        %v4084 = vpop.f32.mrb[0].mxu0
        %v4085 = vadd.f32 0.0, %v4084
        %v4086 = vpop.f32.mrb[0].mxu0
        %4087 = vmatprep.mubr.f32.mxu0 0.0
        %4088 = vmatmul.mubr.f32.gmra.mrb[0].mxu0 %v3911
        %v4089 = vpop.f32.mrb[0].mxu0
        %v4090 = vadd.f32 0.0, %v4089
        %v4091 = vpop.f32.mrb[0].mxu0
        %4092 = vmatprep.mubr.f32.mxu0 0.0
        %4093 = vmatmul.mubr.f32.gmra.mrb[0].mxu0 %v3914
        %v4094 = vpop.f32.mrb[0].mxu0
        %v4095 = vadd.f32 0.0, %v4094
        %v4096 = vpop.f32.mrb[0].mxu0
        %4097 = vmatprep.mubr.f32.mxu0 0.0
        %4098 = vmatmul.mubr.f32.gmra.mrb[0].mxu0 %v3917
        %v4099 = vpop.f32.mrb[0].mxu0
        %v4100 = vadd.f32 0.0, %v4099
        %v4101 = vpop.f32.mrb[0].mxu0
        %4102 = vmatprep.mubr.f32.mxu0 0.0
        %4103 = vmatmul.mubr.f32.gmra.mrb[0].mxu0 %v3920
        %v4104 = vpop.f32.mrb[0].mxu0
        %v4105 = vadd.f32 0.0, %v4104
        %v4106 = vpop.f32.mrb[0].mxu0
        %4107 = vmatprep.mubr.f32.mxu0 0.0
        %4108 = vmatmul.mubr.f32.gmra.mrb[0].mxu0 %v3923
        %v4109 = vpop.f32.mrb[0].mxu0
        %v4110 = vadd.f32 0.0, %v4109
        %v4111 = vpop.f32.mrb[0].mxu0
        %4112 = vmatprep.mubr.f32.mxu0 0.0
        %4113 = vmatmul.mubr.f32.gmra.mrb[0].mxu0 %v3926
        %v4114 = vpop.f32.mrb[0].mxu0
        %v4115 = vadd.f32 0.0, %v4114
        %v4116 = vpop.f32.mrb[0].mxu0
        %4117 = vmatprep.mubr.f32.mxu0 0.0
        %4118 = vmatmul.mubr.f32.gmra.mrb[0].mxu0 %v3929
        %v4119 = vpop.f32.mrb[0].mxu0
        %v4120 = vadd.f32 0.0, %v4119
        %v4121 = vpop.f32.mrb[0].mxu0
        %4122 = vmatprep.mubr.f32.mxu0 0.0
        %4123 = vmatmul.mubr.f32.gmra.mrb[0].mxu0 %v3932
        %v4124 = vpop.f32.mrb[0].mxu0
        %v4125 = vadd.f32 0.0, %v4124
        %v4126 = vpop.f32.mrb[0].mxu0
        %4127 = vmatprep.mubr.f32.mxu0 0.0
        %4128 = vmatmul.mubr.f32.gmra.mrb[0].mxu0 %v3935
        %v4129 = vpop.f32.mrb[0].mxu0
        %v4130 = vadd.f32 0.0, %v4129
        %v4131 = vpop.f32.mrb[0].mxu0
        %4132 = vmatprep.mubr.f32.mxu0 0.0
        %4133 = vmatmul.mubr.f32.gmra.mrb[0].mxu0 %v3938
        %v4134 = vpop.f32.mrb[0].mxu0
        %v4135 = vadd.f32 0.0, %v4134
        %v4136 = vpop.f32.mrb[0].mxu0
        %4137 = vmatprep.mubr.f32.mxu0 0.0
        %4138 = vmatmul.mubr.f32.gmra.mrb[0].mxu0 %v3941
        %v4139 = vpop.f32.mrb[0].mxu0
        %v4140 = vadd.f32 0.0, %v4139
        %v4141 = vpop.f32.mrb[0].mxu0
        %4142 = vmatprep.mubr.f32.mxu0 0.0
        %4143 = vmatmul.mubr.f32.gmra.mrb[0].mxu0 %v3944
        %v4144 = vpop.f32.mrb[0].mxu0
        %v4145 = vadd.f32 0.0, %v4144
        %v4146 = vpop.f32.mrb[0].mxu0
        %4147 = vmatprep.mubr.f32.mxu0 0.0
        %4148 = vmatmul.mubr.f32.gmra.mrb[0].mxu0 %v3947
        %v4149 = vpop.f32.mrb[0].mxu0
        %v4150 = vadd.f32 0.0, %v4149
        %v4151 = vpop.f32.mrb[0].mxu0
        %4152 = vmatprep.mubr.f32.mxu0 0.0
        %4153 = vmatmul.mubr.f32.gmra.mrb[0].mxu0 %v3950
        %v4154 = vpop.f32.mrb[0].mxu0
        %v4155 = vadd.f32 0.0, %v4154
        %v4156 = vpop.f32.mrb[0].mxu0
        %4157 = vmatprep.mubr.f32.mxu0 0.0
        %4158 = vmatmul.mubr.f32.gmra.mrb[0].mxu0 %v3953
        %v4159 = vpop.f32.mrb[0].mxu0
        %v4160 = vadd.f32 0.0, %v4159
        %v4161 = vpop.f32.mrb[0].mxu0
        %4162 = vmatprep.mubr.f32.mxu0 0.0
        %4163 = vmatmul.mubr.f32.gmra.mrb[0].mxu0 %v3956
        %v4164 = vpop.f32.mrb[0].mxu0
        %v4165 = vadd.f32 0.0, %v4164
        %v4166 = vpop.f32.mrb[0].mxu0
        %4167 = vmatprep.mubr.f32.mxu0 0.0
        %4168 = vmatmul.mubr.f32.gmra.mrb[0].mxu0 %v3959
        %v4169 = vpop.f32.mrb[0].mxu0
        %v4170 = vadd.f32 0.0, %v4169
        %v4171 = vpop.f32.mrb[0].mxu0
        %4172 = vmatprep.mubr.f32.mxu0 0.0
        %4173 = vmatmul.mubr.f32.gmra.mrb[0].mxu0 %v3962
        %v4174 = vpop.f32.mrb[0].mxu0
        %v4175 = vadd.f32 0.0, %v4174
        %v4176 = vpop.f32.mrb[0].mxu0
        %4177 = vmatprep.mubr.f32.mxu0 0.0
        %4178 = vmatmul.mubr.f32.gmra.mrb[0].mxu0 %v3965
        %v4179 = vpop.f32.mrb[0].mxu0
        %v4180 = vadd.f32 0.0, %v4179
        %v4181 = vpop.f32.mrb[0].mxu0
        %4182 = vmatprep.mubr.f32.mxu0 0.0
        %4183 = vmatmul.mubr.f32.gmra.mrb[0].mxu0 %v3968
        %v4184 = vpop.f32.mrb[0].mxu0
        %v4185 = vadd.f32 0.0, %v4184
        %v4186 = vpop.f32.mrb[0].mxu0
        %4187 = vmatprep.mubr.f32.mxu0 0.0
        %4188 = vmatmul.mubr.f32.gmra.mrb[0].mxu0 %v3971
        %v4189 = vpop.f32.mrb[0].mxu0
        %v4190 = vadd.f32 0.0, %v4189
        %v4191 = vpop.f32.mrb[0].mxu0
        %4192 = vmatprep.mubr.f32.mxu0 0.0
        %4193 = vmatmul.mubr.f32.gmra.mrb[0].mxu0 %v3974
        %v4194 = vpop.f32.mrb[0].mxu0
        %v4195 = vadd.f32 0.0, %v4194
        %v4196 = vpop.f32.mrb[0].mxu0
        %4197 = vmatprep.mubr.f32.mxu0 0.0
        %4198 = vmatmul.mubr.f32.gmra.mrb[0].mxu0 %v3977
        %v4199 = vpop.f32.mrb[0].mxu0
        %v4200 = vadd.f32 0.0, %v4199
        %v4201 = vpop.f32.mrb[0].mxu0
        %4202 = vmatprep.mubr.f32.mxu0 0.0
        %4203 = vmatmul.mubr.f32.gmra.mrb[0].mxu0 %v3980
        %v4204 = vpop.f32.mrb[0].mxu0
        %v4205 = vadd.f32 0.0, %v4204
        %v4206 = vpop.f32.mrb[0].mxu0
        %4207 = vmatprep.mubr.f32.mxu0 0.0
        %4208 = vmatmul.mubr.f32.gmra.mrb[0].mxu0 %v3983
        %v4209 = vpop.f32.mrb[0].mxu0
        %v4210 = vadd.f32 0.0, %v4209
        %v4211 = vpop.f32.mrb[0].mxu0
        %4212 = vdwg.mxu0
        %v4213 = vadd.f32 %v3729, %v4055
        %v4214 = vadd.f32 %v3734, %v4060
        %v4215 = vadd.f32 %v3739, %v4065
        %v4216 = vadd.f32 %v3744, %v4070
        %v4217 = vadd.f32 %v3749, %v4075
        %v4218 = vadd.f32 %v3754, %v4080
        %v4219 = vadd.f32 %v3759, %v4085
        %v4220 = vadd.f32 %v3764, %v4090
        %v4221 = vadd.f32 %v3769, %v4095
        %v4222 = vadd.f32 %v3774, %v4100
        %v4223 = vadd.f32 %v3779, %v4105
        %v4224 = vadd.f32 %v3784, %v4110
        %v4225 = vadd.f32 %v3789, %v4115
        %v4226 = vadd.f32 %v3794, %v4120
        %v4227 = vadd.f32 %v3799, %v4125
        %v4228 = vadd.f32 %v3804, %v4130
        %v4229 = vadd.f32 %v3809, %v4135
        %v4230 = vadd.f32 %v3814, %v4140
        %v4231 = vadd.f32 %v3819, %v4145
        %v4232 = vadd.f32 %v3824, %v4150
        %v4233 = vadd.f32 %v3829, %v4155
        %v4234 = vadd.f32 %v3834, %v4160
        %v4235 = vadd.f32 %v3839, %v4165
        %v4236 = vadd.f32 %v3844, %v4170
        %v4237 = vadd.f32 %v3849, %v4175
        %v4238 = vadd.f32 %v3854, %v4180
        %v4239 = vadd.f32 %v3859, %v4185
        %v4240 = vadd.f32 %v3864, %v4190
        %v4241 = vadd.f32 %v3869, %v4195
        %v4242 = vadd.f32 %v3874, %v4200
        %v4243 = vadd.f32 %v3879, %v4205
        %v4244 = vadd.f32 %v3884, %v4210
        %s4245 = scalar_lea.vmem %s1, 44
        %v4246 = vld [vmem:[%s4245] sm:$0xf]
        %v4248 = vsel %vm475, %v408, 0
        %v4251 = vsel %vm475, %v409, 0
        %v4254 = vsel %vm475, %v410, 0
        %v4257 = vsel %vm475, %v411, 0
        %v4260 = vsel %vm475, %v412, 0
        %v4263 = vsel %vm475, %v413, 0
        %v4266 = vsel %vm475, %v414, 0
        %v4269 = vsel %vm475, %v415, 0
        %v4272 = vsel %vm475, %v416, 0
        %v4275 = vsel %vm475, %v417, 0
        %v4278 = vsel %vm475, %v418, 0
        %v4281 = vsel %vm475, %v419, 0
        %v4284 = vsel %vm475, %v420, 0
        %v4287 = vsel %vm475, %v421, 0
        %v4290 = vsel %vm475, %v422, 0
        %v4293 = vsel %vm475, %v423, 0
        %v4296 = vsel %vm475, %v424, 0
        %v4299 = vsel %vm475, %v425, 0
        %v4302 = vsel %vm475, %v426, 0
        %v4305 = vsel %vm475, %v427, 0
        %v4308 = vsel %vm475, %v428, 0
        %v4311 = vsel %vm475, %v429, 0
        %v4314 = vsel %vm475, %v430, 0
        %v4317 = vsel %vm475, %v431, 0
        %v4320 = vsel %vm475, %v432, 0
        %v4323 = vsel %vm475, %v433, 0
        %v4326 = vsel %vm475, %v434, 0
        %v4329 = vsel %vm475, %v435, 0
        %v4332 = vsel %vm475, %v436, 0
        %v4335 = vsel %vm475, %v437, 0
        %v4338 = vsel %vm475, %v438, 0
        %v4341 = vsel %vm475, %v439, 0
        %v4344 = vsel %vm572, %v4246, 0
        %4346 = vmatprep.subr.mxu0 0.0
        %4347 = vmatpush1.msra.mxu0 %v4344
        %4348 = vmatprep.subr.mxu0 0.0
        %4349 = vmatpush1.msra.mxu0 0.0
        %4350 = vmatprep.subr.mxu0 0.0
        %4351 = vmatpush1.msra.mxu0 0.0
        %4352 = vmatprep.subr.mxu0 0.0
        %4353 = vmatpush1.msra.mxu0 0.0
        %4354 = vmatprep.subr.mxu0 0.0
        %4355 = vmatpush1.msra.mxu0 0.0
        %4356 = vmatprep.subr.mxu0 0.0
        %4357 = vmatpush1.msra.mxu0 0.0
        %4358 = vmatprep.subr.mxu0 0.0
        %4359 = vmatpush1.msra.mxu0 0.0
        %4360 = vmatprep.subr.mxu0 0.0
        %4361 = vmatpush1.msra.mxu0 0.0
        %4362 = vmatprep.subr.mxu0 0.0
        %4363 = vmatpush1.msra.mxu0 0.0
        %4364 = vmatprep.subr.mxu0 0.0
        %4365 = vmatpush1.msra.mxu0 0.0
        %4366 = vmatprep.subr.mxu0 0.0
        %4367 = vmatpush1.msra.mxu0 0.0
        %4368 = vmatprep.subr.mxu0 0.0
        %4369 = vmatpush1.msra.mxu0 0.0
        %4370 = vmatprep.subr.mxu0 0.0
        %4371 = vmatpush1.msra.mxu0 0.0
        %4372 = vmatprep.subr.mxu0 0.0
        %4373 = vmatpush1.msra.mxu0 0.0
        %4374 = vmatprep.subr.mxu0 0.0
        %4375 = vmatpush1.msra.mxu0 0.0
        %4376 = vmatprep.subr.mxu0 0.0
        %4377 = vmatpush1.msra.mxu0 0.0
        %4378 = vmatprep.subr.mxu0 0.0
        %4379 = vmatpush1.msra.mxu0 0.0
        %4380 = vmatprep.subr.mxu0 0.0
        %4381 = vmatpush1.msra.mxu0 0.0
        %4382 = vmatprep.subr.mxu0 0.0
        %4383 = vmatpush1.msra.mxu0 0.0
        %4384 = vmatprep.subr.mxu0 0.0
        %4385 = vmatpush1.msra.mxu0 0.0
        %4386 = vmatprep.subr.mxu0 0.0
        %4387 = vmatpush1.msra.mxu0 0.0
        %4388 = vmatprep.subr.mxu0 0.0
        %4389 = vmatpush1.msra.mxu0 0.0
        %4390 = vmatprep.subr.mxu0 0.0
        %4391 = vmatpush1.msra.mxu0 0.0
        %4392 = vmatprep.subr.mxu0 0.0
        %4393 = vmatpush1.msra.mxu0 0.0
        %4394 = vmatprep.subr.mxu0 0.0
        %4395 = vmatpush1.msra.mxu0 0.0
        %4396 = vmatprep.subr.mxu0 0.0
        %4397 = vmatpush1.msra.mxu0 0.0
        %4398 = vmatprep.subr.mxu0 0.0
        %4399 = vmatpush1.msra.mxu0 0.0
        %4400 = vmatprep.subr.mxu0 0.0
        %4401 = vmatpush1.msra.mxu0 0.0
        %4402 = vmatprep.subr.mxu0 0.0
        %4403 = vmatpush1.msra.mxu0 0.0
        %4404 = vmatprep.subr.mxu0 0.0
        %4405 = vmatpush1.msra.mxu0 0.0
        %4406 = vmatprep.subr.mxu0 0.0
        %4407 = vmatpush1.msra.mxu0 0.0
        %4408 = vmatprep.subr.mxu0 0.0
        %4409 = vmatpush1.msra.mxu0 0.0
        %4410 = vmatprep.mubr.f32.mxu0 0.0
        %4411 = vmatmul.mubr.f32.gmra.mrb[0].mxu0 %v4248
        %v4412 = vpop.f32.mrb[0].mxu0
        %v4413 = vadd.f32 0.0, %v4412
        %v4414 = vpop.f32.mrb[0].mxu0
        %4415 = vmatprep.mubr.f32.mxu0 0.0
        %4416 = vmatmul.mubr.f32.gmra.mrb[0].mxu0 %v4251
        %v4417 = vpop.f32.mrb[0].mxu0
        %v4418 = vadd.f32 0.0, %v4417
        %v4419 = vpop.f32.mrb[0].mxu0
        %4420 = vmatprep.mubr.f32.mxu0 0.0
        %4421 = vmatmul.mubr.f32.gmra.mrb[0].mxu0 %v4254
        %v4422 = vpop.f32.mrb[0].mxu0
        %v4423 = vadd.f32 0.0, %v4422
        %v4424 = vpop.f32.mrb[0].mxu0
        %4425 = vmatprep.mubr.f32.mxu0 0.0
        %4426 = vmatmul.mubr.f32.gmra.mrb[0].mxu0 %v4257
        %v4427 = vpop.f32.mrb[0].mxu0
        %v4428 = vadd.f32 0.0, %v4427
        %v4429 = vpop.f32.mrb[0].mxu0
        %4430 = vmatprep.mubr.f32.mxu0 0.0
        %4431 = vmatmul.mubr.f32.gmra.mrb[0].mxu0 %v4260
        %v4432 = vpop.f32.mrb[0].mxu0
        %v4433 = vadd.f32 0.0, %v4432
        %v4434 = vpop.f32.mrb[0].mxu0
        %4435 = vmatprep.mubr.f32.mxu0 0.0
        %4436 = vmatmul.mubr.f32.gmra.mrb[0].mxu0 %v4263
        %v4437 = vpop.f32.mrb[0].mxu0
        %v4438 = vadd.f32 0.0, %v4437
        %v4439 = vpop.f32.mrb[0].mxu0
        %4440 = vmatprep.mubr.f32.mxu0 0.0
        %4441 = vmatmul.mubr.f32.gmra.mrb[0].mxu0 %v4266
        %v4442 = vpop.f32.mrb[0].mxu0
        %v4443 = vadd.f32 0.0, %v4442
        %v4444 = vpop.f32.mrb[0].mxu0
        %4445 = vmatprep.mubr.f32.mxu0 0.0
        %4446 = vmatmul.mubr.f32.gmra.mrb[0].mxu0 %v4269
        %v4447 = vpop.f32.mrb[0].mxu0
        %v4448 = vadd.f32 0.0, %v4447
        %v4449 = vpop.f32.mrb[0].mxu0
        %4450 = vmatprep.mubr.f32.mxu0 0.0
        %4451 = vmatmul.mubr.f32.gmra.mrb[0].mxu0 %v4272
        %v4452 = vpop.f32.mrb[0].mxu0
        %v4453 = vadd.f32 0.0, %v4452
        %v4454 = vpop.f32.mrb[0].mxu0
        %4455 = vmatprep.mubr.f32.mxu0 0.0
        %4456 = vmatmul.mubr.f32.gmra.mrb[0].mxu0 %v4275
        %v4457 = vpop.f32.mrb[0].mxu0
        %v4458 = vadd.f32 0.0, %v4457
        %v4459 = vpop.f32.mrb[0].mxu0
        %4460 = vmatprep.mubr.f32.mxu0 0.0
        %4461 = vmatmul.mubr.f32.gmra.mrb[0].mxu0 %v4278
        %v4462 = vpop.f32.mrb[0].mxu0
        %v4463 = vadd.f32 0.0, %v4462
        %v4464 = vpop.f32.mrb[0].mxu0
        %4465 = vmatprep.mubr.f32.mxu0 0.0
        %4466 = vmatmul.mubr.f32.gmra.mrb[0].mxu0 %v4281
        %v4467 = vpop.f32.mrb[0].mxu0
        %v4468 = vadd.f32 0.0, %v4467
        %v4469 = vpop.f32.mrb[0].mxu0
        %4470 = vmatprep.mubr.f32.mxu0 0.0
        %4471 = vmatmul.mubr.f32.gmra.mrb[0].mxu0 %v4284
        %v4472 = vpop.f32.mrb[0].mxu0
        %v4473 = vadd.f32 0.0, %v4472
        %v4474 = vpop.f32.mrb[0].mxu0
        %4475 = vmatprep.mubr.f32.mxu0 0.0
        %4476 = vmatmul.mubr.f32.gmra.mrb[0].mxu0 %v4287
        %v4477 = vpop.f32.mrb[0].mxu0
        %v4478 = vadd.f32 0.0, %v4477
        %v4479 = vpop.f32.mrb[0].mxu0
        %4480 = vmatprep.mubr.f32.mxu0 0.0
        %4481 = vmatmul.mubr.f32.gmra.mrb[0].mxu0 %v4290
        %v4482 = vpop.f32.mrb[0].mxu0
        %v4483 = vadd.f32 0.0, %v4482
        %v4484 = vpop.f32.mrb[0].mxu0
        %4485 = vmatprep.mubr.f32.mxu0 0.0
        %4486 = vmatmul.mubr.f32.gmra.mrb[0].mxu0 %v4293
        %v4487 = vpop.f32.mrb[0].mxu0
        %v4488 = vadd.f32 0.0, %v4487
        %v4489 = vpop.f32.mrb[0].mxu0
        %4490 = vmatprep.mubr.f32.mxu0 0.0
        %4491 = vmatmul.mubr.f32.gmra.mrb[0].mxu0 %v4296
        %v4492 = vpop.f32.mrb[0].mxu0
        %v4493 = vadd.f32 0.0, %v4492
        %v4494 = vpop.f32.mrb[0].mxu0
        %4495 = vmatprep.mubr.f32.mxu0 0.0
        %4496 = vmatmul.mubr.f32.gmra.mrb[0].mxu0 %v4299
        %v4497 = vpop.f32.mrb[0].mxu0
        %v4498 = vadd.f32 0.0, %v4497
        %v4499 = vpop.f32.mrb[0].mxu0
        %4500 = vmatprep.mubr.f32.mxu0 0.0
        %4501 = vmatmul.mubr.f32.gmra.mrb[0].mxu0 %v4302
        %v4502 = vpop.f32.mrb[0].mxu0
        %v4503 = vadd.f32 0.0, %v4502
        %v4504 = vpop.f32.mrb[0].mxu0
        %4505 = vmatprep.mubr.f32.mxu0 0.0
        %4506 = vmatmul.mubr.f32.gmra.mrb[0].mxu0 %v4305
        %v4507 = vpop.f32.mrb[0].mxu0
        %v4508 = vadd.f32 0.0, %v4507
        %v4509 = vpop.f32.mrb[0].mxu0
        %4510 = vmatprep.mubr.f32.mxu0 0.0
        %4511 = vmatmul.mubr.f32.gmra.mrb[0].mxu0 %v4308
        %v4512 = vpop.f32.mrb[0].mxu0
        %v4513 = vadd.f32 0.0, %v4512
        %v4514 = vpop.f32.mrb[0].mxu0
        %4515 = vmatprep.mubr.f32.mxu0 0.0
        %4516 = vmatmul.mubr.f32.gmra.mrb[0].mxu0 %v4311
        %v4517 = vpop.f32.mrb[0].mxu0
        %v4518 = vadd.f32 0.0, %v4517
        %v4519 = vpop.f32.mrb[0].mxu0
        %4520 = vmatprep.mubr.f32.mxu0 0.0
        %4521 = vmatmul.mubr.f32.gmra.mrb[0].mxu0 %v4314
        %v4522 = vpop.f32.mrb[0].mxu0
        %v4523 = vadd.f32 0.0, %v4522
        %v4524 = vpop.f32.mrb[0].mxu0
        %4525 = vmatprep.mubr.f32.mxu0 0.0
        %4526 = vmatmul.mubr.f32.gmra.mrb[0].mxu0 %v4317
        %v4527 = vpop.f32.mrb[0].mxu0
        %v4528 = vadd.f32 0.0, %v4527
        %v4529 = vpop.f32.mrb[0].mxu0
        %4530 = vmatprep.mubr.f32.mxu0 0.0
        %4531 = vmatmul.mubr.f32.gmra.mrb[0].mxu0 %v4320
        %v4532 = vpop.f32.mrb[0].mxu0
        %v4533 = vadd.f32 0.0, %v4532
        %v4534 = vpop.f32.mrb[0].mxu0
        %4535 = vmatprep.mubr.f32.mxu0 0.0
        %4536 = vmatmul.mubr.f32.gmra.mrb[0].mxu0 %v4323
        %v4537 = vpop.f32.mrb[0].mxu0
        %v4538 = vadd.f32 0.0, %v4537
        %v4539 = vpop.f32.mrb[0].mxu0
        %4540 = vmatprep.mubr.f32.mxu0 0.0
        %4541 = vmatmul.mubr.f32.gmra.mrb[0].mxu0 %v4326
        %v4542 = vpop.f32.mrb[0].mxu0
        %v4543 = vadd.f32 0.0, %v4542
        %v4544 = vpop.f32.mrb[0].mxu0
        %4545 = vmatprep.mubr.f32.mxu0 0.0
        %4546 = vmatmul.mubr.f32.gmra.mrb[0].mxu0 %v4329
        %v4547 = vpop.f32.mrb[0].mxu0
        %v4548 = vadd.f32 0.0, %v4547
        %v4549 = vpop.f32.mrb[0].mxu0
        %4550 = vmatprep.mubr.f32.mxu0 0.0
        %4551 = vmatmul.mubr.f32.gmra.mrb[0].mxu0 %v4332
        %v4552 = vpop.f32.mrb[0].mxu0
        %v4553 = vadd.f32 0.0, %v4552
        %v4554 = vpop.f32.mrb[0].mxu0
        %4555 = vmatprep.mubr.f32.mxu0 0.0
        %4556 = vmatmul.mubr.f32.gmra.mrb[0].mxu0 %v4335
        %v4557 = vpop.f32.mrb[0].mxu0
        %v4558 = vadd.f32 0.0, %v4557
        %v4559 = vpop.f32.mrb[0].mxu0
        %4560 = vmatprep.mubr.f32.mxu0 0.0
        %4561 = vmatmul.mubr.f32.gmra.mrb[0].mxu0 %v4338
        %v4562 = vpop.f32.mrb[0].mxu0
        %v4563 = vadd.f32 0.0, %v4562
        %v4564 = vpop.f32.mrb[0].mxu0
        %4565 = vmatprep.mubr.f32.mxu0 0.0
        %4566 = vmatmul.mubr.f32.gmra.mrb[0].mxu0 %v4341
        %v4567 = vpop.f32.mrb[0].mxu0
        %v4568 = vadd.f32 0.0, %v4567
        %v4569 = vpop.f32.mrb[0].mxu0
        %4570 = vdwg.mxu0
        %v4571 = vadd.f32 %v4213, %v4413
        %v4572 = vadd.f32 %v4214, %v4418
        %v4573 = vadd.f32 %v4215, %v4423
        %v4574 = vadd.f32 %v4216, %v4428
        %v4575 = vadd.f32 %v4217, %v4433
        %v4576 = vadd.f32 %v4218, %v4438
        %v4577 = vadd.f32 %v4219, %v4443
        %v4578 = vadd.f32 %v4220, %v4448
        %v4579 = vadd.f32 %v4221, %v4453
        %v4580 = vadd.f32 %v4222, %v4458
        %v4581 = vadd.f32 %v4223, %v4463
        %v4582 = vadd.f32 %v4224, %v4468
        %v4583 = vadd.f32 %v4225, %v4473
        %v4584 = vadd.f32 %v4226, %v4478
        %v4585 = vadd.f32 %v4227, %v4483
        %v4586 = vadd.f32 %v4228, %v4488
        %v4587 = vadd.f32 %v4229, %v4493
        %v4588 = vadd.f32 %v4230, %v4498
        %v4589 = vadd.f32 %v4231, %v4503
        %v4590 = vadd.f32 %v4232, %v4508
        %v4591 = vadd.f32 %v4233, %v4513
        %v4592 = vadd.f32 %v4234, %v4518
        %v4593 = vadd.f32 %v4235, %v4523
        %v4594 = vadd.f32 %v4236, %v4528
        %v4595 = vadd.f32 %v4237, %v4533
        %v4596 = vadd.f32 %v4238, %v4538
        %v4597 = vadd.f32 %v4239, %v4543
        %v4598 = vadd.f32 %v4240, %v4548
        %v4599 = vadd.f32 %v4241, %v4553
        %v4600 = vadd.f32 %v4242, %v4558
        %v4601 = vadd.f32 %v4243, %v4563
        %v4602 = vadd.f32 %v4244, %v4568
        %s4603 = scalar_lea.vmem %s181, 512
        %4604 = vst.msk [vmem:[%s4603] sm:$0xff] %vm1841, %v4571
        %4605 = vst.msk [vmem:[%s4603 + $0x8] sm:$0xff] %vm1841, %v4572
        %4606 = vst.msk [vmem:[%s4603 + $0x10] sm:$0xff] %vm1841, %v4573
        %4607 = vst.msk [vmem:[%s4603 + $0x18] sm:$0xff] %vm1841, %v4574
        %4608 = vst.msk [vmem:[%s4603 + $0x20] sm:$0xff] %vm1841, %v4575
        %4609 = vst.msk [vmem:[%s4603 + $0x28] sm:$0xff] %vm1841, %v4576
        %4610 = vst.msk [vmem:[%s4603 + $0x30] sm:$0xff] %vm1841, %v4577
        %4611 = vst.msk [vmem:[%s4603 + $0x38] sm:$0xff] %vm1841, %v4578
        %4612 = vst.msk [vmem:[%s4603 + $0x40] sm:$0xff] %vm1841, %v4579
        %4613 = vst.msk [vmem:[%s4603 + $0x48] sm:$0xff] %vm1841, %v4580
        %4614 = vst.msk [vmem:[%s4603 + $0x50] sm:$0xff] %vm1841, %v4581
        %4615 = vst.msk [vmem:[%s4603 + $0x58] sm:$0xff] %vm1841, %v4582
        %4616 = vst.msk [vmem:[%s4603 + $0x60] sm:$0xff] %vm1841, %v4583
        %4617 = vst.msk [vmem:[%s4603 + $0x68] sm:$0xff] %vm1841, %v4584
        %4618 = vst.msk [vmem:[%s4603 + $0x70] sm:$0xff] %vm1841, %v4585
        %4619 = vst.msk [vmem:[%s4603 + $0x78] sm:$0xff] %vm1841, %v4586
        %4620 = vst.msk [vmem:[%s4603 + $0x80] sm:$0xff] %vm1841, %v4587
        %4621 = vst.msk [vmem:[%s4603 + $0x88] sm:$0xff] %vm1841, %v4588
        %4622 = vst.msk [vmem:[%s4603 + $0x90] sm:$0xff] %vm1841, %v4589
        %4623 = vst.msk [vmem:[%s4603 + $0x98] sm:$0xff] %vm1841, %v4590
        %4624 = vst.msk [vmem:[%s4603 + $0xa0] sm:$0xff] %vm1841, %v4591
        %4625 = vst.msk [vmem:[%s4603 + $0xa8] sm:$0xff] %vm1841, %v4592
        %4626 = vst.msk [vmem:[%s4603 + $0xb0] sm:$0xff] %vm1841, %v4593
        %4627 = vst.msk [vmem:[%s4603 + $0xb8] sm:$0xff] %vm1841, %v4594
        %4628 = vst.msk [vmem:[%s4603 + $0xc0] sm:$0xff] %vm1841, %v4595
        %4629 = vst.msk [vmem:[%s4603 + $0xc8] sm:$0xff] %vm1841, %v4596
        %4630 = vst.msk [vmem:[%s4603 + $0xd0] sm:$0xff] %vm1841, %v4597
        %4631 = vst.msk [vmem:[%s4603 + $0xd8] sm:$0xff] %vm1841, %v4598
        %4632 = vst.msk [vmem:[%s4603 + $0xe0] sm:$0xff] %vm1841, %v4599
        %4633 = vst.msk [vmem:[%s4603 + $0xe8] sm:$0xff] %vm1841, %v4600
        %4634 = vst.msk [vmem:[%s4603 + $0xf0] sm:$0xff] %vm1841, %v4601
        %4635 = vst.msk [vmem:[%s4603 + $0xf8] sm:$0xff] %vm1841, %v4602
        %v4636 = vsel %vm1841, %v4571, 0.0
        %v4637 = vsel %vm1841, %v4572, 0.0
        %v4638 = vadd.f32 %v4636, %v4637
        %v4639 = vsel %vm1841, %v4573, 0.0
        %v4640 = vadd.f32 %v4638, %v4639
        %v4641 = vsel %vm1841, %v4574, 0.0
        %v4642 = vadd.f32 %v4640, %v4641
        %v4643 = vsel %vm1841, %v4575, 0.0
        %v4644 = vadd.f32 %v4642, %v4643
        %v4645 = vsel %vm1841, %v4576, 0.0
        %v4646 = vadd.f32 %v4644, %v4645
        %v4647 = vsel %vm1841, %v4577, 0.0
        %v4648 = vadd.f32 %v4646, %v4647
        %v4649 = vsel %vm1841, %v4578, 0.0
        %v4650 = vadd.f32 %v4648, %v4649
        %v4651 = vsel %vm1841, %v4579, 0.0
        %v4652 = vadd.f32 %v4650, %v4651
        %v4653 = vsel %vm1841, %v4580, 0.0
        %v4654 = vadd.f32 %v4652, %v4653
        %v4655 = vsel %vm1841, %v4581, 0.0
        %v4656 = vadd.f32 %v4654, %v4655
        %v4657 = vsel %vm1841, %v4582, 0.0
        %v4658 = vadd.f32 %v4656, %v4657
        %v4659 = vsel %vm1841, %v4583, 0.0
        %v4660 = vadd.f32 %v4658, %v4659
        %v4661 = vsel %vm1841, %v4584, 0.0
        %v4662 = vadd.f32 %v4660, %v4661
        %v4663 = vsel %vm1841, %v4585, 0.0
        %v4664 = vadd.f32 %v4662, %v4663
        %v4665 = vsel %vm1841, %v4586, 0.0
        %v4666 = vadd.f32 %v4664, %v4665
        %v4667 = vsel %vm1841, %v4587, 0.0
        %v4668 = vadd.f32 %v4666, %v4667
        %v4669 = vsel %vm1841, %v4588, 0.0
        %v4670 = vadd.f32 %v4668, %v4669
        %v4671 = vsel %vm1841, %v4589, 0.0
        %v4672 = vadd.f32 %v4670, %v4671
        %v4673 = vsel %vm1841, %v4590, 0.0
        %v4674 = vadd.f32 %v4672, %v4673
        %v4675 = vsel %vm1841, %v4591, 0.0
        %v4676 = vadd.f32 %v4674, %v4675
        %v4677 = vsel %vm1841, %v4592, 0.0
        %v4678 = vadd.f32 %v4676, %v4677
        %v4679 = vsel %vm1841, %v4593, 0.0
        %v4680 = vadd.f32 %v4678, %v4679
        %v4681 = vsel %vm1841, %v4594, 0.0
        %v4682 = vadd.f32 %v4680, %v4681
        %v4683 = vsel %vm1841, %v4595, 0.0
        %v4684 = vadd.f32 %v4682, %v4683
        %v4685 = vsel %vm1841, %v4596, 0.0
        %v4686 = vadd.f32 %v4684, %v4685
        %v4687 = vsel %vm1841, %v4597, 0.0
        %v4688 = vadd.f32 %v4686, %v4687
        %v4689 = vsel %vm1841, %v4598, 0.0
        %v4690 = vadd.f32 %v4688, %v4689
        %v4691 = vsel %vm1841, %v4599, 0.0
        %v4692 = vadd.f32 %v4690, %v4691
        %v4693 = vsel %vm1841, %v4600, 0.0
        %v4694 = vadd.f32 %v4692, %v4693
        %v4695 = vsel %vm1841, %v4601, 0.0
        %v4696 = vadd.f32 %v4694, %v4695
        %v4697 = vsel %vm1841, %v4602, 0.0
        %v4698 = vadd.f32 %v4696, %v4697
        %v4699 = vrot.slane %v4698, 4
        %v4700 = vadd.f32 %v4698, %v4699
        %v4701 = vrot.slane %v4700, 2
        %v4702 = vadd.f32 %v4700, %v4701
        %v4703 = vrot.slane %v4702, 1
        %v4704 = vadd.f32 %v4702, %v4703
        %v4705 = vadd.f32 %v3324, %v4704
        %v4706 = vmul.f32 %v4571, %v4571
        %v4707 = vmul.f32 %v4572, %v4572
        %v4708 = vmul.f32 %v4573, %v4573
        %v4709 = vmul.f32 %v4574, %v4574
        %v4710 = vmul.f32 %v4575, %v4575
        %v4711 = vmul.f32 %v4576, %v4576
        %v4712 = vmul.f32 %v4577, %v4577
        %v4713 = vmul.f32 %v4578, %v4578
        %v4714 = vmul.f32 %v4579, %v4579
        %v4715 = vmul.f32 %v4580, %v4580
        %v4716 = vmul.f32 %v4581, %v4581
        %v4717 = vmul.f32 %v4582, %v4582
        %v4718 = vmul.f32 %v4583, %v4583
        %v4719 = vmul.f32 %v4584, %v4584
        %v4720 = vmul.f32 %v4585, %v4585
        %v4721 = vmul.f32 %v4586, %v4586
        %v4722 = vmul.f32 %v4587, %v4587
        %v4723 = vmul.f32 %v4588, %v4588
        %v4724 = vmul.f32 %v4589, %v4589
        %v4725 = vmul.f32 %v4590, %v4590
        %v4726 = vmul.f32 %v4591, %v4591
        %v4727 = vmul.f32 %v4592, %v4592
        %v4728 = vmul.f32 %v4593, %v4593
        %v4729 = vmul.f32 %v4594, %v4594
        %v4730 = vmul.f32 %v4595, %v4595
        %v4731 = vmul.f32 %v4596, %v4596
        %v4732 = vmul.f32 %v4597, %v4597
        %v4733 = vmul.f32 %v4598, %v4598
        %v4734 = vmul.f32 %v4599, %v4599
        %v4735 = vmul.f32 %v4600, %v4600
        %v4736 = vmul.f32 %v4601, %v4601
        %v4737 = vmul.f32 %v4602, %v4602
        %v4738 = vsel %vm1841, %v4706, 0.0
        %v4739 = vsel %vm1841, %v4707, 0.0
        %v4740 = vadd.f32 %v4738, %v4739
        %v4741 = vsel %vm1841, %v4708, 0.0
        %v4742 = vadd.f32 %v4740, %v4741
        %v4743 = vsel %vm1841, %v4709, 0.0
        %v4744 = vadd.f32 %v4742, %v4743
        %v4745 = vsel %vm1841, %v4710, 0.0
        %v4746 = vadd.f32 %v4744, %v4745
        %v4747 = vsel %vm1841, %v4711, 0.0
        %v4748 = vadd.f32 %v4746, %v4747
        %v4749 = vsel %vm1841, %v4712, 0.0
        %v4750 = vadd.f32 %v4748, %v4749
        %v4751 = vsel %vm1841, %v4713, 0.0
        %v4752 = vadd.f32 %v4750, %v4751
        %v4753 = vsel %vm1841, %v4714, 0.0
        %v4754 = vadd.f32 %v4752, %v4753
        %v4755 = vsel %vm1841, %v4715, 0.0
        %v4756 = vadd.f32 %v4754, %v4755
        %v4757 = vsel %vm1841, %v4716, 0.0
        %v4758 = vadd.f32 %v4756, %v4757
        %v4759 = vsel %vm1841, %v4717, 0.0
        %v4760 = vadd.f32 %v4758, %v4759
        %v4761 = vsel %vm1841, %v4718, 0.0
        %v4762 = vadd.f32 %v4760, %v4761
        %v4763 = vsel %vm1841, %v4719, 0.0
        %v4764 = vadd.f32 %v4762, %v4763
        %v4765 = vsel %vm1841, %v4720, 0.0
        %v4766 = vadd.f32 %v4764, %v4765
        %v4767 = vsel %vm1841, %v4721, 0.0
        %v4768 = vadd.f32 %v4766, %v4767
        %v4769 = vsel %vm1841, %v4722, 0.0
        %v4770 = vadd.f32 %v4768, %v4769
        %v4771 = vsel %vm1841, %v4723, 0.0
        %v4772 = vadd.f32 %v4770, %v4771
        %v4773 = vsel %vm1841, %v4724, 0.0
        %v4774 = vadd.f32 %v4772, %v4773
        %v4775 = vsel %vm1841, %v4725, 0.0
        %v4776 = vadd.f32 %v4774, %v4775
        %v4777 = vsel %vm1841, %v4726, 0.0
        %v4778 = vadd.f32 %v4776, %v4777
        %v4779 = vsel %vm1841, %v4727, 0.0
        %v4780 = vadd.f32 %v4778, %v4779
        %v4781 = vsel %vm1841, %v4728, 0.0
        %v4782 = vadd.f32 %v4780, %v4781
        %v4783 = vsel %vm1841, %v4729, 0.0
        %v4784 = vadd.f32 %v4782, %v4783
        %v4785 = vsel %vm1841, %v4730, 0.0
        %v4786 = vadd.f32 %v4784, %v4785
        %v4787 = vsel %vm1841, %v4731, 0.0
        %v4788 = vadd.f32 %v4786, %v4787
        %v4789 = vsel %vm1841, %v4732, 0.0
        %v4790 = vadd.f32 %v4788, %v4789
        %v4791 = vsel %vm1841, %v4733, 0.0
        %v4792 = vadd.f32 %v4790, %v4791
        %v4793 = vsel %vm1841, %v4734, 0.0
        %v4794 = vadd.f32 %v4792, %v4793
        %v4795 = vsel %vm1841, %v4735, 0.0
        %v4796 = vadd.f32 %v4794, %v4795
        %v4797 = vsel %vm1841, %v4736, 0.0
        %v4798 = vadd.f32 %v4796, %v4797
        %v4799 = vsel %vm1841, %v4737, 0.0
        %v4800 = vadd.f32 %v4798, %v4799
        %v4801 = vrot.slane %v4800, 4
        %v4802 = vadd.f32 %v4800, %v4801
        %v4803 = vrot.slane %v4802, 2
        %v4804 = vadd.f32 %v4802, %v4803
        %v4805 = vrot.slane %v4804, 1
        %v4806 = vadd.f32 %v4804, %v4805
        %v4807 = vadd.f32 %v3426, %v4806
        %s4808 = scalar_lea.vmem %s1, 48
        %v4809 = vld [vmem:[%s4808] sm:$0xf]
        %s4810 = scalar_lea.vmem %s1, 52
        %v4811 = vld [vmem:[%s4810] sm:$0xf]
        %v4813 = vsel %vm572, %v4811, 0
        %4815 = vmatprep.subr.mxu0 0.0
        %4816 = vmatpush1.msra.mxu0 %v4813
        %4817 = vmatprep.subr.mxu0 0.0
        %4818 = vmatpush1.msra.mxu0 0.0
        %4819 = vmatprep.subr.mxu0 0.0
        %4820 = vmatpush1.msra.mxu0 0.0
        %4821 = vmatprep.subr.mxu0 0.0
        %4822 = vmatpush1.msra.mxu0 0.0
        %4823 = vmatprep.subr.mxu0 0.0
        %4824 = vmatpush1.msra.mxu0 0.0
        %4825 = vmatprep.subr.mxu0 0.0
        %4826 = vmatpush1.msra.mxu0 0.0
        %4827 = vmatprep.subr.mxu0 0.0
        %4828 = vmatpush1.msra.mxu0 0.0
        %4829 = vmatprep.subr.mxu0 0.0
        %4830 = vmatpush1.msra.mxu0 0.0
        %4831 = vmatprep.subr.mxu0 0.0
        %4832 = vmatpush1.msra.mxu0 0.0
        %4833 = vmatprep.subr.mxu0 0.0
        %4834 = vmatpush1.msra.mxu0 0.0
        %4835 = vmatprep.subr.mxu0 0.0
        %4836 = vmatpush1.msra.mxu0 0.0
        %4837 = vmatprep.subr.mxu0 0.0
        %4838 = vmatpush1.msra.mxu0 0.0
        %4839 = vmatprep.subr.mxu0 0.0
        %4840 = vmatpush1.msra.mxu0 0.0
        %4841 = vmatprep.subr.mxu0 0.0
        %4842 = vmatpush1.msra.mxu0 0.0
        %4843 = vmatprep.subr.mxu0 0.0
        %4844 = vmatpush1.msra.mxu0 0.0
        %4845 = vmatprep.subr.mxu0 0.0
        %4846 = vmatpush1.msra.mxu0 0.0
        %4847 = vmatprep.subr.mxu0 0.0
        %4848 = vmatpush1.msra.mxu0 0.0
        %4849 = vmatprep.subr.mxu0 0.0
        %4850 = vmatpush1.msra.mxu0 0.0
        %4851 = vmatprep.subr.mxu0 0.0
        %4852 = vmatpush1.msra.mxu0 0.0
        %4853 = vmatprep.subr.mxu0 0.0
        %4854 = vmatpush1.msra.mxu0 0.0
        %4855 = vmatprep.subr.mxu0 0.0
        %4856 = vmatpush1.msra.mxu0 0.0
        %4857 = vmatprep.subr.mxu0 0.0
        %4858 = vmatpush1.msra.mxu0 0.0
        %4859 = vmatprep.subr.mxu0 0.0
        %4860 = vmatpush1.msra.mxu0 0.0
        %4861 = vmatprep.subr.mxu0 0.0
        %4862 = vmatpush1.msra.mxu0 0.0
        %4863 = vmatprep.subr.mxu0 0.0
        %4864 = vmatpush1.msra.mxu0 0.0
        %4865 = vmatprep.subr.mxu0 0.0
        %4866 = vmatpush1.msra.mxu0 0.0
        %4867 = vmatprep.subr.mxu0 0.0
        %4868 = vmatpush1.msra.mxu0 0.0
        %4869 = vmatprep.subr.mxu0 0.0
        %4870 = vmatpush1.msra.mxu0 0.0
        %4871 = vmatprep.subr.mxu0 0.0
        %4872 = vmatpush1.msra.mxu0 0.0
        %4873 = vmatprep.subr.mxu0 0.0
        %4874 = vmatpush1.msra.mxu0 0.0
        %4875 = vmatprep.subr.mxu0 0.0
        %4876 = vmatpush1.msra.mxu0 0.0
        %4877 = vmatprep.subr.mxu0 0.0
        %4878 = vmatpush1.msra.mxu0 0.0
        %4879 = vmatprep.mubr.f32.mxu0 0.0
        %4880 = vmatmul.mubr.f32.gmra.mrb[0].mxu0 %v2867
        %v4881 = vpop.f32.mrb[0].mxu0
        %v4882 = vadd.f32 0.0, %v4881
        %v4883 = vpop.f32.mrb[0].mxu0
        %4884 = vmatprep.mubr.f32.mxu0 0.0
        %4885 = vmatmul.mubr.f32.gmra.mrb[0].mxu0 %v2870
        %v4886 = vpop.f32.mrb[0].mxu0
        %v4887 = vadd.f32 0.0, %v4886
        %v4888 = vpop.f32.mrb[0].mxu0
        %4889 = vmatprep.mubr.f32.mxu0 0.0
        %4890 = vmatmul.mubr.f32.gmra.mrb[0].mxu0 %v2873
        %v4891 = vpop.f32.mrb[0].mxu0
        %v4892 = vadd.f32 0.0, %v4891
        %v4893 = vpop.f32.mrb[0].mxu0
        %4894 = vmatprep.mubr.f32.mxu0 0.0
        %4895 = vmatmul.mubr.f32.gmra.mrb[0].mxu0 %v2876
        %v4896 = vpop.f32.mrb[0].mxu0
        %v4897 = vadd.f32 0.0, %v4896
        %v4898 = vpop.f32.mrb[0].mxu0
        %4899 = vmatprep.mubr.f32.mxu0 0.0
        %4900 = vmatmul.mubr.f32.gmra.mrb[0].mxu0 %v2879
        %v4901 = vpop.f32.mrb[0].mxu0
        %v4902 = vadd.f32 0.0, %v4901
        %v4903 = vpop.f32.mrb[0].mxu0
        %4904 = vmatprep.mubr.f32.mxu0 0.0
        %4905 = vmatmul.mubr.f32.gmra.mrb[0].mxu0 %v2882
        %v4906 = vpop.f32.mrb[0].mxu0
        %v4907 = vadd.f32 0.0, %v4906
        %v4908 = vpop.f32.mrb[0].mxu0
        %4909 = vmatprep.mubr.f32.mxu0 0.0
        %4910 = vmatmul.mubr.f32.gmra.mrb[0].mxu0 %v2885
        %v4911 = vpop.f32.mrb[0].mxu0
        %v4912 = vadd.f32 0.0, %v4911
        %v4913 = vpop.f32.mrb[0].mxu0
        %4914 = vmatprep.mubr.f32.mxu0 0.0
        %4915 = vmatmul.mubr.f32.gmra.mrb[0].mxu0 %v2888
        %v4916 = vpop.f32.mrb[0].mxu0
        %v4917 = vadd.f32 0.0, %v4916
        %v4918 = vpop.f32.mrb[0].mxu0
        %4919 = vmatprep.mubr.f32.mxu0 0.0
        %4920 = vmatmul.mubr.f32.gmra.mrb[0].mxu0 %v2891
        %v4921 = vpop.f32.mrb[0].mxu0
        %v4922 = vadd.f32 0.0, %v4921
        %v4923 = vpop.f32.mrb[0].mxu0
        %4924 = vmatprep.mubr.f32.mxu0 0.0
        %4925 = vmatmul.mubr.f32.gmra.mrb[0].mxu0 %v2894
        %v4926 = vpop.f32.mrb[0].mxu0
        %v4927 = vadd.f32 0.0, %v4926
        %v4928 = vpop.f32.mrb[0].mxu0
        %4929 = vmatprep.mubr.f32.mxu0 0.0
        %4930 = vmatmul.mubr.f32.gmra.mrb[0].mxu0 %v2897
        %v4931 = vpop.f32.mrb[0].mxu0
        %v4932 = vadd.f32 0.0, %v4931
        %v4933 = vpop.f32.mrb[0].mxu0
        %4934 = vmatprep.mubr.f32.mxu0 0.0
        %4935 = vmatmul.mubr.f32.gmra.mrb[0].mxu0 %v2900
        %v4936 = vpop.f32.mrb[0].mxu0
        %v4937 = vadd.f32 0.0, %v4936
        %v4938 = vpop.f32.mrb[0].mxu0
        %4939 = vmatprep.mubr.f32.mxu0 0.0
        %4940 = vmatmul.mubr.f32.gmra.mrb[0].mxu0 %v2903
        %v4941 = vpop.f32.mrb[0].mxu0
        %v4942 = vadd.f32 0.0, %v4941
        %v4943 = vpop.f32.mrb[0].mxu0
        %4944 = vmatprep.mubr.f32.mxu0 0.0
        %4945 = vmatmul.mubr.f32.gmra.mrb[0].mxu0 %v2906
        %v4946 = vpop.f32.mrb[0].mxu0
        %v4947 = vadd.f32 0.0, %v4946
        %v4948 = vpop.f32.mrb[0].mxu0
        %4949 = vmatprep.mubr.f32.mxu0 0.0
        %4950 = vmatmul.mubr.f32.gmra.mrb[0].mxu0 %v2909
        %v4951 = vpop.f32.mrb[0].mxu0
        %v4952 = vadd.f32 0.0, %v4951
        %v4953 = vpop.f32.mrb[0].mxu0
        %4954 = vmatprep.mubr.f32.mxu0 0.0
        %4955 = vmatmul.mubr.f32.gmra.mrb[0].mxu0 %v2912
        %v4956 = vpop.f32.mrb[0].mxu0
        %v4957 = vadd.f32 0.0, %v4956
        %v4958 = vpop.f32.mrb[0].mxu0
        %4959 = vmatprep.mubr.f32.mxu0 0.0
        %4960 = vmatmul.mubr.f32.gmra.mrb[0].mxu0 %v2915
        %v4961 = vpop.f32.mrb[0].mxu0
        %v4962 = vadd.f32 0.0, %v4961
        %v4963 = vpop.f32.mrb[0].mxu0
        %4964 = vmatprep.mubr.f32.mxu0 0.0
        %4965 = vmatmul.mubr.f32.gmra.mrb[0].mxu0 %v2918
        %v4966 = vpop.f32.mrb[0].mxu0
        %v4967 = vadd.f32 0.0, %v4966
        %v4968 = vpop.f32.mrb[0].mxu0
        %4969 = vmatprep.mubr.f32.mxu0 0.0
        %4970 = vmatmul.mubr.f32.gmra.mrb[0].mxu0 %v2921
        %v4971 = vpop.f32.mrb[0].mxu0
        %v4972 = vadd.f32 0.0, %v4971
        %v4973 = vpop.f32.mrb[0].mxu0
        %4974 = vmatprep.mubr.f32.mxu0 0.0
        %4975 = vmatmul.mubr.f32.gmra.mrb[0].mxu0 %v2924
        %v4976 = vpop.f32.mrb[0].mxu0
        %v4977 = vadd.f32 0.0, %v4976
        %v4978 = vpop.f32.mrb[0].mxu0
        %4979 = vmatprep.mubr.f32.mxu0 0.0
        %4980 = vmatmul.mubr.f32.gmra.mrb[0].mxu0 %v2927
        %v4981 = vpop.f32.mrb[0].mxu0
        %v4982 = vadd.f32 0.0, %v4981
        %v4983 = vpop.f32.mrb[0].mxu0
        %4984 = vmatprep.mubr.f32.mxu0 0.0
        %4985 = vmatmul.mubr.f32.gmra.mrb[0].mxu0 %v2930
        %v4986 = vpop.f32.mrb[0].mxu0
        %v4987 = vadd.f32 0.0, %v4986
        %v4988 = vpop.f32.mrb[0].mxu0
        %4989 = vmatprep.mubr.f32.mxu0 0.0
        %4990 = vmatmul.mubr.f32.gmra.mrb[0].mxu0 %v2933
        %v4991 = vpop.f32.mrb[0].mxu0
        %v4992 = vadd.f32 0.0, %v4991
        %v4993 = vpop.f32.mrb[0].mxu0
        %4994 = vmatprep.mubr.f32.mxu0 0.0
        %4995 = vmatmul.mubr.f32.gmra.mrb[0].mxu0 %v2936
        %v4996 = vpop.f32.mrb[0].mxu0
        %v4997 = vadd.f32 0.0, %v4996
        %v4998 = vpop.f32.mrb[0].mxu0
        %4999 = vmatprep.mubr.f32.mxu0 0.0
        %5000 = vmatmul.mubr.f32.gmra.mrb[0].mxu0 %v2939
        %v5001 = vpop.f32.mrb[0].mxu0
        %v5002 = vadd.f32 0.0, %v5001
        %v5003 = vpop.f32.mrb[0].mxu0
        %5004 = vmatprep.mubr.f32.mxu0 0.0
        %5005 = vmatmul.mubr.f32.gmra.mrb[0].mxu0 %v2942
        %v5006 = vpop.f32.mrb[0].mxu0
        %v5007 = vadd.f32 0.0, %v5006
        %v5008 = vpop.f32.mrb[0].mxu0
        %5009 = vmatprep.mubr.f32.mxu0 0.0
        %5010 = vmatmul.mubr.f32.gmra.mrb[0].mxu0 %v2945
        %v5011 = vpop.f32.mrb[0].mxu0
        %v5012 = vadd.f32 0.0, %v5011
        %v5013 = vpop.f32.mrb[0].mxu0
        %5014 = vmatprep.mubr.f32.mxu0 0.0
        %5015 = vmatmul.mubr.f32.gmra.mrb[0].mxu0 %v2948
        %v5016 = vpop.f32.mrb[0].mxu0
        %v5017 = vadd.f32 0.0, %v5016
        %v5018 = vpop.f32.mrb[0].mxu0
        %5019 = vmatprep.mubr.f32.mxu0 0.0
        %5020 = vmatmul.mubr.f32.gmra.mrb[0].mxu0 %v2951
        %v5021 = vpop.f32.mrb[0].mxu0
        %v5022 = vadd.f32 0.0, %v5021
        %v5023 = vpop.f32.mrb[0].mxu0
        %5024 = vmatprep.mubr.f32.mxu0 0.0
        %5025 = vmatmul.mubr.f32.gmra.mrb[0].mxu0 %v2954
        %v5026 = vpop.f32.mrb[0].mxu0
        %v5027 = vadd.f32 0.0, %v5026
        %v5028 = vpop.f32.mrb[0].mxu0
        %5029 = vmatprep.mubr.f32.mxu0 0.0
        %5030 = vmatmul.mubr.f32.gmra.mrb[0].mxu0 %v2957
        %v5031 = vpop.f32.mrb[0].mxu0
        %v5032 = vadd.f32 0.0, %v5031
        %v5033 = vpop.f32.mrb[0].mxu0
        %5034 = vmatprep.mubr.f32.mxu0 0.0
        %5035 = vmatmul.mubr.f32.gmra.mrb[0].mxu0 %v2960
        %v5036 = vpop.f32.mrb[0].mxu0
        %v5037 = vadd.f32 0.0, %v5036
        %v5038 = vpop.f32.mrb[0].mxu0
        %5039 = vdwg.mxu0
        %v5041 = vsel %vm572, %v4809, 0
        %5043 = vmatprep.subr.mxu0 0.0
        %5044 = vmatpush1.msra.mxu0 %v5041
        %5045 = vmatprep.subr.mxu0 0.0
        %5046 = vmatpush1.msra.mxu0 0.0
        %5047 = vmatprep.subr.mxu0 0.0
        %5048 = vmatpush1.msra.mxu0 0.0
        %5049 = vmatprep.subr.mxu0 0.0
        %5050 = vmatpush1.msra.mxu0 0.0
        %5051 = vmatprep.subr.mxu0 0.0
        %5052 = vmatpush1.msra.mxu0 0.0
        %5053 = vmatprep.subr.mxu0 0.0
        %5054 = vmatpush1.msra.mxu0 0.0
        %5055 = vmatprep.subr.mxu0 0.0
        %5056 = vmatpush1.msra.mxu0 0.0
        %5057 = vmatprep.subr.mxu0 0.0
        %5058 = vmatpush1.msra.mxu0 0.0
        %5059 = vmatprep.subr.mxu0 0.0
        %5060 = vmatpush1.msra.mxu0 0.0
        %5061 = vmatprep.subr.mxu0 0.0
        %5062 = vmatpush1.msra.mxu0 0.0
        %5063 = vmatprep.subr.mxu0 0.0
        %5064 = vmatpush1.msra.mxu0 0.0
        %5065 = vmatprep.subr.mxu0 0.0
        %5066 = vmatpush1.msra.mxu0 0.0
        %5067 = vmatprep.subr.mxu0 0.0
        %5068 = vmatpush1.msra.mxu0 0.0
        %5069 = vmatprep.subr.mxu0 0.0
        %5070 = vmatpush1.msra.mxu0 0.0
        %5071 = vmatprep.subr.mxu0 0.0
        %5072 = vmatpush1.msra.mxu0 0.0
        %5073 = vmatprep.subr.mxu0 0.0
        %5074 = vmatpush1.msra.mxu0 0.0
        %5075 = vmatprep.subr.mxu0 0.0
        %5076 = vmatpush1.msra.mxu0 0.0
        %5077 = vmatprep.subr.mxu0 0.0
        %5078 = vmatpush1.msra.mxu0 0.0
        %5079 = vmatprep.subr.mxu0 0.0
        %5080 = vmatpush1.msra.mxu0 0.0
        %5081 = vmatprep.subr.mxu0 0.0
        %5082 = vmatpush1.msra.mxu0 0.0
        %5083 = vmatprep.subr.mxu0 0.0
        %5084 = vmatpush1.msra.mxu0 0.0
        %5085 = vmatprep.subr.mxu0 0.0
        %5086 = vmatpush1.msra.mxu0 0.0
        %5087 = vmatprep.subr.mxu0 0.0
        %5088 = vmatpush1.msra.mxu0 0.0
        %5089 = vmatprep.subr.mxu0 0.0
        %5090 = vmatpush1.msra.mxu0 0.0
        %5091 = vmatprep.subr.mxu0 0.0
        %5092 = vmatpush1.msra.mxu0 0.0
        %5093 = vmatprep.subr.mxu0 0.0
        %5094 = vmatpush1.msra.mxu0 0.0
        %5095 = vmatprep.subr.mxu0 0.0
        %5096 = vmatpush1.msra.mxu0 0.0
        %5097 = vmatprep.subr.mxu0 0.0
        %5098 = vmatpush1.msra.mxu0 0.0
        %5099 = vmatprep.subr.mxu0 0.0
        %5100 = vmatpush1.msra.mxu0 0.0
        %5101 = vmatprep.subr.mxu0 0.0
        %5102 = vmatpush1.msra.mxu0 0.0
        %5103 = vmatprep.subr.mxu0 0.0
        %5104 = vmatpush1.msra.mxu0 0.0
        %5105 = vmatprep.subr.mxu0 0.0
        %5106 = vmatpush1.msra.mxu0 0.0
        %5107 = vmatprep.mubr.f32.mxu0 0.0
        %5108 = vmatmul.mubr.f32.gmra.mrb[0].mxu0 %v1486
        %v5109 = vpop.f32.mrb[0].mxu0
        %v5110 = vadd.f32 %v4882, %v5109
        %v5111 = vpop.f32.mrb[0].mxu0
        %5112 = vmatprep.mubr.f32.mxu0 0.0
        %5113 = vmatmul.mubr.f32.gmra.mrb[0].mxu0 %v1489
        %v5114 = vpop.f32.mrb[0].mxu0
        %v5115 = vadd.f32 %v4887, %v5114
        %v5116 = vpop.f32.mrb[0].mxu0
        %5117 = vmatprep.mubr.f32.mxu0 0.0
        %5118 = vmatmul.mubr.f32.gmra.mrb[0].mxu0 %v1492
        %v5119 = vpop.f32.mrb[0].mxu0
        %v5120 = vadd.f32 %v4892, %v5119
        %v5121 = vpop.f32.mrb[0].mxu0
        %5122 = vmatprep.mubr.f32.mxu0 0.0
        %5123 = vmatmul.mubr.f32.gmra.mrb[0].mxu0 %v1495
        %v5124 = vpop.f32.mrb[0].mxu0
        %v5125 = vadd.f32 %v4897, %v5124
        %v5126 = vpop.f32.mrb[0].mxu0
        %5127 = vmatprep.mubr.f32.mxu0 0.0
        %5128 = vmatmul.mubr.f32.gmra.mrb[0].mxu0 %v1498
        %v5129 = vpop.f32.mrb[0].mxu0
        %v5130 = vadd.f32 %v4902, %v5129
        %v5131 = vpop.f32.mrb[0].mxu0
        %5132 = vmatprep.mubr.f32.mxu0 0.0
        %5133 = vmatmul.mubr.f32.gmra.mrb[0].mxu0 %v1501
        %v5134 = vpop.f32.mrb[0].mxu0
        %v5135 = vadd.f32 %v4907, %v5134
        %v5136 = vpop.f32.mrb[0].mxu0
        %5137 = vmatprep.mubr.f32.mxu0 0.0
        %5138 = vmatmul.mubr.f32.gmra.mrb[0].mxu0 %v1504
        %v5139 = vpop.f32.mrb[0].mxu0
        %v5140 = vadd.f32 %v4912, %v5139
        %v5141 = vpop.f32.mrb[0].mxu0
        %5142 = vmatprep.mubr.f32.mxu0 0.0
        %5143 = vmatmul.mubr.f32.gmra.mrb[0].mxu0 %v1507
        %v5144 = vpop.f32.mrb[0].mxu0
        %v5145 = vadd.f32 %v4917, %v5144
        %v5146 = vpop.f32.mrb[0].mxu0
        %5147 = vmatprep.mubr.f32.mxu0 0.0
        %5148 = vmatmul.mubr.f32.gmra.mrb[0].mxu0 %v1510
        %v5149 = vpop.f32.mrb[0].mxu0
        %v5150 = vadd.f32 %v4922, %v5149
        %v5151 = vpop.f32.mrb[0].mxu0
        %5152 = vmatprep.mubr.f32.mxu0 0.0
        %5153 = vmatmul.mubr.f32.gmra.mrb[0].mxu0 %v1513
        %v5154 = vpop.f32.mrb[0].mxu0
        %v5155 = vadd.f32 %v4927, %v5154
        %v5156 = vpop.f32.mrb[0].mxu0
        %5157 = vmatprep.mubr.f32.mxu0 0.0
        %5158 = vmatmul.mubr.f32.gmra.mrb[0].mxu0 %v1516
        %v5159 = vpop.f32.mrb[0].mxu0
        %v5160 = vadd.f32 %v4932, %v5159
        %v5161 = vpop.f32.mrb[0].mxu0
        %5162 = vmatprep.mubr.f32.mxu0 0.0
        %5163 = vmatmul.mubr.f32.gmra.mrb[0].mxu0 %v1519
        %v5164 = vpop.f32.mrb[0].mxu0
        %v5165 = vadd.f32 %v4937, %v5164
        %v5166 = vpop.f32.mrb[0].mxu0
        %5167 = vmatprep.mubr.f32.mxu0 0.0
        %5168 = vmatmul.mubr.f32.gmra.mrb[0].mxu0 %v1522
        %v5169 = vpop.f32.mrb[0].mxu0
        %v5170 = vadd.f32 %v4942, %v5169
        %v5171 = vpop.f32.mrb[0].mxu0
        %5172 = vmatprep.mubr.f32.mxu0 0.0
        %5173 = vmatmul.mubr.f32.gmra.mrb[0].mxu0 %v1525
        %v5174 = vpop.f32.mrb[0].mxu0
        %v5175 = vadd.f32 %v4947, %v5174
        %v5176 = vpop.f32.mrb[0].mxu0
        %5177 = vmatprep.mubr.f32.mxu0 0.0
        %5178 = vmatmul.mubr.f32.gmra.mrb[0].mxu0 %v1528
        %v5179 = vpop.f32.mrb[0].mxu0
        %v5180 = vadd.f32 %v4952, %v5179
        %v5181 = vpop.f32.mrb[0].mxu0
        %5182 = vmatprep.mubr.f32.mxu0 0.0
        %5183 = vmatmul.mubr.f32.gmra.mrb[0].mxu0 %v1531
        %v5184 = vpop.f32.mrb[0].mxu0
        %v5185 = vadd.f32 %v4957, %v5184
        %v5186 = vpop.f32.mrb[0].mxu0
        %5187 = vmatprep.mubr.f32.mxu0 0.0
        %5188 = vmatmul.mubr.f32.gmra.mrb[0].mxu0 %v1534
        %v5189 = vpop.f32.mrb[0].mxu0
        %v5190 = vadd.f32 %v4962, %v5189
        %v5191 = vpop.f32.mrb[0].mxu0
        %5192 = vmatprep.mubr.f32.mxu0 0.0
        %5193 = vmatmul.mubr.f32.gmra.mrb[0].mxu0 %v1537
        %v5194 = vpop.f32.mrb[0].mxu0
        %v5195 = vadd.f32 %v4967, %v5194
        %v5196 = vpop.f32.mrb[0].mxu0
        %5197 = vmatprep.mubr.f32.mxu0 0.0
        %5198 = vmatmul.mubr.f32.gmra.mrb[0].mxu0 %v1540
        %v5199 = vpop.f32.mrb[0].mxu0
        %v5200 = vadd.f32 %v4972, %v5199
        %v5201 = vpop.f32.mrb[0].mxu0
        %5202 = vmatprep.mubr.f32.mxu0 0.0
        %5203 = vmatmul.mubr.f32.gmra.mrb[0].mxu0 %v1543
        %v5204 = vpop.f32.mrb[0].mxu0
        %v5205 = vadd.f32 %v4977, %v5204
        %v5206 = vpop.f32.mrb[0].mxu0
        %5207 = vmatprep.mubr.f32.mxu0 0.0
        %5208 = vmatmul.mubr.f32.gmra.mrb[0].mxu0 %v1546
        %v5209 = vpop.f32.mrb[0].mxu0
        %v5210 = vadd.f32 %v4982, %v5209
        %v5211 = vpop.f32.mrb[0].mxu0
        %5212 = vmatprep.mubr.f32.mxu0 0.0
        %5213 = vmatmul.mubr.f32.gmra.mrb[0].mxu0 %v1549
        %v5214 = vpop.f32.mrb[0].mxu0
        %v5215 = vadd.f32 %v4987, %v5214
        %v5216 = vpop.f32.mrb[0].mxu0
        %5217 = vmatprep.mubr.f32.mxu0 0.0
        %5218 = vmatmul.mubr.f32.gmra.mrb[0].mxu0 %v1552
        %v5219 = vpop.f32.mrb[0].mxu0
        %v5220 = vadd.f32 %v4992, %v5219
        %v5221 = vpop.f32.mrb[0].mxu0
        %5222 = vmatprep.mubr.f32.mxu0 0.0
        %5223 = vmatmul.mubr.f32.gmra.mrb[0].mxu0 %v1555
        %v5224 = vpop.f32.mrb[0].mxu0
        %v5225 = vadd.f32 %v4997, %v5224
        %v5226 = vpop.f32.mrb[0].mxu0
        %5227 = vmatprep.mubr.f32.mxu0 0.0
        %5228 = vmatmul.mubr.f32.gmra.mrb[0].mxu0 %v1558
        %v5229 = vpop.f32.mrb[0].mxu0
        %v5230 = vadd.f32 %v5002, %v5229
        %v5231 = vpop.f32.mrb[0].mxu0
        %5232 = vmatprep.mubr.f32.mxu0 0.0
        %5233 = vmatmul.mubr.f32.gmra.mrb[0].mxu0 %v1561
        %v5234 = vpop.f32.mrb[0].mxu0
        %v5235 = vadd.f32 %v5007, %v5234
        %v5236 = vpop.f32.mrb[0].mxu0
        %5237 = vmatprep.mubr.f32.mxu0 0.0
        %5238 = vmatmul.mubr.f32.gmra.mrb[0].mxu0 %v1564
        %v5239 = vpop.f32.mrb[0].mxu0
        %v5240 = vadd.f32 %v5012, %v5239
        %v5241 = vpop.f32.mrb[0].mxu0
        %5242 = vmatprep.mubr.f32.mxu0 0.0
        %5243 = vmatmul.mubr.f32.gmra.mrb[0].mxu0 %v1567
        %v5244 = vpop.f32.mrb[0].mxu0
        %v5245 = vadd.f32 %v5017, %v5244
        %v5246 = vpop.f32.mrb[0].mxu0
        %5247 = vmatprep.mubr.f32.mxu0 0.0
        %5248 = vmatmul.mubr.f32.gmra.mrb[0].mxu0 %v1570
        %v5249 = vpop.f32.mrb[0].mxu0
        %v5250 = vadd.f32 %v5022, %v5249
        %v5251 = vpop.f32.mrb[0].mxu0
        %5252 = vmatprep.mubr.f32.mxu0 0.0
        %5253 = vmatmul.mubr.f32.gmra.mrb[0].mxu0 %v1573
        %v5254 = vpop.f32.mrb[0].mxu0
        %v5255 = vadd.f32 %v5027, %v5254
        %v5256 = vpop.f32.mrb[0].mxu0
        %5257 = vmatprep.mubr.f32.mxu0 0.0
        %5258 = vmatmul.mubr.f32.gmra.mrb[0].mxu0 %v1576
        %v5259 = vpop.f32.mrb[0].mxu0
        %v5260 = vadd.f32 %v5032, %v5259
        %v5261 = vpop.f32.mrb[0].mxu0
        %5262 = vmatprep.mubr.f32.mxu0 0.0
        %5263 = vmatmul.mubr.f32.gmra.mrb[0].mxu0 %v1579
        %v5264 = vpop.f32.mrb[0].mxu0
        %v5265 = vadd.f32 %v5037, %v5264
        %v5266 = vpop.f32.mrb[0].mxu0
        %5267 = vdwg.mxu0
        %s5268 = scalar_lea.vmem %s1, 56
        %v5269 = vld [vmem:[%s5268] sm:$0xf]
        %v5271 = vsel %vm572, %v5269, 0
        %5273 = vmatprep.subr.mxu0 0.0
        %5274 = vmatpush1.msra.mxu0 %v5271
        %5275 = vmatprep.subr.mxu0 0.0
        %5276 = vmatpush1.msra.mxu0 0.0
        %5277 = vmatprep.subr.mxu0 0.0
        %5278 = vmatpush1.msra.mxu0 0.0
        %5279 = vmatprep.subr.mxu0 0.0
        %5280 = vmatpush1.msra.mxu0 0.0
        %5281 = vmatprep.subr.mxu0 0.0
        %5282 = vmatpush1.msra.mxu0 0.0
        %5283 = vmatprep.subr.mxu0 0.0
        %5284 = vmatpush1.msra.mxu0 0.0
        %5285 = vmatprep.subr.mxu0 0.0
        %5286 = vmatpush1.msra.mxu0 0.0
        %5287 = vmatprep.subr.mxu0 0.0
        %5288 = vmatpush1.msra.mxu0 0.0
        %5289 = vmatprep.subr.mxu0 0.0
        %5290 = vmatpush1.msra.mxu0 0.0
        %5291 = vmatprep.subr.mxu0 0.0
        %5292 = vmatpush1.msra.mxu0 0.0
        %5293 = vmatprep.subr.mxu0 0.0
        %5294 = vmatpush1.msra.mxu0 0.0
        %5295 = vmatprep.subr.mxu0 0.0
        %5296 = vmatpush1.msra.mxu0 0.0
        %5297 = vmatprep.subr.mxu0 0.0
        %5298 = vmatpush1.msra.mxu0 0.0
        %5299 = vmatprep.subr.mxu0 0.0
        %5300 = vmatpush1.msra.mxu0 0.0
        %5301 = vmatprep.subr.mxu0 0.0
        %5302 = vmatpush1.msra.mxu0 0.0
        %5303 = vmatprep.subr.mxu0 0.0
        %5304 = vmatpush1.msra.mxu0 0.0
        %5305 = vmatprep.subr.mxu0 0.0
        %5306 = vmatpush1.msra.mxu0 0.0
        %5307 = vmatprep.subr.mxu0 0.0
        %5308 = vmatpush1.msra.mxu0 0.0
        %5309 = vmatprep.subr.mxu0 0.0
        %5310 = vmatpush1.msra.mxu0 0.0
        %5311 = vmatprep.subr.mxu0 0.0
        %5312 = vmatpush1.msra.mxu0 0.0
        %5313 = vmatprep.subr.mxu0 0.0
        %5314 = vmatpush1.msra.mxu0 0.0
        %5315 = vmatprep.subr.mxu0 0.0
        %5316 = vmatpush1.msra.mxu0 0.0
        %5317 = vmatprep.subr.mxu0 0.0
        %5318 = vmatpush1.msra.mxu0 0.0
        %5319 = vmatprep.subr.mxu0 0.0
        %5320 = vmatpush1.msra.mxu0 0.0
        %5321 = vmatprep.subr.mxu0 0.0
        %5322 = vmatpush1.msra.mxu0 0.0
        %5323 = vmatprep.subr.mxu0 0.0
        %5324 = vmatpush1.msra.mxu0 0.0
        %5325 = vmatprep.subr.mxu0 0.0
        %5326 = vmatpush1.msra.mxu0 0.0
        %5327 = vmatprep.subr.mxu0 0.0
        %5328 = vmatpush1.msra.mxu0 0.0
        %5329 = vmatprep.subr.mxu0 0.0
        %5330 = vmatpush1.msra.mxu0 0.0
        %5331 = vmatprep.subr.mxu0 0.0
        %5332 = vmatpush1.msra.mxu0 0.0
        %5333 = vmatprep.subr.mxu0 0.0
        %5334 = vmatpush1.msra.mxu0 0.0
        %5335 = vmatprep.subr.mxu0 0.0
        %5336 = vmatpush1.msra.mxu0 0.0
        %5337 = vmatprep.mubr.f32.mxu0 0.0
        %5338 = vmatmul.mubr.f32.gmra.mrb[0].mxu0 %v4248
        %v5339 = vpop.f32.mrb[0].mxu0
        %v5340 = vadd.f32 0.0, %v5339
        %v5341 = vpop.f32.mrb[0].mxu0
        %5342 = vmatprep.mubr.f32.mxu0 0.0
        %5343 = vmatmul.mubr.f32.gmra.mrb[0].mxu0 %v4251
        %v5344 = vpop.f32.mrb[0].mxu0
        %v5345 = vadd.f32 0.0, %v5344
        %v5346 = vpop.f32.mrb[0].mxu0
        %5347 = vmatprep.mubr.f32.mxu0 0.0
        %5348 = vmatmul.mubr.f32.gmra.mrb[0].mxu0 %v4254
        %v5349 = vpop.f32.mrb[0].mxu0
        %v5350 = vadd.f32 0.0, %v5349
        %v5351 = vpop.f32.mrb[0].mxu0
        %5352 = vmatprep.mubr.f32.mxu0 0.0
        %5353 = vmatmul.mubr.f32.gmra.mrb[0].mxu0 %v4257
        %v5354 = vpop.f32.mrb[0].mxu0
        %v5355 = vadd.f32 0.0, %v5354
        %v5356 = vpop.f32.mrb[0].mxu0
        %5357 = vmatprep.mubr.f32.mxu0 0.0
        %5358 = vmatmul.mubr.f32.gmra.mrb[0].mxu0 %v4260
        %v5359 = vpop.f32.mrb[0].mxu0
        %v5360 = vadd.f32 0.0, %v5359
        %v5361 = vpop.f32.mrb[0].mxu0
        %5362 = vmatprep.mubr.f32.mxu0 0.0
        %5363 = vmatmul.mubr.f32.gmra.mrb[0].mxu0 %v4263
        %v5364 = vpop.f32.mrb[0].mxu0
        %v5365 = vadd.f32 0.0, %v5364
        %v5366 = vpop.f32.mrb[0].mxu0
        %5367 = vmatprep.mubr.f32.mxu0 0.0
        %5368 = vmatmul.mubr.f32.gmra.mrb[0].mxu0 %v4266
        %v5369 = vpop.f32.mrb[0].mxu0
        %v5370 = vadd.f32 0.0, %v5369
        %v5371 = vpop.f32.mrb[0].mxu0
        %5372 = vmatprep.mubr.f32.mxu0 0.0
        %5373 = vmatmul.mubr.f32.gmra.mrb[0].mxu0 %v4269
        %v5374 = vpop.f32.mrb[0].mxu0
        %v5375 = vadd.f32 0.0, %v5374
        %v5376 = vpop.f32.mrb[0].mxu0
        %5377 = vmatprep.mubr.f32.mxu0 0.0
        %5378 = vmatmul.mubr.f32.gmra.mrb[0].mxu0 %v4272
        %v5379 = vpop.f32.mrb[0].mxu0
        %v5380 = vadd.f32 0.0, %v5379
        %v5381 = vpop.f32.mrb[0].mxu0
        %5382 = vmatprep.mubr.f32.mxu0 0.0
        %5383 = vmatmul.mubr.f32.gmra.mrb[0].mxu0 %v4275
        %v5384 = vpop.f32.mrb[0].mxu0
        %v5385 = vadd.f32 0.0, %v5384
        %v5386 = vpop.f32.mrb[0].mxu0
        %5387 = vmatprep.mubr.f32.mxu0 0.0
        %5388 = vmatmul.mubr.f32.gmra.mrb[0].mxu0 %v4278
        %v5389 = vpop.f32.mrb[0].mxu0
        %v5390 = vadd.f32 0.0, %v5389
        %v5391 = vpop.f32.mrb[0].mxu0
        %5392 = vmatprep.mubr.f32.mxu0 0.0
        %5393 = vmatmul.mubr.f32.gmra.mrb[0].mxu0 %v4281
        %v5394 = vpop.f32.mrb[0].mxu0
        %v5395 = vadd.f32 0.0, %v5394
        %v5396 = vpop.f32.mrb[0].mxu0
        %5397 = vmatprep.mubr.f32.mxu0 0.0
        %5398 = vmatmul.mubr.f32.gmra.mrb[0].mxu0 %v4284
        %v5399 = vpop.f32.mrb[0].mxu0
        %v5400 = vadd.f32 0.0, %v5399
        %v5401 = vpop.f32.mrb[0].mxu0
        %5402 = vmatprep.mubr.f32.mxu0 0.0
        %5403 = vmatmul.mubr.f32.gmra.mrb[0].mxu0 %v4287
        %v5404 = vpop.f32.mrb[0].mxu0
        %v5405 = vadd.f32 0.0, %v5404
        %v5406 = vpop.f32.mrb[0].mxu0
        %5407 = vmatprep.mubr.f32.mxu0 0.0
        %5408 = vmatmul.mubr.f32.gmra.mrb[0].mxu0 %v4290
        %v5409 = vpop.f32.mrb[0].mxu0
        %v5410 = vadd.f32 0.0, %v5409
        %v5411 = vpop.f32.mrb[0].mxu0
        %5412 = vmatprep.mubr.f32.mxu0 0.0
        %5413 = vmatmul.mubr.f32.gmra.mrb[0].mxu0 %v4293
        %v5414 = vpop.f32.mrb[0].mxu0
        %v5415 = vadd.f32 0.0, %v5414
        %v5416 = vpop.f32.mrb[0].mxu0
        %5417 = vmatprep.mubr.f32.mxu0 0.0
        %5418 = vmatmul.mubr.f32.gmra.mrb[0].mxu0 %v4296
        %v5419 = vpop.f32.mrb[0].mxu0
        %v5420 = vadd.f32 0.0, %v5419
        %v5421 = vpop.f32.mrb[0].mxu0
        %5422 = vmatprep.mubr.f32.mxu0 0.0
        %5423 = vmatmul.mubr.f32.gmra.mrb[0].mxu0 %v4299
        %v5424 = vpop.f32.mrb[0].mxu0
        %v5425 = vadd.f32 0.0, %v5424
        %v5426 = vpop.f32.mrb[0].mxu0
        %5427 = vmatprep.mubr.f32.mxu0 0.0
        %5428 = vmatmul.mubr.f32.gmra.mrb[0].mxu0 %v4302
        %v5429 = vpop.f32.mrb[0].mxu0
        %v5430 = vadd.f32 0.0, %v5429
        %v5431 = vpop.f32.mrb[0].mxu0
        %5432 = vmatprep.mubr.f32.mxu0 0.0
        %5433 = vmatmul.mubr.f32.gmra.mrb[0].mxu0 %v4305
        %v5434 = vpop.f32.mrb[0].mxu0
        %v5435 = vadd.f32 0.0, %v5434
        %v5436 = vpop.f32.mrb[0].mxu0
        %5437 = vmatprep.mubr.f32.mxu0 0.0
        %5438 = vmatmul.mubr.f32.gmra.mrb[0].mxu0 %v4308
        %v5439 = vpop.f32.mrb[0].mxu0
        %v5440 = vadd.f32 0.0, %v5439
        %v5441 = vpop.f32.mrb[0].mxu0
        %5442 = vmatprep.mubr.f32.mxu0 0.0
        %5443 = vmatmul.mubr.f32.gmra.mrb[0].mxu0 %v4311
        %v5444 = vpop.f32.mrb[0].mxu0
        %v5445 = vadd.f32 0.0, %v5444
        %v5446 = vpop.f32.mrb[0].mxu0
        %5447 = vmatprep.mubr.f32.mxu0 0.0
        %5448 = vmatmul.mubr.f32.gmra.mrb[0].mxu0 %v4314
        %v5449 = vpop.f32.mrb[0].mxu0
        %v5450 = vadd.f32 0.0, %v5449
        %v5451 = vpop.f32.mrb[0].mxu0
        %5452 = vmatprep.mubr.f32.mxu0 0.0
        %5453 = vmatmul.mubr.f32.gmra.mrb[0].mxu0 %v4317
        %v5454 = vpop.f32.mrb[0].mxu0
        %v5455 = vadd.f32 0.0, %v5454
        %v5456 = vpop.f32.mrb[0].mxu0
        %5457 = vmatprep.mubr.f32.mxu0 0.0
        %5458 = vmatmul.mubr.f32.gmra.mrb[0].mxu0 %v4320
        %v5459 = vpop.f32.mrb[0].mxu0
        %v5460 = vadd.f32 0.0, %v5459
        %v5461 = vpop.f32.mrb[0].mxu0
        %5462 = vmatprep.mubr.f32.mxu0 0.0
        %5463 = vmatmul.mubr.f32.gmra.mrb[0].mxu0 %v4323
        %v5464 = vpop.f32.mrb[0].mxu0
        %v5465 = vadd.f32 0.0, %v5464
        %v5466 = vpop.f32.mrb[0].mxu0
        %5467 = vmatprep.mubr.f32.mxu0 0.0
        %5468 = vmatmul.mubr.f32.gmra.mrb[0].mxu0 %v4326
        %v5469 = vpop.f32.mrb[0].mxu0
        %v5470 = vadd.f32 0.0, %v5469
        %v5471 = vpop.f32.mrb[0].mxu0
        %5472 = vmatprep.mubr.f32.mxu0 0.0
        %5473 = vmatmul.mubr.f32.gmra.mrb[0].mxu0 %v4329
        %v5474 = vpop.f32.mrb[0].mxu0
        %v5475 = vadd.f32 0.0, %v5474
        %v5476 = vpop.f32.mrb[0].mxu0
        %5477 = vmatprep.mubr.f32.mxu0 0.0
        %5478 = vmatmul.mubr.f32.gmra.mrb[0].mxu0 %v4332
        %v5479 = vpop.f32.mrb[0].mxu0
        %v5480 = vadd.f32 0.0, %v5479
        %v5481 = vpop.f32.mrb[0].mxu0
        %5482 = vmatprep.mubr.f32.mxu0 0.0
        %5483 = vmatmul.mubr.f32.gmra.mrb[0].mxu0 %v4335
        %v5484 = vpop.f32.mrb[0].mxu0
        %v5485 = vadd.f32 0.0, %v5484
        %v5486 = vpop.f32.mrb[0].mxu0
        %5487 = vmatprep.mubr.f32.mxu0 0.0
        %5488 = vmatmul.mubr.f32.gmra.mrb[0].mxu0 %v4338
        %v5489 = vpop.f32.mrb[0].mxu0
        %v5490 = vadd.f32 0.0, %v5489
        %v5491 = vpop.f32.mrb[0].mxu0
        %5492 = vmatprep.mubr.f32.mxu0 0.0
        %5493 = vmatmul.mubr.f32.gmra.mrb[0].mxu0 %v4341
        %v5494 = vpop.f32.mrb[0].mxu0
        %v5495 = vadd.f32 0.0, %v5494
        %v5496 = vpop.f32.mrb[0].mxu0
        %5497 = vdwg.mxu0
        %v5498 = vadd.f32 %v5110, %v5340
        %v5499 = vadd.f32 %v5115, %v5345
        %v5500 = vadd.f32 %v5120, %v5350
        %v5501 = vadd.f32 %v5125, %v5355
        %v5502 = vadd.f32 %v5130, %v5360
        %v5503 = vadd.f32 %v5135, %v5365
        %v5504 = vadd.f32 %v5140, %v5370
        %v5505 = vadd.f32 %v5145, %v5375
        %v5506 = vadd.f32 %v5150, %v5380
        %v5507 = vadd.f32 %v5155, %v5385
        %v5508 = vadd.f32 %v5160, %v5390
        %v5509 = vadd.f32 %v5165, %v5395
        %v5510 = vadd.f32 %v5170, %v5400
        %v5511 = vadd.f32 %v5175, %v5405
        %v5512 = vadd.f32 %v5180, %v5410
        %v5513 = vadd.f32 %v5185, %v5415
        %v5514 = vadd.f32 %v5190, %v5420
        %v5515 = vadd.f32 %v5195, %v5425
        %v5516 = vadd.f32 %v5200, %v5430
        %v5517 = vadd.f32 %v5205, %v5435
        %v5518 = vadd.f32 %v5210, %v5440
        %v5519 = vadd.f32 %v5215, %v5445
        %v5520 = vadd.f32 %v5220, %v5450
        %v5521 = vadd.f32 %v5225, %v5455
        %v5522 = vadd.f32 %v5230, %v5460
        %v5523 = vadd.f32 %v5235, %v5465
        %v5524 = vadd.f32 %v5240, %v5470
        %v5525 = vadd.f32 %v5245, %v5475
        %v5526 = vadd.f32 %v5250, %v5480
        %v5527 = vadd.f32 %v5255, %v5485
        %v5528 = vadd.f32 %v5260, %v5490
        %v5529 = vadd.f32 %v5265, %v5495
        %s5530 = scalar_lea.vmem %s1, 60
        %v5531 = vld [vmem:[%s5530] sm:$0xf]
        %v5533 = vsel %vm475, %v440, 0
        %v5536 = vsel %vm475, %v441, 0
        %v5539 = vsel %vm475, %v442, 0
        %v5542 = vsel %vm475, %v443, 0
        %v5545 = vsel %vm475, %v444, 0
        %v5548 = vsel %vm475, %v445, 0
        %v5551 = vsel %vm475, %v446, 0
        %v5554 = vsel %vm475, %v447, 0
        %v5557 = vsel %vm475, %v448, 0
        %v5560 = vsel %vm475, %v449, 0
        %v5563 = vsel %vm475, %v450, 0
        %v5566 = vsel %vm475, %v451, 0
        %v5569 = vsel %vm475, %v452, 0
        %v5572 = vsel %vm475, %v453, 0
        %v5575 = vsel %vm475, %v454, 0
        %v5578 = vsel %vm475, %v455, 0
        %v5581 = vsel %vm475, %v456, 0
        %v5584 = vsel %vm475, %v457, 0
        %v5587 = vsel %vm475, %v458, 0
        %v5590 = vsel %vm475, %v459, 0
        %v5593 = vsel %vm475, %v460, 0
        %v5596 = vsel %vm475, %v461, 0
        %v5599 = vsel %vm475, %v462, 0
        %v5602 = vsel %vm475, %v463, 0
        %v5605 = vsel %vm475, %v464, 0
        %v5608 = vsel %vm475, %v465, 0
        %v5611 = vsel %vm475, %v466, 0
        %v5614 = vsel %vm475, %v467, 0
        %v5617 = vsel %vm475, %v468, 0
        %v5620 = vsel %vm475, %v469, 0
        %v5623 = vsel %vm475, %v470, 0
        %v5626 = vsel %vm475, %v471, 0
        %v5629 = vsel %vm572, %v5531, 0
        %5631 = vmatprep.subr.mxu0 0.0
        %5632 = vmatpush1.msra.mxu0 %v5629
        %5633 = vmatprep.subr.mxu0 0.0
        %5634 = vmatpush1.msra.mxu0 0.0
        %5635 = vmatprep.subr.mxu0 0.0
        %5636 = vmatpush1.msra.mxu0 0.0
        %5637 = vmatprep.subr.mxu0 0.0
        %5638 = vmatpush1.msra.mxu0 0.0
        %5639 = vmatprep.subr.mxu0 0.0
        %5640 = vmatpush1.msra.mxu0 0.0
        %5641 = vmatprep.subr.mxu0 0.0
        %5642 = vmatpush1.msra.mxu0 0.0
        %5643 = vmatprep.subr.mxu0 0.0
        %5644 = vmatpush1.msra.mxu0 0.0
        %5645 = vmatprep.subr.mxu0 0.0
        %5646 = vmatpush1.msra.mxu0 0.0
        %5647 = vmatprep.subr.mxu0 0.0
        %5648 = vmatpush1.msra.mxu0 0.0
        %5649 = vmatprep.subr.mxu0 0.0
        %5650 = vmatpush1.msra.mxu0 0.0
        %5651 = vmatprep.subr.mxu0 0.0
        %5652 = vmatpush1.msra.mxu0 0.0
        %5653 = vmatprep.subr.mxu0 0.0
        %5654 = vmatpush1.msra.mxu0 0.0
        %5655 = vmatprep.subr.mxu0 0.0
        %5656 = vmatpush1.msra.mxu0 0.0
        %5657 = vmatprep.subr.mxu0 0.0
        %5658 = vmatpush1.msra.mxu0 0.0
        %5659 = vmatprep.subr.mxu0 0.0
        %5660 = vmatpush1.msra.mxu0 0.0
        %5661 = vmatprep.subr.mxu0 0.0
        %5662 = vmatpush1.msra.mxu0 0.0
        %5663 = vmatprep.subr.mxu0 0.0
        %5664 = vmatpush1.msra.mxu0 0.0
        %5665 = vmatprep.subr.mxu0 0.0
        %5666 = vmatpush1.msra.mxu0 0.0
        %5667 = vmatprep.subr.mxu0 0.0
        %5668 = vmatpush1.msra.mxu0 0.0
        %5669 = vmatprep.subr.mxu0 0.0
        %5670 = vmatpush1.msra.mxu0 0.0
        %5671 = vmatprep.subr.mxu0 0.0
        %5672 = vmatpush1.msra.mxu0 0.0
        %5673 = vmatprep.subr.mxu0 0.0
        %5674 = vmatpush1.msra.mxu0 0.0
        %5675 = vmatprep.subr.mxu0 0.0
        %5676 = vmatpush1.msra.mxu0 0.0
        %5677 = vmatprep.subr.mxu0 0.0
        %5678 = vmatpush1.msra.mxu0 0.0
        %5679 = vmatprep.subr.mxu0 0.0
        %5680 = vmatpush1.msra.mxu0 0.0
        %5681 = vmatprep.subr.mxu0 0.0
        %5682 = vmatpush1.msra.mxu0 0.0
        %5683 = vmatprep.subr.mxu0 0.0
        %5684 = vmatpush1.msra.mxu0 0.0
        %5685 = vmatprep.subr.mxu0 0.0
        %5686 = vmatpush1.msra.mxu0 0.0
        %5687 = vmatprep.subr.mxu0 0.0
        %5688 = vmatpush1.msra.mxu0 0.0
        %5689 = vmatprep.subr.mxu0 0.0
        %5690 = vmatpush1.msra.mxu0 0.0
        %5691 = vmatprep.subr.mxu0 0.0
        %5692 = vmatpush1.msra.mxu0 0.0
        %5693 = vmatprep.subr.mxu0 0.0
        %5694 = vmatpush1.msra.mxu0 0.0
        %5695 = vmatprep.mubr.f32.mxu0 0.0
        %5696 = vmatmul.mubr.f32.gmra.mrb[0].mxu0 %v5533
        %v5697 = vpop.f32.mrb[0].mxu0
        %v5698 = vadd.f32 0.0, %v5697
        %v5699 = vpop.f32.mrb[0].mxu0
        %5700 = vmatprep.mubr.f32.mxu0 0.0
        %5701 = vmatmul.mubr.f32.gmra.mrb[0].mxu0 %v5536
        %v5702 = vpop.f32.mrb[0].mxu0
        %v5703 = vadd.f32 0.0, %v5702
        %v5704 = vpop.f32.mrb[0].mxu0
        %5705 = vmatprep.mubr.f32.mxu0 0.0
        %5706 = vmatmul.mubr.f32.gmra.mrb[0].mxu0 %v5539
        %v5707 = vpop.f32.mrb[0].mxu0
        %v5708 = vadd.f32 0.0, %v5707
        %v5709 = vpop.f32.mrb[0].mxu0
        %5710 = vmatprep.mubr.f32.mxu0 0.0
        %5711 = vmatmul.mubr.f32.gmra.mrb[0].mxu0 %v5542
        %v5712 = vpop.f32.mrb[0].mxu0
        %v5713 = vadd.f32 0.0, %v5712
        %v5714 = vpop.f32.mrb[0].mxu0
        %5715 = vmatprep.mubr.f32.mxu0 0.0
        %5716 = vmatmul.mubr.f32.gmra.mrb[0].mxu0 %v5545
        %v5717 = vpop.f32.mrb[0].mxu0
        %v5718 = vadd.f32 0.0, %v5717
        %v5719 = vpop.f32.mrb[0].mxu0
        %5720 = vmatprep.mubr.f32.mxu0 0.0
        %5721 = vmatmul.mubr.f32.gmra.mrb[0].mxu0 %v5548
        %v5722 = vpop.f32.mrb[0].mxu0
        %v5723 = vadd.f32 0.0, %v5722
        %v5724 = vpop.f32.mrb[0].mxu0
        %5725 = vmatprep.mubr.f32.mxu0 0.0
        %5726 = vmatmul.mubr.f32.gmra.mrb[0].mxu0 %v5551
        %v5727 = vpop.f32.mrb[0].mxu0
        %v5728 = vadd.f32 0.0, %v5727
        %v5729 = vpop.f32.mrb[0].mxu0
        %5730 = vmatprep.mubr.f32.mxu0 0.0
        %5731 = vmatmul.mubr.f32.gmra.mrb[0].mxu0 %v5554
        %v5732 = vpop.f32.mrb[0].mxu0
        %v5733 = vadd.f32 0.0, %v5732
        %v5734 = vpop.f32.mrb[0].mxu0
        %5735 = vmatprep.mubr.f32.mxu0 0.0
        %5736 = vmatmul.mubr.f32.gmra.mrb[0].mxu0 %v5557
        %v5737 = vpop.f32.mrb[0].mxu0
        %v5738 = vadd.f32 0.0, %v5737
        %v5739 = vpop.f32.mrb[0].mxu0
        %5740 = vmatprep.mubr.f32.mxu0 0.0
        %5741 = vmatmul.mubr.f32.gmra.mrb[0].mxu0 %v5560
        %v5742 = vpop.f32.mrb[0].mxu0
        %v5743 = vadd.f32 0.0, %v5742
        %v5744 = vpop.f32.mrb[0].mxu0
        %5745 = vmatprep.mubr.f32.mxu0 0.0
        %5746 = vmatmul.mubr.f32.gmra.mrb[0].mxu0 %v5563
        %v5747 = vpop.f32.mrb[0].mxu0
        %v5748 = vadd.f32 0.0, %v5747
        %v5749 = vpop.f32.mrb[0].mxu0
        %5750 = vmatprep.mubr.f32.mxu0 0.0
        %5751 = vmatmul.mubr.f32.gmra.mrb[0].mxu0 %v5566
        %v5752 = vpop.f32.mrb[0].mxu0
        %v5753 = vadd.f32 0.0, %v5752
        %v5754 = vpop.f32.mrb[0].mxu0
        %5755 = vmatprep.mubr.f32.mxu0 0.0
        %5756 = vmatmul.mubr.f32.gmra.mrb[0].mxu0 %v5569
        %v5757 = vpop.f32.mrb[0].mxu0
        %v5758 = vadd.f32 0.0, %v5757
        %v5759 = vpop.f32.mrb[0].mxu0
        %5760 = vmatprep.mubr.f32.mxu0 0.0
        %5761 = vmatmul.mubr.f32.gmra.mrb[0].mxu0 %v5572
        %v5762 = vpop.f32.mrb[0].mxu0
        %v5763 = vadd.f32 0.0, %v5762
        %v5764 = vpop.f32.mrb[0].mxu0
        %5765 = vmatprep.mubr.f32.mxu0 0.0
        %5766 = vmatmul.mubr.f32.gmra.mrb[0].mxu0 %v5575
        %v5767 = vpop.f32.mrb[0].mxu0
        %v5768 = vadd.f32 0.0, %v5767
        %v5769 = vpop.f32.mrb[0].mxu0
        %5770 = vmatprep.mubr.f32.mxu0 0.0
        %5771 = vmatmul.mubr.f32.gmra.mrb[0].mxu0 %v5578
        %v5772 = vpop.f32.mrb[0].mxu0
        %v5773 = vadd.f32 0.0, %v5772
        %v5774 = vpop.f32.mrb[0].mxu0
        %5775 = vmatprep.mubr.f32.mxu0 0.0
        %5776 = vmatmul.mubr.f32.gmra.mrb[0].mxu0 %v5581
        %v5777 = vpop.f32.mrb[0].mxu0
        %v5778 = vadd.f32 0.0, %v5777
        %v5779 = vpop.f32.mrb[0].mxu0
        %5780 = vmatprep.mubr.f32.mxu0 0.0
        %5781 = vmatmul.mubr.f32.gmra.mrb[0].mxu0 %v5584
        %v5782 = vpop.f32.mrb[0].mxu0
        %v5783 = vadd.f32 0.0, %v5782
        %v5784 = vpop.f32.mrb[0].mxu0
        %5785 = vmatprep.mubr.f32.mxu0 0.0
        %5786 = vmatmul.mubr.f32.gmra.mrb[0].mxu0 %v5587
        %v5787 = vpop.f32.mrb[0].mxu0
        %v5788 = vadd.f32 0.0, %v5787
        %v5789 = vpop.f32.mrb[0].mxu0
        %5790 = vmatprep.mubr.f32.mxu0 0.0
        %5791 = vmatmul.mubr.f32.gmra.mrb[0].mxu0 %v5590
        %v5792 = vpop.f32.mrb[0].mxu0
        %v5793 = vadd.f32 0.0, %v5792
        %v5794 = vpop.f32.mrb[0].mxu0
        %5795 = vmatprep.mubr.f32.mxu0 0.0
        %5796 = vmatmul.mubr.f32.gmra.mrb[0].mxu0 %v5593
        %v5797 = vpop.f32.mrb[0].mxu0
        %v5798 = vadd.f32 0.0, %v5797
        %v5799 = vpop.f32.mrb[0].mxu0
        %5800 = vmatprep.mubr.f32.mxu0 0.0
        %5801 = vmatmul.mubr.f32.gmra.mrb[0].mxu0 %v5596
        %v5802 = vpop.f32.mrb[0].mxu0
        %v5803 = vadd.f32 0.0, %v5802
        %v5804 = vpop.f32.mrb[0].mxu0
        %5805 = vmatprep.mubr.f32.mxu0 0.0
        %5806 = vmatmul.mubr.f32.gmra.mrb[0].mxu0 %v5599
        %v5807 = vpop.f32.mrb[0].mxu0
        %v5808 = vadd.f32 0.0, %v5807
        %v5809 = vpop.f32.mrb[0].mxu0
        %5810 = vmatprep.mubr.f32.mxu0 0.0
        %5811 = vmatmul.mubr.f32.gmra.mrb[0].mxu0 %v5602
        %v5812 = vpop.f32.mrb[0].mxu0
        %v5813 = vadd.f32 0.0, %v5812
        %v5814 = vpop.f32.mrb[0].mxu0
        %5815 = vmatprep.mubr.f32.mxu0 0.0
        %5816 = vmatmul.mubr.f32.gmra.mrb[0].mxu0 %v5605
        %v5817 = vpop.f32.mrb[0].mxu0
        %v5818 = vadd.f32 0.0, %v5817
        %v5819 = vpop.f32.mrb[0].mxu0
        %5820 = vmatprep.mubr.f32.mxu0 0.0
        %5821 = vmatmul.mubr.f32.gmra.mrb[0].mxu0 %v5608
        %v5822 = vpop.f32.mrb[0].mxu0
        %v5823 = vadd.f32 0.0, %v5822
        %v5824 = vpop.f32.mrb[0].mxu0
        %5825 = vmatprep.mubr.f32.mxu0 0.0
        %5826 = vmatmul.mubr.f32.gmra.mrb[0].mxu0 %v5611
        %v5827 = vpop.f32.mrb[0].mxu0
        %v5828 = vadd.f32 0.0, %v5827
        %v5829 = vpop.f32.mrb[0].mxu0
        %5830 = vmatprep.mubr.f32.mxu0 0.0
        %5831 = vmatmul.mubr.f32.gmra.mrb[0].mxu0 %v5614
        %v5832 = vpop.f32.mrb[0].mxu0
        %v5833 = vadd.f32 0.0, %v5832
        %v5834 = vpop.f32.mrb[0].mxu0
        %5835 = vmatprep.mubr.f32.mxu0 0.0
        %5836 = vmatmul.mubr.f32.gmra.mrb[0].mxu0 %v5617
        %v5837 = vpop.f32.mrb[0].mxu0
        %v5838 = vadd.f32 0.0, %v5837
        %v5839 = vpop.f32.mrb[0].mxu0
        %5840 = vmatprep.mubr.f32.mxu0 0.0
        %5841 = vmatmul.mubr.f32.gmra.mrb[0].mxu0 %v5620
        %v5842 = vpop.f32.mrb[0].mxu0
        %v5843 = vadd.f32 0.0, %v5842
        %v5844 = vpop.f32.mrb[0].mxu0
        %5845 = vmatprep.mubr.f32.mxu0 0.0
        %5846 = vmatmul.mubr.f32.gmra.mrb[0].mxu0 %v5623
        %v5847 = vpop.f32.mrb[0].mxu0
        %v5848 = vadd.f32 0.0, %v5847
        %v5849 = vpop.f32.mrb[0].mxu0
        %5850 = vmatprep.mubr.f32.mxu0 0.0
        %5851 = vmatmul.mubr.f32.gmra.mrb[0].mxu0 %v5626
        %v5852 = vpop.f32.mrb[0].mxu0
        %v5853 = vadd.f32 0.0, %v5852
        %v5854 = vpop.f32.mrb[0].mxu0
        %5855 = vdwg.mxu0
        %v5856 = vadd.f32 %v5498, %v5698
        %v5857 = vadd.f32 %v5499, %v5703
        %v5858 = vadd.f32 %v5500, %v5708
        %v5859 = vadd.f32 %v5501, %v5713
        %v5860 = vadd.f32 %v5502, %v5718
        %v5861 = vadd.f32 %v5503, %v5723
        %v5862 = vadd.f32 %v5504, %v5728
        %v5863 = vadd.f32 %v5505, %v5733
        %v5864 = vadd.f32 %v5506, %v5738
        %v5865 = vadd.f32 %v5507, %v5743
        %v5866 = vadd.f32 %v5508, %v5748
        %v5867 = vadd.f32 %v5509, %v5753
        %v5868 = vadd.f32 %v5510, %v5758
        %v5869 = vadd.f32 %v5511, %v5763
        %v5870 = vadd.f32 %v5512, %v5768
        %v5871 = vadd.f32 %v5513, %v5773
        %v5872 = vadd.f32 %v5514, %v5778
        %v5873 = vadd.f32 %v5515, %v5783
        %v5874 = vadd.f32 %v5516, %v5788
        %v5875 = vadd.f32 %v5517, %v5793
        %v5876 = vadd.f32 %v5518, %v5798
        %v5877 = vadd.f32 %v5519, %v5803
        %v5878 = vadd.f32 %v5520, %v5808
        %v5879 = vadd.f32 %v5521, %v5813
        %v5880 = vadd.f32 %v5522, %v5818
        %v5881 = vadd.f32 %v5523, %v5823
        %v5882 = vadd.f32 %v5524, %v5828
        %v5883 = vadd.f32 %v5525, %v5833
        %v5884 = vadd.f32 %v5526, %v5838
        %v5885 = vadd.f32 %v5527, %v5843
        %v5886 = vadd.f32 %v5528, %v5848
        %v5887 = vadd.f32 %v5529, %v5853
        %s5888 = scalar_lea.vmem %s181, 768
        %5889 = vst.msk [vmem:[%s5888] sm:$0xff] %vm1841, %v5856
        %5890 = vst.msk [vmem:[%s5888 + $0x8] sm:$0xff] %vm1841, %v5857
        %5891 = vst.msk [vmem:[%s5888 + $0x10] sm:$0xff] %vm1841, %v5858
        %5892 = vst.msk [vmem:[%s5888 + $0x18] sm:$0xff] %vm1841, %v5859
        %5893 = vst.msk [vmem:[%s5888 + $0x20] sm:$0xff] %vm1841, %v5860
        %5894 = vst.msk [vmem:[%s5888 + $0x28] sm:$0xff] %vm1841, %v5861
        %5895 = vst.msk [vmem:[%s5888 + $0x30] sm:$0xff] %vm1841, %v5862
        %5896 = vst.msk [vmem:[%s5888 + $0x38] sm:$0xff] %vm1841, %v5863
        %5897 = vst.msk [vmem:[%s5888 + $0x40] sm:$0xff] %vm1841, %v5864
        %5898 = vst.msk [vmem:[%s5888 + $0x48] sm:$0xff] %vm1841, %v5865
        %5899 = vst.msk [vmem:[%s5888 + $0x50] sm:$0xff] %vm1841, %v5866
        %5900 = vst.msk [vmem:[%s5888 + $0x58] sm:$0xff] %vm1841, %v5867
        %5901 = vst.msk [vmem:[%s5888 + $0x60] sm:$0xff] %vm1841, %v5868
        %5902 = vst.msk [vmem:[%s5888 + $0x68] sm:$0xff] %vm1841, %v5869
        %5903 = vst.msk [vmem:[%s5888 + $0x70] sm:$0xff] %vm1841, %v5870
        %5904 = vst.msk [vmem:[%s5888 + $0x78] sm:$0xff] %vm1841, %v5871
        %5905 = vst.msk [vmem:[%s5888 + $0x80] sm:$0xff] %vm1841, %v5872
        %5906 = vst.msk [vmem:[%s5888 + $0x88] sm:$0xff] %vm1841, %v5873
        %5907 = vst.msk [vmem:[%s5888 + $0x90] sm:$0xff] %vm1841, %v5874
        %5908 = vst.msk [vmem:[%s5888 + $0x98] sm:$0xff] %vm1841, %v5875
        %5909 = vst.msk [vmem:[%s5888 + $0xa0] sm:$0xff] %vm1841, %v5876
        %5910 = vst.msk [vmem:[%s5888 + $0xa8] sm:$0xff] %vm1841, %v5877
        %5911 = vst.msk [vmem:[%s5888 + $0xb0] sm:$0xff] %vm1841, %v5878
        %5912 = vst.msk [vmem:[%s5888 + $0xb8] sm:$0xff] %vm1841, %v5879
        %5913 = vst.msk [vmem:[%s5888 + $0xc0] sm:$0xff] %vm1841, %v5880
        %5914 = vst.msk [vmem:[%s5888 + $0xc8] sm:$0xff] %vm1841, %v5881
        %5915 = vst.msk [vmem:[%s5888 + $0xd0] sm:$0xff] %vm1841, %v5882
        %5916 = vst.msk [vmem:[%s5888 + $0xd8] sm:$0xff] %vm1841, %v5883
        %5917 = vst.msk [vmem:[%s5888 + $0xe0] sm:$0xff] %vm1841, %v5884
        %5918 = vst.msk [vmem:[%s5888 + $0xe8] sm:$0xff] %vm1841, %v5885
        %5919 = vst.msk [vmem:[%s5888 + $0xf0] sm:$0xff] %vm1841, %v5886
        %5920 = vst.msk [vmem:[%s5888 + $0xf8] sm:$0xff] %vm1841, %v5887
        %v5921 = vsel %vm1841, %v5856, 0.0
        %v5922 = vsel %vm1841, %v5857, 0.0
        %v5923 = vadd.f32 %v5921, %v5922
        %v5924 = vsel %vm1841, %v5858, 0.0
        %v5925 = vadd.f32 %v5923, %v5924
        %v5926 = vsel %vm1841, %v5859, 0.0
        %v5927 = vadd.f32 %v5925, %v5926
        %v5928 = vsel %vm1841, %v5860, 0.0
        %v5929 = vadd.f32 %v5927, %v5928
        %v5930 = vsel %vm1841, %v5861, 0.0
        %v5931 = vadd.f32 %v5929, %v5930
        %v5932 = vsel %vm1841, %v5862, 0.0
        %v5933 = vadd.f32 %v5931, %v5932
        %v5934 = vsel %vm1841, %v5863, 0.0
        %v5935 = vadd.f32 %v5933, %v5934
        %v5936 = vsel %vm1841, %v5864, 0.0
        %v5937 = vadd.f32 %v5935, %v5936
        %v5938 = vsel %vm1841, %v5865, 0.0
        %v5939 = vadd.f32 %v5937, %v5938
        %v5940 = vsel %vm1841, %v5866, 0.0
        %v5941 = vadd.f32 %v5939, %v5940
        %v5942 = vsel %vm1841, %v5867, 0.0
        %v5943 = vadd.f32 %v5941, %v5942
        %v5944 = vsel %vm1841, %v5868, 0.0
        %v5945 = vadd.f32 %v5943, %v5944
        %v5946 = vsel %vm1841, %v5869, 0.0
        %v5947 = vadd.f32 %v5945, %v5946
        %v5948 = vsel %vm1841, %v5870, 0.0
        %v5949 = vadd.f32 %v5947, %v5948
        %v5950 = vsel %vm1841, %v5871, 0.0
        %v5951 = vadd.f32 %v5949, %v5950
        %v5952 = vsel %vm1841, %v5872, 0.0
        %v5953 = vadd.f32 %v5951, %v5952
        %v5954 = vsel %vm1841, %v5873, 0.0
        %v5955 = vadd.f32 %v5953, %v5954
        %v5956 = vsel %vm1841, %v5874, 0.0
        %v5957 = vadd.f32 %v5955, %v5956
        %v5958 = vsel %vm1841, %v5875, 0.0
        %v5959 = vadd.f32 %v5957, %v5958
        %v5960 = vsel %vm1841, %v5876, 0.0
        %v5961 = vadd.f32 %v5959, %v5960
        %v5962 = vsel %vm1841, %v5877, 0.0
        %v5963 = vadd.f32 %v5961, %v5962
        %v5964 = vsel %vm1841, %v5878, 0.0
        %v5965 = vadd.f32 %v5963, %v5964
        %v5966 = vsel %vm1841, %v5879, 0.0
        %v5967 = vadd.f32 %v5965, %v5966
        %v5968 = vsel %vm1841, %v5880, 0.0
        %v5969 = vadd.f32 %v5967, %v5968
        %v5970 = vsel %vm1841, %v5881, 0.0
        %v5971 = vadd.f32 %v5969, %v5970
        %v5972 = vsel %vm1841, %v5882, 0.0
        %v5973 = vadd.f32 %v5971, %v5972
        %v5974 = vsel %vm1841, %v5883, 0.0
        %v5975 = vadd.f32 %v5973, %v5974
        %v5976 = vsel %vm1841, %v5884, 0.0
        %v5977 = vadd.f32 %v5975, %v5976
        %v5978 = vsel %vm1841, %v5885, 0.0
        %v5979 = vadd.f32 %v5977, %v5978
        %v5980 = vsel %vm1841, %v5886, 0.0
        %v5981 = vadd.f32 %v5979, %v5980
        %v5982 = vsel %vm1841, %v5887, 0.0
        %v5983 = vadd.f32 %v5981, %v5982
        %v5984 = vrot.slane %v5983, 4
        %v5985 = vadd.f32 %v5983, %v5984
        %v5986 = vrot.slane %v5985, 2
        %v5987 = vadd.f32 %v5985, %v5986
        %v5988 = vrot.slane %v5987, 1
        %v5989 = vadd.f32 %v5987, %v5988
        %v5990 = vadd.f32 %v4705, %v5989
        %v5991 = vmul.f32 %v5856, %v5856
        %v5992 = vmul.f32 %v5857, %v5857
        %v5993 = vmul.f32 %v5858, %v5858
        %v5994 = vmul.f32 %v5859, %v5859
        %v5995 = vmul.f32 %v5860, %v5860
        %v5996 = vmul.f32 %v5861, %v5861
        %v5997 = vmul.f32 %v5862, %v5862
        %v5998 = vmul.f32 %v5863, %v5863
        %v5999 = vmul.f32 %v5864, %v5864
        %v6000 = vmul.f32 %v5865, %v5865
        %v6001 = vmul.f32 %v5866, %v5866
        %v6002 = vmul.f32 %v5867, %v5867
        %v6003 = vmul.f32 %v5868, %v5868
        %v6004 = vmul.f32 %v5869, %v5869
        %v6005 = vmul.f32 %v5870, %v5870
        %v6006 = vmul.f32 %v5871, %v5871
        %v6007 = vmul.f32 %v5872, %v5872
        %v6008 = vmul.f32 %v5873, %v5873
        %v6009 = vmul.f32 %v5874, %v5874
        %v6010 = vmul.f32 %v5875, %v5875
        %v6011 = vmul.f32 %v5876, %v5876
        %v6012 = vmul.f32 %v5877, %v5877
        %v6013 = vmul.f32 %v5878, %v5878
        %v6014 = vmul.f32 %v5879, %v5879
        %v6015 = vmul.f32 %v5880, %v5880
        %v6016 = vmul.f32 %v5881, %v5881
        %v6017 = vmul.f32 %v5882, %v5882
        %v6018 = vmul.f32 %v5883, %v5883
        %v6019 = vmul.f32 %v5884, %v5884
        %v6020 = vmul.f32 %v5885, %v5885
        %v6021 = vmul.f32 %v5886, %v5886
        %v6022 = vmul.f32 %v5887, %v5887
        %v6023 = vsel %vm1841, %v5991, 0.0
        %v6024 = vsel %vm1841, %v5992, 0.0
        %v6025 = vadd.f32 %v6023, %v6024
        %v6026 = vsel %vm1841, %v5993, 0.0
        %v6027 = vadd.f32 %v6025, %v6026
        %v6028 = vsel %vm1841, %v5994, 0.0
        %v6029 = vadd.f32 %v6027, %v6028
        %v6030 = vsel %vm1841, %v5995, 0.0
        %v6031 = vadd.f32 %v6029, %v6030
        %v6032 = vsel %vm1841, %v5996, 0.0
        %v6033 = vadd.f32 %v6031, %v6032
        %v6034 = vsel %vm1841, %v5997, 0.0
        %v6035 = vadd.f32 %v6033, %v6034
        %v6036 = vsel %vm1841, %v5998, 0.0
        %v6037 = vadd.f32 %v6035, %v6036
        %v6038 = vsel %vm1841, %v5999, 0.0
        %v6039 = vadd.f32 %v6037, %v6038
        %v6040 = vsel %vm1841, %v6000, 0.0
        %v6041 = vadd.f32 %v6039, %v6040
        %v6042 = vsel %vm1841, %v6001, 0.0
        %v6043 = vadd.f32 %v6041, %v6042
        %v6044 = vsel %vm1841, %v6002, 0.0
        %v6045 = vadd.f32 %v6043, %v6044
        %v6046 = vsel %vm1841, %v6003, 0.0
        %v6047 = vadd.f32 %v6045, %v6046
        %v6048 = vsel %vm1841, %v6004, 0.0
        %v6049 = vadd.f32 %v6047, %v6048
        %v6050 = vsel %vm1841, %v6005, 0.0
        %v6051 = vadd.f32 %v6049, %v6050
        %v6052 = vsel %vm1841, %v6006, 0.0
        %v6053 = vadd.f32 %v6051, %v6052
        %v6054 = vsel %vm1841, %v6007, 0.0
        %v6055 = vadd.f32 %v6053, %v6054
        %v6056 = vsel %vm1841, %v6008, 0.0
        %v6057 = vadd.f32 %v6055, %v6056
        %v6058 = vsel %vm1841, %v6009, 0.0
        %v6059 = vadd.f32 %v6057, %v6058
        %v6060 = vsel %vm1841, %v6010, 0.0
        %v6061 = vadd.f32 %v6059, %v6060
        %v6062 = vsel %vm1841, %v6011, 0.0
        %v6063 = vadd.f32 %v6061, %v6062
        %v6064 = vsel %vm1841, %v6012, 0.0
        %v6065 = vadd.f32 %v6063, %v6064
        %v6066 = vsel %vm1841, %v6013, 0.0
        %v6067 = vadd.f32 %v6065, %v6066
        %v6068 = vsel %vm1841, %v6014, 0.0
        %v6069 = vadd.f32 %v6067, %v6068
        %v6070 = vsel %vm1841, %v6015, 0.0
        %v6071 = vadd.f32 %v6069, %v6070
        %v6072 = vsel %vm1841, %v6016, 0.0
        %v6073 = vadd.f32 %v6071, %v6072
        %v6074 = vsel %vm1841, %v6017, 0.0
        %v6075 = vadd.f32 %v6073, %v6074
        %v6076 = vsel %vm1841, %v6018, 0.0
        %v6077 = vadd.f32 %v6075, %v6076
        %v6078 = vsel %vm1841, %v6019, 0.0
        %v6079 = vadd.f32 %v6077, %v6078
        %v6080 = vsel %vm1841, %v6020, 0.0
        %v6081 = vadd.f32 %v6079, %v6080
        %v6082 = vsel %vm1841, %v6021, 0.0
        %v6083 = vadd.f32 %v6081, %v6082
        %v6084 = vsel %vm1841, %v6022, 0.0
        %v6085 = vadd.f32 %v6083, %v6084
        %v6086 = vrot.slane %v6085, 4
        %v6087 = vadd.f32 %v6085, %v6086
        %v6088 = vrot.slane %v6087, 2
        %v6089 = vadd.f32 %v6087, %v6088
        %v6090 = vrot.slane %v6089, 1
        %v6091 = vadd.f32 %v6089, %v6090
        %v6092 = vadd.f32 %v4807, %v6091
        %vm6093 = vcmask 57344
        %6094 = vst.msk [vmem:[%s171] sm:$0x1] %vm6093, %v5990
        %6095 = vst.msk [vmem:[%s171 + $0x1] sm:$0x1] %vm6093, %v6092
        %p6096 = scmp.lt.s32.totalorder %s18, 1
        %s6097 = scalar_select %p6096, %s18, 1
        %s6098 = smul.addr %s6097, 128
        %s6099 = smul.addr %s6098, 8
        %s6100 = scalar_lea.vmem %s2, %s6099
        %s6101 = sand.u32 %s99, 1
        %s6102 = scalar_lea.sflag [#allocation3], %s6101
        %s6103 = sand.u32 %s99, 1
        %s6104 = smul.addr %s6103, 2
        %s6105 = scalar_lea.vmem [#allocation2], %s6104
        // Predicated region
        $region29: #{tpu_custom_call.1} parent=27 // pred_check
          %p6106 = pneg %p83
        $region30: #{tpu_custom_call.1} parent=27 // pred_check_branch
          %6108 = sbr.rel (%p6106) target = $region32
        $region31: #{tpu_custom_call.1} parent=27 // pred_region
          _
        $region32: #{tpu_custom_call.1} parent=27 // pred_fallthru
          _
        // Predicated region
        $region33: #{tpu_custom_call.1} parent=27 // pred_check
          %p6109 = pneg %p109
        $region34: #{tpu_custom_call.1} parent=27 // pred_check_branch
          %6111 = sbr.rel (%p6109) target = $region36
        $region35: #{tpu_custom_call.1} parent=27 // pred_region
          %s6113 = ssub.s32 32, 32
          %6114 = vsyncadd %s6102, %s6113
          %s6115 = smul.addr %s18, 32
          %s6116 = scalar_lea.hbm %s3, %s6115
          %s6118 = sshll.u32 %s6105, 4
          %s6119 = int_to_ptr.vmem [resolvable:$true] %s6118
          %6121 = dma.vmem_to_hbm [thread:$0]  %s6119, 32, %s6116, %s6102
        $region36: #{tpu_custom_call.1} parent=27 // pred_fallthru
          _
      $region28: #{tpu_custom_call.1} parent=5 // pred_fallthru
        _
      %p6122 = scmp.le.s32.totalorder 2, %s13
      // Predicated region
      $region37: #{tpu_custom_call.1} parent=5 // pred_check
        %p6123 = pneg %p6122
      $region38: #{tpu_custom_call.1} parent=5 // pred_check_branch
        %6125 = sbr.rel (%p6123) target = $region40
      $region39: #{tpu_custom_call.1} parent=5 // pred_region
        %s6126 = ssub.s32 %s13, 2
        // Predicated region
        $region41: #{tpu_custom_call.1} parent=39 // pred_check
          %p6127 = pneg %p89
        $region42: #{tpu_custom_call.1} parent=39 // pred_check_branch
          %6129 = sbr.rel (%p6127) target = $region44
        $region43: #{tpu_custom_call.1} parent=39 // pred_region
          %p6130 = scmp.lt.s32.totalorder %s19, 1
          %s6131 = scalar_select %p6130, %s19, 1
          %s6132 = smul.addr %s6131, 128
          %s6133 = smul.addr %s6132, 8
          %s6134 = scalar_lea.vmem %s2, %s6133
        $region44: #{tpu_custom_call.1} parent=39 // pred_fallthru
          _
        // Predicated region
        $region45: #{tpu_custom_call.1} parent=39 // pred_check
          %p6135 = pneg %p115
        $region46: #{tpu_custom_call.1} parent=39 // pred_check_branch
          %6137 = sbr.rel (%p6135) target = $region48
        $region47: #{tpu_custom_call.1} parent=39 // pred_region
          %s6138 = sand.u32 %s100, 1
          %s6139 = scalar_lea.sflag [#allocation3], %s6138
          %s6140 = sand.u32 %s100, 1
          %s6141 = smul.addr %s6140, 2
          %s6142 = scalar_lea.vmem [#allocation2], %s6141
          %6143 = dma.done %s6139, 32
        $region48: #{tpu_custom_call.1} parent=39 // pred_fallthru
          _
      $region40: #{tpu_custom_call.1} parent=5 // pred_fallthru
        _
    $region6: #{tpu_custom_call.1} parent=1 // loop_footer
      %s17 = sadd.s32 1, %s13
    $region7: #{tpu_custom_call.1} parent=1 // loop_footer_branch
      %12 = sbr.rel target = $region3
    $region8: #{tpu_custom_call.1} parent=1 // loop_exit
      _
    %6144 = vsyncpa [#allocation3], 1
    %s6145 = scalar_lea.sflag [#allocation3], 1
    %6146 = vsyncpa %s6145, 1

</llo_original>
